<compile_context>
chip_gen: v6e
topology: v6e:2x2x1
jax: 0.10.0
libtpu: 0.0.40
codegen_flags: <defaults>
</compile_context>

<pallas_src>
import functools

import numpy as np

import jax
import jax.numpy as jnp
from jax.experimental import pallas as pl
from jax.experimental.pallas import tpu as pltpu


# ------------------------------ Pallas kernel -------------------------------

def _abc_net_kernel(x_ref, w1_ref, b1_ref, w2_ref, b2_ref, fcw_ref, fcb_ref,
                    o_ref, *, k, H, W, b_tile):
    """Fused ABC_2D -> ReLU -> ABC_2D -> ReLU -> fc1 for b_tile batch elements.

    x_ref  : (b_tile, C, P)        input images, pixels lane-dense (P = H*W)
    w1_ref : (C*k*k, knpp, P)      per-pixel kernel bank, stage 1 (masks folded)
    b1_ref : (knpp, P)             per-pixel bias, stage 1
    w2_ref : (knpp*k*k, knpp2, P)  stage-2 bank (masks folded) / b2_ref bias
    fcw_ref: (P, P)                fc1 weight, stored pre-transposed (P_in, P_out)
    fcb_ref: (1, P)                fc1 bias
    o_ref  : (b_tile, knpp2, P)    output
    """
    P = H * W
    pad = k // 2
    kk = k * k

    # Static per-tap lane shifts: rolled[p] = src[(p + di*W + dj) mod P].
    # Out-of-image (wrapped) taps are killed by the zero rows that were folded
    # into the weight banks at init time, so no separate boundary masks exist.
    shifts = [(-((kh - pad) * W + (kw - pad))) % P
              for kh in range(k) for kw in range(k)]

    def conv_relu(src, w_ref, b_ref):
        # src: (c_in, P) register value; w_ref: (c_in*k*k, n_out, P) ref.
        # out[n,p] = relu(b[n,p] + sum_{c,t} w[c*kk+t, n, p] * src[c, nbr_t(p)])
        c_in = src.shape[0]
        acc = b_ref[...]                                     # (n_out, P) f32
        for t in range(kk):                                  # 9 full-slab rolls
            rolled = pltpu.roll(src, shifts[t], 1) if shifts[t] else src
            for c in range(c_in):
                acc = acc + rolled[c:c + 1, :] * w_ref[c * kk + t]
        return jnp.maximum(acc, 0.0)                         # fused ReLU

    knpp2 = o_ref.shape[1]

    # TODO(synk): perf-review item 8 (weights as (n_out, J, P) + sublane-axis
    # reduction to shed the (1,P)->(n_out,P) broadcasts) is medium-confidence;
    # needs a bundle dump to confirm before restructuring.
    y2_rows = []
    for b in range(b_tile):
        x_b = x_ref[b]                                       # (C, P)
        y1 = conv_relu(x_b, w1_ref, b1_ref)                  # (knpp, P) in vregs
        y2_rows.append(conv_relu(y1, w2_ref, b2_ref))        # (knpp2, P)
    y2_all = y2_rows[0] if b_tile == 1 else jnp.concatenate(y2_rows, axis=0)

    # fc1: one (b_tile*knpp2, P) @ (P, P) MXU matmul for the whole block.
    out = (jnp.dot(y2_all, fcw_ref[...], preferred_element_type=jnp.float32)
           + fcb_ref[...])
    for b in range(b_tile):
        o_ref[b] = out[b * knpp2:(b + 1) * knpp2, :]


# -------------------------------- JAX glue ----------------------------------

def _tap_masks_np(H, W, k):
    """(k*k, P) f32: 1 where tap (kh,kw)'s source pixel lies inside the image."""
    P = H * W
    pad = k // 2
    ii, jj = np.meshgrid(np.arange(H), np.arange(W), indexing="ij")
    ii = ii.reshape(P)
    jj = jj.reshape(P)
    m = np.zeros((k * k, P), np.float32)
    for kh in range(k):
        for kw in range(k):
            di, dj = kh - pad, kw - pad
            ok = (ii + di >= 0) & (ii + di < H) & (jj + dj >= 0) & (jj + dj < W)
            m[kh * k + kw] = ok.astype(np.float32)
    return m


def init_params(key, C, H, W, k, knpp, knpp2):
    P = H * W
    kk = k * k
    ks = jax.random.split(key, 6)
    s = 0.1
    mask = _tap_masks_np(H, W, k)                              # (kk, P)
    m1 = jnp.asarray(np.tile(mask, (C, 1)))[:, None, :]        # (C*kk, 1, P)
    m2 = jnp.asarray(np.tile(mask, (knpp, 1)))[:, None, :]     # (knpp*kk, 1, P)
    w1 = jax.random.normal(ks[0], (C * kk, knpp, P), jnp.float32) * s
    w2 = jax.random.normal(ks[2], (knpp * kk, knpp2, P), jnp.float32) * s
    return dict(
        # per-pixel weight banks, pixels lane-dense, tap index j = c*kk+kh*k+kw,
        # boundary masks folded in (zero weight where the tap leaves the image).
        w1=w1 * m1,
        b1=jax.random.normal(ks[1], (knpp, P), jnp.float32) * s,
        w2=w2 * m2,
        b2=jax.random.normal(ks[3], (knpp2, P), jnp.float32) * s,
        # fc1 weight stored pre-transposed (P_in, P_out): no .T per forward.
        fc_w=jax.random.normal(ks[4], (P, P), jnp.float32) * (1.0 / P) ** 0.5,
        fc_b=jax.random.normal(ks[5], (1, P), jnp.float32) * s,
    )


def _pick_b_tile(B):
    # Amortize the ~0.35 us per-grid-step overhead, but keep >= 2 grid steps so
    # both v7x TensorCores get work on the "parallel" batch axis.
    for cand in (8, 4, 2):
        if B % cand == 0 and B // cand >= 2:
            return cand
    return 1


@functools.partial(jax.jit, static_argnames=("k",))
def abc_net_forward(params, x, *, k):
    B, C, H, W = x.shape
    P = H * W
    J1, knpp, _ = params["w1"].shape
    J2, knpp2, _ = params["w2"].shape
    assert J1 == C * k * k and J2 == knpp * k * k

    b_tile = _pick_b_tile(B)
    x_flat = x.reshape(B, C, P)        # free reshape, no transpose / im2col

    kernel = functools.partial(_abc_net_kernel, k=k, H=H, W=W, b_tile=b_tile)
    out = pl.pallas_call(
        kernel,
        out_shape=jax.ShapeDtypeStruct((B, knpp2, P), jnp.float32),
        grid_spec=pltpu.PrefetchScalarGridSpec(
            num_scalar_prefetch=0,
            grid=(B // b_tile,),
            in_specs=[
                pl.BlockSpec((b_tile, C, P), lambda s: (s, 0, 0)),    # x
                pl.BlockSpec((J1, knpp, P), lambda s: (0, 0, 0)),     # w1
                pl.BlockSpec((knpp, P), lambda s: (0, 0)),            # b1
                pl.BlockSpec((J2, knpp2, P), lambda s: (0, 0, 0)),    # w2
                pl.BlockSpec((knpp2, P), lambda s: (0, 0)),           # b2
                pl.BlockSpec((P, P), lambda s: (0, 0)),               # fc_w
                pl.BlockSpec((1, P), lambda s: (0, 0)),               # fc_b
            ],
            out_specs=pl.BlockSpec((b_tile, knpp2, P), lambda s: (s, 0, 0)),
        ),
        compiler_params=pltpu.CompilerParams(
            dimension_semantics=("parallel",)),   # both TCs busy on v7x
    )(x_flat, params["w1"], params["b1"], params["w2"], params["b2"],
      params["fc_w"], params["fc_b"])

    # x.reshape(B, predict_len, H, W) with predict_len == knpp2
    return out.reshape(B, knpp2, H, W)


# ------------------------- pure-JAX reference (test) ------------------------

def abc_net_reference(params, x, *, k):
    """Explicit zero-padding reference (no rolls) to pin the shift convention."""
    B, C, H, W = x.shape
    P = H * W
    pad = k // 2
    kk = k * k

    def abc2d(inp, w, b):
        c_in = inp.shape[1]
        n_out = w.shape[1]
        xp = jnp.pad(inp, ((0, 0), (0, 0), (pad, pad), (pad, pad)))
        out = jnp.zeros((B, n_out, P), jnp.float32) + b[None]
        for c in range(c_in):
            for kh in range(k):
                for kw in range(k):
                    j = c * kk + kh * k + kw
                    patch = xp[:, c, kh:kh + H, kw:kw + W].reshape(B, P)
                    out = out + patch[:, None, :] * w[j][None]
        return out

    y1 = jax.nn.relu(abc2d(x, params["w1"], params["b1"]))
    y2 = jax.nn.relu(abc2d(y1.reshape(B, -1, H, W), params["w2"], params["b2"]))
    out = (jnp.einsum("bnp,pq->bnq", y2, params["fc_w"],
                      precision=jax.lax.Precision.HIGHEST)
           + params["fc_b"])
    return out.reshape(B, -1, H, W)


if __name__ == "__main__":
    # args: input_channel=4, input_height=input_width=16, kernel_size=3,
    #       knpp=8, knpp2=predict_len=4
    B, C, H, W = 2, 4, 16, 16
    k, knpp, knpp2 = 3, 8, 4

    key = jax.random.PRNGKey(0)
    kx, kp = jax.random.split(key)
    x = jax.random.normal(kx, (B, C, H, W), jnp.float32)
    params = init_params(kp, C, H, W, k, knpp, knpp2)

    out = jax.block_until_ready(abc_net_forward(params, x, k=k))
    assert out.shape == (B, knpp2, H, W), out.shape

    # Numerics check vs. the zero-padded reference (catches roll-sign or
    # mask-folding errors; tolerance leaves headroom for MXU f32 pass order).
    ref = jax.block_until_ready(abc_net_reference(params, x, k=k))
    np.testing.assert_allclose(np.asarray(out), np.asarray(ref),
                               rtol=5e-3, atol=5e-3)
    print("KERNEL_OK")
</pallas_src>

<mosaic_0001>
module attributes {stable_mosaic.version = 11 : i64} {
  func.func @_abc_net_kernel(%arg0: i32, %arg1: memref<1x4x256xf32, #tpu.memory_space<vmem>>, %arg2: memref<36x8x256xf32, #tpu.memory_space<vmem>>, %arg3: memref<8x256xf32, #tpu.memory_space<vmem>>, %arg4: memref<72x4x256xf32, #tpu.memory_space<vmem>>, %arg5: memref<4x256xf32, #tpu.memory_space<vmem>>, %arg6: memref<256x256xf32, #tpu.memory_space<vmem>>, %arg7: memref<1x256xf32, #tpu.memory_space<vmem>>, %arg8: memref<1x4x256xf32, #tpu.memory_space<vmem>>) attributes {dimension_semantics = [#tpu.dimension_semantics<parallel>], iteration_bounds = array<i64: 2>, scalar_prefetch = 0 : i64, scratch_operands = 0 : i64, tpu.core_type = #tpu.core_type<tc>, window_params = [{transform_indices = @transform_0, window_bounds = array<i64: 1, 4, 256>}, {pipeline_mode = #tpu.pipeline_mode<synchronous>, transform_indices = @transform_1, window_bounds = array<i64: 36, 8, 256>}, {pipeline_mode = #tpu.pipeline_mode<synchronous>, transform_indices = @transform_2, window_bounds = array<i64: 8, 256>}, {pipeline_mode = #tpu.pipeline_mode<synchronous>, transform_indices = @transform_3, window_bounds = array<i64: 72, 4, 256>}, {pipeline_mode = #tpu.pipeline_mode<synchronous>, transform_indices = @transform_4, window_bounds = array<i64: 4, 256>}, {pipeline_mode = #tpu.pipeline_mode<synchronous>, transform_indices = @transform_5, window_bounds = array<i64: 256, 256>}, {pipeline_mode = #tpu.pipeline_mode<synchronous>, transform_indices = @transform_6, window_bounds = array<i64: 1, 256>}, {transform_indices = @transform_7, window_bounds = array<i64: 1, 4, 256>}]} {
    %c0 = arith.constant 0 : index
    %c0_0 = arith.constant 0 : index
    %c0_1 = arith.constant 0 : index
    %0 = vector.load %arg1[%c0, %c0_0, %c0_1] : memref<1x4x256xf32, #tpu.memory_space<vmem>>, vector<1x4x256xf32>
    %1 = vector.shape_cast %0 : vector<1x4x256xf32> to vector<4x256xf32>
    %c0_2 = arith.constant 0 : index
    %c0_3 = arith.constant 0 : index
    %2 = vector.load %arg3[%c0_2, %c0_3] : memref<8x256xf32, #tpu.memory_space<vmem>>, vector<8x256xf32>
    %c17_i32 = arith.constant 17 : i32
    %3 = tpu.dynamic_rotate %1 by %c17_i32 dim 1 : vector<4x256xf32>, i32 -> vector<4x256xf32>
    %4 = vector.extract_strided_slice %3 {offsets = [0, 0], sizes = [1, 256], strides = [1, 1]} : vector<4x256xf32> to vector<1x256xf32>
    %c0_4 = arith.constant 0 : index
    %c0_5 = arith.constant 0 : index
    %c0_6 = arith.constant 0 : index
    %5 = vector.load %arg2[%c0_4, %c0_5, %c0_6] : memref<36x8x256xf32, #tpu.memory_space<vmem>>, vector<1x8x256xf32>
    %6 = vector.shape_cast %5 : vector<1x8x256xf32> to vector<8x256xf32>
    %7 = vector.broadcast %4 : vector<1x256xf32> to vector<8x256xf32>
    %8 = arith.mulf %7, %6 : vector<8x256xf32>
    %9 = arith.addf %2, %8 : vector<8x256xf32>
    %10 = vector.extract_strided_slice %3 {offsets = [1, 0], sizes = [1, 256], strides = [1, 1]} : vector<4x256xf32> to vector<1x256xf32>
    %c9 = arith.constant 9 : index
    %c0_7 = arith.constant 0 : index
    %c0_8 = arith.constant 0 : index
    %11 = vector.load %arg2[%c9, %c0_7, %c0_8] : memref<36x8x256xf32, #tpu.memory_space<vmem>>, vector<1x8x256xf32>
    %12 = vector.shape_cast %11 : vector<1x8x256xf32> to vector<8x256xf32>
    %13 = vector.broadcast %10 : vector<1x256xf32> to vector<8x256xf32>
    %14 = arith.mulf %13, %12 : vector<8x256xf32>
    %15 = arith.addf %9, %14 : vector<8x256xf32>
    %16 = vector.extract_strided_slice %3 {offsets = [2, 0], sizes = [1, 256], strides = [1, 1]} : vector<4x256xf32> to vector<1x256xf32>
    %c18 = arith.constant 18 : index
    %c0_9 = arith.constant 0 : index
    %c0_10 = arith.constant 0 : index
    %17 = vector.load %arg2[%c18, %c0_9, %c0_10] : memref<36x8x256xf32, #tpu.memory_space<vmem>>, vector<1x8x256xf32>
    %18 = vector.shape_cast %17 : vector<1x8x256xf32> to vector<8x256xf32>
    %19 = vector.broadcast %16 : vector<1x256xf32> to vector<8x256xf32>
    %20 = arith.mulf %19, %18 : vector<8x256xf32>
    %21 = arith.addf %15, %20 : vector<8x256xf32>
    %22 = vector.extract_strided_slice %3 {offsets = [3, 0], sizes = [1, 256], strides = [1, 1]} : vector<4x256xf32> to vector<1x256xf32>
    %c27 = arith.constant 27 : index
    %c0_11 = arith.constant 0 : index
    %c0_12 = arith.constant 0 : index
    %23 = vector.load %arg2[%c27, %c0_11, %c0_12] : memref<36x8x256xf32, #tpu.memory_space<vmem>>, vector<1x8x256xf32>
    %24 = vector.shape_cast %23 : vector<1x8x256xf32> to vector<8x256xf32>
    %25 = vector.broadcast %22 : vector<1x256xf32> to vector<8x256xf32>
    %26 = arith.mulf %25, %24 : vector<8x256xf32>
    %27 = arith.addf %21, %26 : vector<8x256xf32>
    %c16_i32 = arith.constant 16 : i32
    %28 = tpu.dynamic_rotate %1 by %c16_i32 dim 1 : vector<4x256xf32>, i32 -> vector<4x256xf32>
    %29 = vector.extract_strided_slice %28 {offsets = [0, 0], sizes = [1, 256], strides = [1, 1]} : vector<4x256xf32> to vector<1x256xf32>
    %c1 = arith.constant 1 : index
    %c0_13 = arith.constant 0 : index
    %c0_14 = arith.constant 0 : index
    %30 = vector.load %arg2[%c1, %c0_13, %c0_14] : memref<36x8x256xf32, #tpu.memory_space<vmem>>, vector<1x8x256xf32>
    %31 = vector.shape_cast %30 : vector<1x8x256xf32> to vector<8x256xf32>
    %32 = vector.broadcast %29 : vector<1x256xf32> to vector<8x256xf32>
    %33 = arith.mulf %32, %31 : vector<8x256xf32>
    %34 = arith.addf %27, %33 : vector<8x256xf32>
    %35 = vector.extract_strided_slice %28 {offsets = [1, 0], sizes = [1, 256], strides = [1, 1]} : vector<4x256xf32> to vector<1x256xf32>
    %c10 = arith.constant 10 : index
    %c0_15 = arith.constant 0 : index
    %c0_16 = arith.constant 0 : index
    %36 = vector.load %arg2[%c10, %c0_15, %c0_16] : memref<36x8x256xf32, #tpu.memory_space<vmem>>, vector<1x8x256xf32>
    %37 = vector.shape_cast %36 : vector<1x8x256xf32> to vector<8x256xf32>
    %38 = vector.broadcast %35 : vector<1x256xf32> to vector<8x256xf32>
    %39 = arith.mulf %38, %37 : vector<8x256xf32>
    %40 = arith.addf %34, %39 : vector<8x256xf32>
    %41 = vector.extract_strided_slice %28 {offsets = [2, 0], sizes = [1, 256], strides = [1, 1]} : vector<4x256xf32> to vector<1x256xf32>
    %c19 = arith.constant 19 : index
    %c0_17 = arith.constant 0 : index
    %c0_18 = arith.constant 0 : index
    %42 = vector.load %arg2[%c19, %c0_17, %c0_18] : memref<36x8x256xf32, #tpu.memory_space<vmem>>, vector<1x8x256xf32>
    %43 = vector.shape_cast %42 : vector<1x8x256xf32> to vector<8x256xf32>
    %44 = vector.broadcast %41 : vector<1x256xf32> to vector<8x256xf32>
    %45 = arith.mulf %44, %43 : vector<8x256xf32>
    %46 = arith.addf %40, %45 : vector<8x256xf32>
    %47 = vector.extract_strided_slice %28 {offsets = [3, 0], sizes = [1, 256], strides = [1, 1]} : vector<4x256xf32> to vector<1x256xf32>
    %c28 = arith.constant 28 : index
    %c0_19 = arith.constant 0 : index
    %c0_20 = arith.constant 0 : index
    %48 = vector.load %arg2[%c28, %c0_19, %c0_20] : memref<36x8x256xf32, #tpu.memory_space<vmem>>, vector<1x8x256xf32>
    %49 = vector.shape_cast %48 : vector<1x8x256xf32> to vector<8x256xf32>
    %50 = vector.broadcast %47 : vector<1x256xf32> to vector<8x256xf32>
    %51 = arith.mulf %50, %49 : vector<8x256xf32>
    %52 = arith.addf %46, %51 : vector<8x256xf32>
    %c15_i32 = arith.constant 15 : i32
    %53 = tpu.dynamic_rotate %1 by %c15_i32 dim 1 : vector<4x256xf32>, i32 -> vector<4x256xf32>
    %54 = vector.extract_strided_slice %53 {offsets = [0, 0], sizes = [1, 256], strides = [1, 1]} : vector<4x256xf32> to vector<1x256xf32>
    %c2 = arith.constant 2 : index
    %c0_21 = arith.constant 0 : index
    %c0_22 = arith.constant 0 : index
    %55 = vector.load %arg2[%c2, %c0_21, %c0_22] : memref<36x8x256xf32, #tpu.memory_space<vmem>>, vector<1x8x256xf32>
    %56 = vector.shape_cast %55 : vector<1x8x256xf32> to vector<8x256xf32>
    %57 = vector.broadcast %54 : vector<1x256xf32> to vector<8x256xf32>
    %58 = arith.mulf %57, %56 : vector<8x256xf32>
    %59 = arith.addf %52, %58 : vector<8x256xf32>
    %60 = vector.extract_strided_slice %53 {offsets = [1, 0], sizes = [1, 256], strides = [1, 1]} : vector<4x256xf32> to vector<1x256xf32>
    %c11 = arith.constant 11 : index
    %c0_23 = arith.constant 0 : index
    %c0_24 = arith.constant 0 : index
    %61 = vector.load %arg2[%c11, %c0_23, %c0_24] : memref<36x8x256xf32, #tpu.memory_space<vmem>>, vector<1x8x256xf32>
    %62 = vector.shape_cast %61 : vector<1x8x256xf32> to vector<8x256xf32>
    %63 = vector.broadcast %60 : vector<1x256xf32> to vector<8x256xf32>
    %64 = arith.mulf %63, %62 : vector<8x256xf32>
    %65 = arith.addf %59, %64 : vector<8x256xf32>
    %66 = vector.extract_strided_slice %53 {offsets = [2, 0], sizes = [1, 256], strides = [1, 1]} : vector<4x256xf32> to vector<1x256xf32>
    %c20 = arith.constant 20 : index
    %c0_25 = arith.constant 0 : index
    %c0_26 = arith.constant 0 : index
    %67 = vector.load %arg2[%c20, %c0_25, %c0_26] : memref<36x8x256xf32, #tpu.memory_space<vmem>>, vector<1x8x256xf32>
    %68 = vector.shape_cast %67 : vector<1x8x256xf32> to vector<8x256xf32>
    %69 = vector.broadcast %66 : vector<1x256xf32> to vector<8x256xf32>
    %70 = arith.mulf %69, %68 : vector<8x256xf32>
    %71 = arith.addf %65, %70 : vector<8x256xf32>
    %72 = vector.extract_strided_slice %53 {offsets = [3, 0], sizes = [1, 256], strides = [1, 1]} : vector<4x256xf32> to vector<1x256xf32>
    %c29 = arith.constant 29 : index
    %c0_27 = arith.constant 0 : index
    %c0_28 = arith.constant 0 : index
    %73 = vector.load %arg2[%c29, %c0_27, %c0_28] : memref<36x8x256xf32, #tpu.memory_space<vmem>>, vector<1x8x256xf32>
    %74 = vector.shape_cast %73 : vector<1x8x256xf32> to vector<8x256xf32>
    %75 = vector.broadcast %72 : vector<1x256xf32> to vector<8x256xf32>
    %76 = arith.mulf %75, %74 : vector<8x256xf32>
    %77 = arith.addf %71, %76 : vector<8x256xf32>
    %c1_i32 = arith.constant 1 : i32
    %78 = tpu.dynamic_rotate %1 by %c1_i32 dim 1 : vector<4x256xf32>, i32 -> vector<4x256xf32>
    %79 = vector.extract_strided_slice %78 {offsets = [0, 0], sizes = [1, 256], strides = [1, 1]} : vector<4x256xf32> to vector<1x256xf32>
    %c3 = arith.constant 3 : index
    %c0_29 = arith.constant 0 : index
    %c0_30 = arith.constant 0 : index
    %80 = vector.load %arg2[%c3, %c0_29, %c0_30] : memref<36x8x256xf32, #tpu.memory_space<vmem>>, vector<1x8x256xf32>
    %81 = vector.shape_cast %80 : vector<1x8x256xf32> to vector<8x256xf32>
    %82 = vector.broadcast %79 : vector<1x256xf32> to vector<8x256xf32>
    %83 = arith.mulf %82, %81 : vector<8x256xf32>
    %84 = arith.addf %77, %83 : vector<8x256xf32>
    %85 = vector.extract_strided_slice %78 {offsets = [1, 0], sizes = [1, 256], strides = [1, 1]} : vector<4x256xf32> to vector<1x256xf32>
    %c12 = arith.constant 12 : index
    %c0_31 = arith.constant 0 : index
    %c0_32 = arith.constant 0 : index
    %86 = vector.load %arg2[%c12, %c0_31, %c0_32] : memref<36x8x256xf32, #tpu.memory_space<vmem>>, vector<1x8x256xf32>
    %87 = vector.shape_cast %86 : vector<1x8x256xf32> to vector<8x256xf32>
    %88 = vector.broadcast %85 : vector<1x256xf32> to vector<8x256xf32>
    %89 = arith.mulf %88, %87 : vector<8x256xf32>
    %90 = arith.addf %84, %89 : vector<8x256xf32>
    %91 = vector.extract_strided_slice %78 {offsets = [2, 0], sizes = [1, 256], strides = [1, 1]} : vector<4x256xf32> to vector<1x256xf32>
    %c21 = arith.constant 21 : index
    %c0_33 = arith.constant 0 : index
    %c0_34 = arith.constant 0 : index
    %92 = vector.load %arg2[%c21, %c0_33, %c0_34] : memref<36x8x256xf32, #tpu.memory_space<vmem>>, vector<1x8x256xf32>
    %93 = vector.shape_cast %92 : vector<1x8x256xf32> to vector<8x256xf32>
    %94 = vector.broadcast %91 : vector<1x256xf32> to vector<8x256xf32>
    %95 = arith.mulf %94, %93 : vector<8x256xf32>
    %96 = arith.addf %90, %95 : vector<8x256xf32>
    %97 = vector.extract_strided_slice %78 {offsets = [3, 0], sizes = [1, 256], strides = [1, 1]} : vector<4x256xf32> to vector<1x256xf32>
    %c30 = arith.constant 30 : index
    %c0_35 = arith.constant 0 : index
    %c0_36 = arith.constant 0 : index
    %98 = vector.load %arg2[%c30, %c0_35, %c0_36] : memref<36x8x256xf32, #tpu.memory_space<vmem>>, vector<1x8x256xf32>
    %99 = vector.shape_cast %98 : vector<1x8x256xf32> to vector<8x256xf32>
    %100 = vector.broadcast %97 : vector<1x256xf32> to vector<8x256xf32>
    %101 = arith.mulf %100, %99 : vector<8x256xf32>
    %102 = arith.addf %96, %101 : vector<8x256xf32>
    %103 = vector.extract_strided_slice %1 {offsets = [0, 0], sizes = [1, 256], strides = [1, 1]} : vector<4x256xf32> to vector<1x256xf32>
    %c4 = arith.constant 4 : index
    %c0_37 = arith.constant 0 : index
    %c0_38 = arith.constant 0 : index
    %104 = vector.load %arg2[%c4, %c0_37, %c0_38] : memref<36x8x256xf32, #tpu.memory_space<vmem>>, vector<1x8x256xf32>
    %105 = vector.shape_cast %104 : vector<1x8x256xf32> to vector<8x256xf32>
    %106 = vector.broadcast %103 : vector<1x256xf32> to vector<8x256xf32>
    %107 = arith.mulf %106, %105 : vector<8x256xf32>
    %108 = arith.addf %102, %107 : vector<8x256xf32>
    %109 = vector.extract_strided_slice %1 {offsets = [1, 0], sizes = [1, 256], strides = [1, 1]} : vector<4x256xf32> to vector<1x256xf32>
    %c13 = arith.constant 13 : index
    %c0_39 = arith.constant 0 : index
    %c0_40 = arith.constant 0 : index
    %110 = vector.load %arg2[%c13, %c0_39, %c0_40] : memref<36x8x256xf32, #tpu.memory_space<vmem>>, vector<1x8x256xf32>
    %111 = vector.shape_cast %110 : vector<1x8x256xf32> to vector<8x256xf32>
    %112 = vector.broadcast %109 : vector<1x256xf32> to vector<8x256xf32>
    %113 = arith.mulf %112, %111 : vector<8x256xf32>
    %114 = arith.addf %108, %113 : vector<8x256xf32>
    %115 = vector.extract_strided_slice %1 {offsets = [2, 0], sizes = [1, 256], strides = [1, 1]} : vector<4x256xf32> to vector<1x256xf32>
    %c22 = arith.constant 22 : index
    %c0_41 = arith.constant 0 : index
    %c0_42 = arith.constant 0 : index
    %116 = vector.load %arg2[%c22, %c0_41, %c0_42] : memref<36x8x256xf32, #tpu.memory_space<vmem>>, vector<1x8x256xf32>
    %117 = vector.shape_cast %116 : vector<1x8x256xf32> to vector<8x256xf32>
    %118 = vector.broadcast %115 : vector<1x256xf32> to vector<8x256xf32>
    %119 = arith.mulf %118, %117 : vector<8x256xf32>
    %120 = arith.addf %114, %119 : vector<8x256xf32>
    %121 = vector.extract_strided_slice %1 {offsets = [3, 0], sizes = [1, 256], strides = [1, 1]} : vector<4x256xf32> to vector<1x256xf32>
    %c31 = arith.constant 31 : index
    %c0_43 = arith.constant 0 : index
    %c0_44 = arith.constant 0 : index
    %122 = vector.load %arg2[%c31, %c0_43, %c0_44] : memref<36x8x256xf32, #tpu.memory_space<vmem>>, vector<1x8x256xf32>
    %123 = vector.shape_cast %122 : vector<1x8x256xf32> to vector<8x256xf32>
    %124 = vector.broadcast %121 : vector<1x256xf32> to vector<8x256xf32>
    %125 = arith.mulf %124, %123 : vector<8x256xf32>
    %126 = arith.addf %120, %125 : vector<8x256xf32>
    %c255_i32 = arith.constant 255 : i32
    %127 = tpu.dynamic_rotate %1 by %c255_i32 dim 1 : vector<4x256xf32>, i32 -> vector<4x256xf32>
    %128 = vector.extract_strided_slice %127 {offsets = [0, 0], sizes = [1, 256], strides = [1, 1]} : vector<4x256xf32> to vector<1x256xf32>
    %c5 = arith.constant 5 : index
    %c0_45 = arith.constant 0 : index
    %c0_46 = arith.constant 0 : index
    %129 = vector.load %arg2[%c5, %c0_45, %c0_46] : memref<36x8x256xf32, #tpu.memory_space<vmem>>, vector<1x8x256xf32>
    %130 = vector.shape_cast %129 : vector<1x8x256xf32> to vector<8x256xf32>
    %131 = vector.broadcast %128 : vector<1x256xf32> to vector<8x256xf32>
    %132 = arith.mulf %131, %130 : vector<8x256xf32>
    %133 = arith.addf %126, %132 : vector<8x256xf32>
    %134 = vector.extract_strided_slice %127 {offsets = [1, 0], sizes = [1, 256], strides = [1, 1]} : vector<4x256xf32> to vector<1x256xf32>
    %c14 = arith.constant 14 : index
    %c0_47 = arith.constant 0 : index
    %c0_48 = arith.constant 0 : index
    %135 = vector.load %arg2[%c14, %c0_47, %c0_48] : memref<36x8x256xf32, #tpu.memory_space<vmem>>, vector<1x8x256xf32>
    %136 = vector.shape_cast %135 : vector<1x8x256xf32> to vector<8x256xf32>
    %137 = vector.broadcast %134 : vector<1x256xf32> to vector<8x256xf32>
    %138 = arith.mulf %137, %136 : vector<8x256xf32>
    %139 = arith.addf %133, %138 : vector<8x256xf32>
    %140 = vector.extract_strided_slice %127 {offsets = [2, 0], sizes = [1, 256], strides = [1, 1]} : vector<4x256xf32> to vector<1x256xf32>
    %c23 = arith.constant 23 : index
    %c0_49 = arith.constant 0 : index
    %c0_50 = arith.constant 0 : index
    %141 = vector.load %arg2[%c23, %c0_49, %c0_50] : memref<36x8x256xf32, #tpu.memory_space<vmem>>, vector<1x8x256xf32>
    %142 = vector.shape_cast %141 : vector<1x8x256xf32> to vector<8x256xf32>
    %143 = vector.broadcast %140 : vector<1x256xf32> to vector<8x256xf32>
    %144 = arith.mulf %143, %142 : vector<8x256xf32>
    %145 = arith.addf %139, %144 : vector<8x256xf32>
    %146 = vector.extract_strided_slice %127 {offsets = [3, 0], sizes = [1, 256], strides = [1, 1]} : vector<4x256xf32> to vector<1x256xf32>
    %c32 = arith.constant 32 : index
    %c0_51 = arith.constant 0 : index
    %c0_52 = arith.constant 0 : index
    %147 = vector.load %arg2[%c32, %c0_51, %c0_52] : memref<36x8x256xf32, #tpu.memory_space<vmem>>, vector<1x8x256xf32>
    %148 = vector.shape_cast %147 : vector<1x8x256xf32> to vector<8x256xf32>
    %149 = vector.broadcast %146 : vector<1x256xf32> to vector<8x256xf32>
    %150 = arith.mulf %149, %148 : vector<8x256xf32>
    %151 = arith.addf %145, %150 : vector<8x256xf32>
    %c241_i32 = arith.constant 241 : i32
    %152 = tpu.dynamic_rotate %1 by %c241_i32 dim 1 : vector<4x256xf32>, i32 -> vector<4x256xf32>
    %153 = vector.extract_strided_slice %152 {offsets = [0, 0], sizes = [1, 256], strides = [1, 1]} : vector<4x256xf32> to vector<1x256xf32>
    %c6 = arith.constant 6 : index
    %c0_53 = arith.constant 0 : index
    %c0_54 = arith.constant 0 : index
    %154 = vector.load %arg2[%c6, %c0_53, %c0_54] : memref<36x8x256xf32, #tpu.memory_space<vmem>>, vector<1x8x256xf32>
    %155 = vector.shape_cast %154 : vector<1x8x256xf32> to vector<8x256xf32>
    %156 = vector.broadcast %153 : vector<1x256xf32> to vector<8x256xf32>
    %157 = arith.mulf %156, %155 : vector<8x256xf32>
    %158 = arith.addf %151, %157 : vector<8x256xf32>
    %159 = vector.extract_strided_slice %152 {offsets = [1, 0], sizes = [1, 256], strides = [1, 1]} : vector<4x256xf32> to vector<1x256xf32>
    %c15 = arith.constant 15 : index
    %c0_55 = arith.constant 0 : index
    %c0_56 = arith.constant 0 : index
    %160 = vector.load %arg2[%c15, %c0_55, %c0_56] : memref<36x8x256xf32, #tpu.memory_space<vmem>>, vector<1x8x256xf32>
    %161 = vector.shape_cast %160 : vector<1x8x256xf32> to vector<8x256xf32>
    %162 = vector.broadcast %159 : vector<1x256xf32> to vector<8x256xf32>
    %163 = arith.mulf %162, %161 : vector<8x256xf32>
    %164 = arith.addf %158, %163 : vector<8x256xf32>
    %165 = vector.extract_strided_slice %152 {offsets = [2, 0], sizes = [1, 256], strides = [1, 1]} : vector<4x256xf32> to vector<1x256xf32>
    %c24 = arith.constant 24 : index
    %c0_57 = arith.constant 0 : index
    %c0_58 = arith.constant 0 : index
    %166 = vector.load %arg2[%c24, %c0_57, %c0_58] : memref<36x8x256xf32, #tpu.memory_space<vmem>>, vector<1x8x256xf32>
    %167 = vector.shape_cast %166 : vector<1x8x256xf32> to vector<8x256xf32>
    %168 = vector.broadcast %165 : vector<1x256xf32> to vector<8x256xf32>
    %169 = arith.mulf %168, %167 : vector<8x256xf32>
    %170 = arith.addf %164, %169 : vector<8x256xf32>
    %171 = vector.extract_strided_slice %152 {offsets = [3, 0], sizes = [1, 256], strides = [1, 1]} : vector<4x256xf32> to vector<1x256xf32>
    %c33 = arith.constant 33 : index
    %c0_59 = arith.constant 0 : index
    %c0_60 = arith.constant 0 : index
    %172 = vector.load %arg2[%c33, %c0_59, %c0_60] : memref<36x8x256xf32, #tpu.memory_space<vmem>>, vector<1x8x256xf32>
    %173 = vector.shape_cast %172 : vector<1x8x256xf32> to vector<8x256xf32>
    %174 = vector.broadcast %171 : vector<1x256xf32> to vector<8x256xf32>
    %175 = arith.mulf %174, %173 : vector<8x256xf32>
    %176 = arith.addf %170, %175 : vector<8x256xf32>
    %c240_i32 = arith.constant 240 : i32
    %177 = tpu.dynamic_rotate %1 by %c240_i32 dim 1 : vector<4x256xf32>, i32 -> vector<4x256xf32>
    %178 = vector.extract_strided_slice %177 {offsets = [0, 0], sizes = [1, 256], strides = [1, 1]} : vector<4x256xf32> to vector<1x256xf32>
    %c7 = arith.constant 7 : index
    %c0_61 = arith.constant 0 : index
    %c0_62 = arith.constant 0 : index
    %179 = vector.load %arg2[%c7, %c0_61, %c0_62] : memref<36x8x256xf32, #tpu.memory_space<vmem>>, vector<1x8x256xf32>
    %180 = vector.shape_cast %179 : vector<1x8x256xf32> to vector<8x256xf32>
    %181 = vector.broadcast %178 : vector<1x256xf32> to vector<8x256xf32>
    %182 = arith.mulf %181, %180 : vector<8x256xf32>
    %183 = arith.addf %176, %182 : vector<8x256xf32>
    %184 = vector.extract_strided_slice %177 {offsets = [1, 0], sizes = [1, 256], strides = [1, 1]} : vector<4x256xf32> to vector<1x256xf32>
    %c16 = arith.constant 16 : index
    %c0_63 = arith.constant 0 : index
    %c0_64 = arith.constant 0 : index
    %185 = vector.load %arg2[%c16, %c0_63, %c0_64] : memref<36x8x256xf32, #tpu.memory_space<vmem>>, vector<1x8x256xf32>
    %186 = vector.shape_cast %185 : vector<1x8x256xf32> to vector<8x256xf32>
    %187 = vector.broadcast %184 : vector<1x256xf32> to vector<8x256xf32>
    %188 = arith.mulf %187, %186 : vector<8x256xf32>
    %189 = arith.addf %183, %188 : vector<8x256xf32>
    %190 = vector.extract_strided_slice %177 {offsets = [2, 0], sizes = [1, 256], strides = [1, 1]} : vector<4x256xf32> to vector<1x256xf32>
    %c25 = arith.constant 25 : index
    %c0_65 = arith.constant 0 : index
    %c0_66 = arith.constant 0 : index
    %191 = vector.load %arg2[%c25, %c0_65, %c0_66] : memref<36x8x256xf32, #tpu.memory_space<vmem>>, vector<1x8x256xf32>
    %192 = vector.shape_cast %191 : vector<1x8x256xf32> to vector<8x256xf32>
    %193 = vector.broadcast %190 : vector<1x256xf32> to vector<8x256xf32>
    %194 = arith.mulf %193, %192 : vector<8x256xf32>
    %195 = arith.addf %189, %194 : vector<8x256xf32>
    %196 = vector.extract_strided_slice %177 {offsets = [3, 0], sizes = [1, 256], strides = [1, 1]} : vector<4x256xf32> to vector<1x256xf32>
    %c34 = arith.constant 34 : index
    %c0_67 = arith.constant 0 : index
    %c0_68 = arith.constant 0 : index
    %197 = vector.load %arg2[%c34, %c0_67, %c0_68] : memref<36x8x256xf32, #tpu.memory_space<vmem>>, vector<1x8x256xf32>
    %198 = vector.shape_cast %197 : vector<1x8x256xf32> to vector<8x256xf32>
    %199 = vector.broadcast %196 : vector<1x256xf32> to vector<8x256xf32>
    %200 = arith.mulf %199, %198 : vector<8x256xf32>
    %201 = arith.addf %195, %200 : vector<8x256xf32>
    %c239_i32 = arith.constant 239 : i32
    %202 = tpu.dynamic_rotate %1 by %c239_i32 dim 1 : vector<4x256xf32>, i32 -> vector<4x256xf32>
    %203 = vector.extract_strided_slice %202 {offsets = [0, 0], sizes = [1, 256], strides = [1, 1]} : vector<4x256xf32> to vector<1x256xf32>
    %c8 = arith.constant 8 : index
    %c0_69 = arith.constant 0 : index
    %c0_70 = arith.constant 0 : index
    %204 = vector.load %arg2[%c8, %c0_69, %c0_70] : memref<36x8x256xf32, #tpu.memory_space<vmem>>, vector<1x8x256xf32>
    %205 = vector.shape_cast %204 : vector<1x8x256xf32> to vector<8x256xf32>
    %206 = vector.broadcast %203 : vector<1x256xf32> to vector<8x256xf32>
    %207 = arith.mulf %206, %205 : vector<8x256xf32>
    %208 = arith.addf %201, %207 : vector<8x256xf32>
    %209 = vector.extract_strided_slice %202 {offsets = [1, 0], sizes = [1, 256], strides = [1, 1]} : vector<4x256xf32> to vector<1x256xf32>
    %c17 = arith.constant 17 : index
    %c0_71 = arith.constant 0 : index
    %c0_72 = arith.constant 0 : index
    %210 = vector.load %arg2[%c17, %c0_71, %c0_72] : memref<36x8x256xf32, #tpu.memory_space<vmem>>, vector<1x8x256xf32>
    %211 = vector.shape_cast %210 : vector<1x8x256xf32> to vector<8x256xf32>
    %212 = vector.broadcast %209 : vector<1x256xf32> to vector<8x256xf32>
    %213 = arith.mulf %212, %211 : vector<8x256xf32>
    %214 = arith.addf %208, %213 : vector<8x256xf32>
    %215 = vector.extract_strided_slice %202 {offsets = [2, 0], sizes = [1, 256], strides = [1, 1]} : vector<4x256xf32> to vector<1x256xf32>
    %c26 = arith.constant 26 : index
    %c0_73 = arith.constant 0 : index
    %c0_74 = arith.constant 0 : index
    %216 = vector.load %arg2[%c26, %c0_73, %c0_74] : memref<36x8x256xf32, #tpu.memory_space<vmem>>, vector<1x8x256xf32>
    %217 = vector.shape_cast %216 : vector<1x8x256xf32> to vector<8x256xf32>
    %218 = vector.broadcast %215 : vector<1x256xf32> to vector<8x256xf32>
    %219 = arith.mulf %218, %217 : vector<8x256xf32>
    %220 = arith.addf %214, %219 : vector<8x256xf32>
    %221 = vector.extract_strided_slice %202 {offsets = [3, 0], sizes = [1, 256], strides = [1, 1]} : vector<4x256xf32> to vector<1x256xf32>
    %c35 = arith.constant 35 : index
    %c0_75 = arith.constant 0 : index
    %c0_76 = arith.constant 0 : index
    %222 = vector.load %arg2[%c35, %c0_75, %c0_76] : memref<36x8x256xf32, #tpu.memory_space<vmem>>, vector<1x8x256xf32>
    %223 = vector.shape_cast %222 : vector<1x8x256xf32> to vector<8x256xf32>
    %224 = vector.broadcast %221 : vector<1x256xf32> to vector<8x256xf32>
    %225 = arith.mulf %224, %223 : vector<8x256xf32>
    %226 = arith.addf %220, %225 : vector<8x256xf32>
    %cst = arith.constant 0.000000e+00 : f32
    %227 = vector.broadcast %cst : f32 to vector<8x256xf32>
    %228 = arith.maximumf %226, %227 : vector<8x256xf32>
    %c0_77 = arith.constant 0 : index
    %c0_78 = arith.constant 0 : index
    %229 = vector.load %arg5[%c0_77, %c0_78] : memref<4x256xf32, #tpu.memory_space<vmem>>, vector<4x256xf32>
    %c17_i32_79 = arith.constant 17 : i32
    %230 = tpu.dynamic_rotate %228 by %c17_i32_79 dim 1 : vector<8x256xf32>, i32 -> vector<8x256xf32>
    %231 = vector.extract_strided_slice %230 {offsets = [0, 0], sizes = [1, 256], strides = [1, 1]} : vector<8x256xf32> to vector<1x256xf32>
    %c0_80 = arith.constant 0 : index
    %c0_81 = arith.constant 0 : index
    %c0_82 = arith.constant 0 : index
    %232 = vector.load %arg4[%c0_80, %c0_81, %c0_82] : memref<72x4x256xf32, #tpu.memory_space<vmem>>, vector<1x4x256xf32>
    %233 = vector.shape_cast %232 : vector<1x4x256xf32> to vector<4x256xf32>
    %234 = vector.broadcast %231 : vector<1x256xf32> to vector<4x256xf32>
    %235 = arith.mulf %234, %233 : vector<4x256xf32>
    %236 = arith.addf %229, %235 : vector<4x256xf32>
    %237 = vector.extract_strided_slice %230 {offsets = [1, 0], sizes = [1, 256], strides = [1, 1]} : vector<8x256xf32> to vector<1x256xf32>
    %c9_83 = arith.constant 9 : index
    %c0_84 = arith.constant 0 : index
    %c0_85 = arith.constant 0 : index
    %238 = vector.load %arg4[%c9_83, %c0_84, %c0_85] : memref<72x4x256xf32, #tpu.memory_space<vmem>>, vector<1x4x256xf32>
    %239 = vector.shape_cast %238 : vector<1x4x256xf32> to vector<4x256xf32>
    %240 = vector.broadcast %237 : vector<1x256xf32> to vector<4x256xf32>
    %241 = arith.mulf %240, %239 : vector<4x256xf32>
    %242 = arith.addf %236, %241 : vector<4x256xf32>
    %243 = vector.extract_strided_slice %230 {offsets = [2, 0], sizes = [1, 256], strides = [1, 1]} : vector<8x256xf32> to vector<1x256xf32>
    %c18_86 = arith.constant 18 : index
    %c0_87 = arith.constant 0 : index
    %c0_88 = arith.constant 0 : index
    %244 = vector.load %arg4[%c18_86, %c0_87, %c0_88] : memref<72x4x256xf32, #tpu.memory_space<vmem>>, vector<1x4x256xf32>
    %245 = vector.shape_cast %244 : vector<1x4x256xf32> to vector<4x256xf32>
    %246 = vector.broadcast %243 : vector<1x256xf32> to vector<4x256xf32>
    %247 = arith.mulf %246, %245 : vector<4x256xf32>
    %248 = arith.addf %242, %247 : vector<4x256xf32>
    %249 = vector.extract_strided_slice %230 {offsets = [3, 0], sizes = [1, 256], strides = [1, 1]} : vector<8x256xf32> to vector<1x256xf32>
    %c27_89 = arith.constant 27 : index
    %c0_90 = arith.constant 0 : index
    %c0_91 = arith.constant 0 : index
    %250 = vector.load %arg4[%c27_89, %c0_90, %c0_91] : memref<72x4x256xf32, #tpu.memory_space<vmem>>, vector<1x4x256xf32>
    %251 = vector.shape_cast %250 : vector<1x4x256xf32> to vector<4x256xf32>
    %252 = vector.broadcast %249 : vector<1x256xf32> to vector<4x256xf32>
    %253 = arith.mulf %252, %251 : vector<4x256xf32>
    %254 = arith.addf %248, %253 : vector<4x256xf32>
    %255 = vector.extract_strided_slice %230 {offsets = [4, 0], sizes = [1, 256], strides = [1, 1]} : vector<8x256xf32> to vector<1x256xf32>
    %c36 = arith.constant 36 : index
    %c0_92 = arith.constant 0 : index
    %c0_93 = arith.constant 0 : index
    %256 = vector.load %arg4[%c36, %c0_92, %c0_93] : memref<72x4x256xf32, #tpu.memory_space<vmem>>, vector<1x4x256xf32>
    %257 = vector.shape_cast %256 : vector<1x4x256xf32> to vector<4x256xf32>
    %258 = vector.broadcast %255 : vector<1x256xf32> to vector<4x256xf32>
    %259 = arith.mulf %258, %257 : vector<4x256xf32>
    %260 = arith.addf %254, %259 : vector<4x256xf32>
    %261 = vector.extract_strided_slice %230 {offsets = [5, 0], sizes = [1, 256], strides = [1, 1]} : vector<8x256xf32> to vector<1x256xf32>
    %c45 = arith.constant 45 : index
    %c0_94 = arith.constant 0 : index
    %c0_95 = arith.constant 0 : index
    %262 = vector.load %arg4[%c45, %c0_94, %c0_95] : memref<72x4x256xf32, #tpu.memory_space<vmem>>, vector<1x4x256xf32>
    %263 = vector.shape_cast %262 : vector<1x4x256xf32> to vector<4x256xf32>
    %264 = vector.broadcast %261 : vector<1x256xf32> to vector<4x256xf32>
    %265 = arith.mulf %264, %263 : vector<4x256xf32>
    %266 = arith.addf %260, %265 : vector<4x256xf32>
    %267 = vector.extract_strided_slice %230 {offsets = [6, 0], sizes = [1, 256], strides = [1, 1]} : vector<8x256xf32> to vector<1x256xf32>
    %c54 = arith.constant 54 : index
    %c0_96 = arith.constant 0 : index
    %c0_97 = arith.constant 0 : index
    %268 = vector.load %arg4[%c54, %c0_96, %c0_97] : memref<72x4x256xf32, #tpu.memory_space<vmem>>, vector<1x4x256xf32>
    %269 = vector.shape_cast %268 : vector<1x4x256xf32> to vector<4x256xf32>
    %270 = vector.broadcast %267 : vector<1x256xf32> to vector<4x256xf32>
    %271 = arith.mulf %270, %269 : vector<4x256xf32>
    %272 = arith.addf %266, %271 : vector<4x256xf32>
    %273 = vector.extract_strided_slice %230 {offsets = [7, 0], sizes = [1, 256], strides = [1, 1]} : vector<8x256xf32> to vector<1x256xf32>
    %c63 = arith.constant 63 : index
    %c0_98 = arith.constant 0 : index
    %c0_99 = arith.constant 0 : index
    %274 = vector.load %arg4[%c63, %c0_98, %c0_99] : memref<72x4x256xf32, #tpu.memory_space<vmem>>, vector<1x4x256xf32>
    %275 = vector.shape_cast %274 : vector<1x4x256xf32> to vector<4x256xf32>
    %276 = vector.broadcast %273 : vector<1x256xf32> to vector<4x256xf32>
    %277 = arith.mulf %276, %275 : vector<4x256xf32>
    %278 = arith.addf %272, %277 : vector<4x256xf32>
    %c16_i32_100 = arith.constant 16 : i32
    %279 = tpu.dynamic_rotate %228 by %c16_i32_100 dim 1 : vector<8x256xf32>, i32 -> vector<8x256xf32>
    %280 = vector.extract_strided_slice %279 {offsets = [0, 0], sizes = [1, 256], strides = [1, 1]} : vector<8x256xf32> to vector<1x256xf32>
    %c1_101 = arith.constant 1 : index
    %c0_102 = arith.constant 0 : index
    %c0_103 = arith.constant 0 : index
    %281 = vector.load %arg4[%c1_101, %c0_102, %c0_103] : memref<72x4x256xf32, #tpu.memory_space<vmem>>, vector<1x4x256xf32>
    %282 = vector.shape_cast %281 : vector<1x4x256xf32> to vector<4x256xf32>
    %283 = vector.broadcast %280 : vector<1x256xf32> to vector<4x256xf32>
    %284 = arith.mulf %283, %282 : vector<4x256xf32>
    %285 = arith.addf %278, %284 : vector<4x256xf32>
    %286 = vector.extract_strided_slice %279 {offsets = [1, 0], sizes = [1, 256], strides = [1, 1]} : vector<8x256xf32> to vector<1x256xf32>
    %c10_104 = arith.constant 10 : index
    %c0_105 = arith.constant 0 : index
    %c0_106 = arith.constant 0 : index
    %287 = vector.load %arg4[%c10_104, %c0_105, %c0_106] : memref<72x4x256xf32, #tpu.memory_space<vmem>>, vector<1x4x256xf32>
    %288 = vector.shape_cast %287 : vector<1x4x256xf32> to vector<4x256xf32>
    %289 = vector.broadcast %286 : vector<1x256xf32> to vector<4x256xf32>
    %290 = arith.mulf %289, %288 : vector<4x256xf32>
    %291 = arith.addf %285, %290 : vector<4x256xf32>
    %292 = vector.extract_strided_slice %279 {offsets = [2, 0], sizes = [1, 256], strides = [1, 1]} : vector<8x256xf32> to vector<1x256xf32>
    %c19_107 = arith.constant 19 : index
    %c0_108 = arith.constant 0 : index
    %c0_109 = arith.constant 0 : index
    %293 = vector.load %arg4[%c19_107, %c0_108, %c0_109] : memref<72x4x256xf32, #tpu.memory_space<vmem>>, vector<1x4x256xf32>
    %294 = vector.shape_cast %293 : vector<1x4x256xf32> to vector<4x256xf32>
    %295 = vector.broadcast %292 : vector<1x256xf32> to vector<4x256xf32>
    %296 = arith.mulf %295, %294 : vector<4x256xf32>
    %297 = arith.addf %291, %296 : vector<4x256xf32>
    %298 = vector.extract_strided_slice %279 {offsets = [3, 0], sizes = [1, 256], strides = [1, 1]} : vector<8x256xf32> to vector<1x256xf32>
    %c28_110 = arith.constant 28 : index
    %c0_111 = arith.constant 0 : index
    %c0_112 = arith.constant 0 : index
    %299 = vector.load %arg4[%c28_110, %c0_111, %c0_112] : memref<72x4x256xf32, #tpu.memory_space<vmem>>, vector<1x4x256xf32>
    %300 = vector.shape_cast %299 : vector<1x4x256xf32> to vector<4x256xf32>
    %301 = vector.broadcast %298 : vector<1x256xf32> to vector<4x256xf32>
    %302 = arith.mulf %301, %300 : vector<4x256xf32>
    %303 = arith.addf %297, %302 : vector<4x256xf32>
    %304 = vector.extract_strided_slice %279 {offsets = [4, 0], sizes = [1, 256], strides = [1, 1]} : vector<8x256xf32> to vector<1x256xf32>
    %c37 = arith.constant 37 : index
    %c0_113 = arith.constant 0 : index
    %c0_114 = arith.constant 0 : index
    %305 = vector.load %arg4[%c37, %c0_113, %c0_114] : memref<72x4x256xf32, #tpu.memory_space<vmem>>, vector<1x4x256xf32>
    %306 = vector.shape_cast %305 : vector<1x4x256xf32> to vector<4x256xf32>
    %307 = vector.broadcast %304 : vector<1x256xf32> to vector<4x256xf32>
    %308 = arith.mulf %307, %306 : vector<4x256xf32>
    %309 = arith.addf %303, %308 : vector<4x256xf32>
    %310 = vector.extract_strided_slice %279 {offsets = [5, 0], sizes = [1, 256], strides = [1, 1]} : vector<8x256xf32> to vector<1x256xf32>
    %c46 = arith.constant 46 : index
    %c0_115 = arith.constant 0 : index
    %c0_116 = arith.constant 0 : index
    %311 = vector.load %arg4[%c46, %c0_115, %c0_116] : memref<72x4x256xf32, #tpu.memory_space<vmem>>, vector<1x4x256xf32>
    %312 = vector.shape_cast %311 : vector<1x4x256xf32> to vector<4x256xf32>
    %313 = vector.broadcast %310 : vector<1x256xf32> to vector<4x256xf32>
    %314 = arith.mulf %313, %312 : vector<4x256xf32>
    %315 = arith.addf %309, %314 : vector<4x256xf32>
    %316 = vector.extract_strided_slice %279 {offsets = [6, 0], sizes = [1, 256], strides = [1, 1]} : vector<8x256xf32> to vector<1x256xf32>
    %c55 = arith.constant 55 : index
    %c0_117 = arith.constant 0 : index
    %c0_118 = arith.constant 0 : index
    %317 = vector.load %arg4[%c55, %c0_117, %c0_118] : memref<72x4x256xf32, #tpu.memory_space<vmem>>, vector<1x4x256xf32>
    %318 = vector.shape_cast %317 : vector<1x4x256xf32> to vector<4x256xf32>
    %319 = vector.broadcast %316 : vector<1x256xf32> to vector<4x256xf32>
    %320 = arith.mulf %319, %318 : vector<4x256xf32>
    %321 = arith.addf %315, %320 : vector<4x256xf32>
    %322 = vector.extract_strided_slice %279 {offsets = [7, 0], sizes = [1, 256], strides = [1, 1]} : vector<8x256xf32> to vector<1x256xf32>
    %c64 = arith.constant 64 : index
    %c0_119 = arith.constant 0 : index
    %c0_120 = arith.constant 0 : index
    %323 = vector.load %arg4[%c64, %c0_119, %c0_120] : memref<72x4x256xf32, #tpu.memory_space<vmem>>, vector<1x4x256xf32>
    %324 = vector.shape_cast %323 : vector<1x4x256xf32> to vector<4x256xf32>
    %325 = vector.broadcast %322 : vector<1x256xf32> to vector<4x256xf32>
    %326 = arith.mulf %325, %324 : vector<4x256xf32>
    %327 = arith.addf %321, %326 : vector<4x256xf32>
    %c15_i32_121 = arith.constant 15 : i32
    %328 = tpu.dynamic_rotate %228 by %c15_i32_121 dim 1 : vector<8x256xf32>, i32 -> vector<8x256xf32>
    %329 = vector.extract_strided_slice %328 {offsets = [0, 0], sizes = [1, 256], strides = [1, 1]} : vector<8x256xf32> to vector<1x256xf32>
    %c2_122 = arith.constant 2 : index
    %c0_123 = arith.constant 0 : index
    %c0_124 = arith.constant 0 : index
    %330 = vector.load %arg4[%c2_122, %c0_123, %c0_124] : memref<72x4x256xf32, #tpu.memory_space<vmem>>, vector<1x4x256xf32>
    %331 = vector.shape_cast %330 : vector<1x4x256xf32> to vector<4x256xf32>
    %332 = vector.broadcast %329 : vector<1x256xf32> to vector<4x256xf32>
    %333 = arith.mulf %332, %331 : vector<4x256xf32>
    %334 = arith.addf %327, %333 : vector<4x256xf32>
    %335 = vector.extract_strided_slice %328 {offsets = [1, 0], sizes = [1, 256], strides = [1, 1]} : vector<8x256xf32> to vector<1x256xf32>
    %c11_125 = arith.constant 11 : index
    %c0_126 = arith.constant 0 : index
    %c0_127 = arith.constant 0 : index
    %336 = vector.load %arg4[%c11_125, %c0_126, %c0_127] : memref<72x4x256xf32, #tpu.memory_space<vmem>>, vector<1x4x256xf32>
    %337 = vector.shape_cast %336 : vector<1x4x256xf32> to vector<4x256xf32>
    %338 = vector.broadcast %335 : vector<1x256xf32> to vector<4x256xf32>
    %339 = arith.mulf %338, %337 : vector<4x256xf32>
    %340 = arith.addf %334, %339 : vector<4x256xf32>
    %341 = vector.extract_strided_slice %328 {offsets = [2, 0], sizes = [1, 256], strides = [1, 1]} : vector<8x256xf32> to vector<1x256xf32>
    %c20_128 = arith.constant 20 : index
    %c0_129 = arith.constant 0 : index
    %c0_130 = arith.constant 0 : index
    %342 = vector.load %arg4[%c20_128, %c0_129, %c0_130] : memref<72x4x256xf32, #tpu.memory_space<vmem>>, vector<1x4x256xf32>
    %343 = vector.shape_cast %342 : vector<1x4x256xf32> to vector<4x256xf32>
    %344 = vector.broadcast %341 : vector<1x256xf32> to vector<4x256xf32>
    %345 = arith.mulf %344, %343 : vector<4x256xf32>
    %346 = arith.addf %340, %345 : vector<4x256xf32>
    %347 = vector.extract_strided_slice %328 {offsets = [3, 0], sizes = [1, 256], strides = [1, 1]} : vector<8x256xf32> to vector<1x256xf32>
    %c29_131 = arith.constant 29 : index
    %c0_132 = arith.constant 0 : index
    %c0_133 = arith.constant 0 : index
    %348 = vector.load %arg4[%c29_131, %c0_132, %c0_133] : memref<72x4x256xf32, #tpu.memory_space<vmem>>, vector<1x4x256xf32>
    %349 = vector.shape_cast %348 : vector<1x4x256xf32> to vector<4x256xf32>
    %350 = vector.broadcast %347 : vector<1x256xf32> to vector<4x256xf32>
    %351 = arith.mulf %350, %349 : vector<4x256xf32>
    %352 = arith.addf %346, %351 : vector<4x256xf32>
    %353 = vector.extract_strided_slice %328 {offsets = [4, 0], sizes = [1, 256], strides = [1, 1]} : vector<8x256xf32> to vector<1x256xf32>
    %c38 = arith.constant 38 : index
    %c0_134 = arith.constant 0 : index
    %c0_135 = arith.constant 0 : index
    %354 = vector.load %arg4[%c38, %c0_134, %c0_135] : memref<72x4x256xf32, #tpu.memory_space<vmem>>, vector<1x4x256xf32>
    %355 = vector.shape_cast %354 : vector<1x4x256xf32> to vector<4x256xf32>
    %356 = vector.broadcast %353 : vector<1x256xf32> to vector<4x256xf32>
    %357 = arith.mulf %356, %355 : vector<4x256xf32>
    %358 = arith.addf %352, %357 : vector<4x256xf32>
    %359 = vector.extract_strided_slice %328 {offsets = [5, 0], sizes = [1, 256], strides = [1, 1]} : vector<8x256xf32> to vector<1x256xf32>
    %c47 = arith.constant 47 : index
    %c0_136 = arith.constant 0 : index
    %c0_137 = arith.constant 0 : index
    %360 = vector.load %arg4[%c47, %c0_136, %c0_137] : memref<72x4x256xf32, #tpu.memory_space<vmem>>, vector<1x4x256xf32>
    %361 = vector.shape_cast %360 : vector<1x4x256xf32> to vector<4x256xf32>
    %362 = vector.broadcast %359 : vector<1x256xf32> to vector<4x256xf32>
    %363 = arith.mulf %362, %361 : vector<4x256xf32>
    %364 = arith.addf %358, %363 : vector<4x256xf32>
    %365 = vector.extract_strided_slice %328 {offsets = [6, 0], sizes = [1, 256], strides = [1, 1]} : vector<8x256xf32> to vector<1x256xf32>
    %c56 = arith.constant 56 : index
    %c0_138 = arith.constant 0 : index
    %c0_139 = arith.constant 0 : index
    %366 = vector.load %arg4[%c56, %c0_138, %c0_139] : memref<72x4x256xf32, #tpu.memory_space<vmem>>, vector<1x4x256xf32>
    %367 = vector.shape_cast %366 : vector<1x4x256xf32> to vector<4x256xf32>
    %368 = vector.broadcast %365 : vector<1x256xf32> to vector<4x256xf32>
    %369 = arith.mulf %368, %367 : vector<4x256xf32>
    %370 = arith.addf %364, %369 : vector<4x256xf32>
    %371 = vector.extract_strided_slice %328 {offsets = [7, 0], sizes = [1, 256], strides = [1, 1]} : vector<8x256xf32> to vector<1x256xf32>
    %c65 = arith.constant 65 : index
    %c0_140 = arith.constant 0 : index
    %c0_141 = arith.constant 0 : index
    %372 = vector.load %arg4[%c65, %c0_140, %c0_141] : memref<72x4x256xf32, #tpu.memory_space<vmem>>, vector<1x4x256xf32>
    %373 = vector.shape_cast %372 : vector<1x4x256xf32> to vector<4x256xf32>
    %374 = vector.broadcast %371 : vector<1x256xf32> to vector<4x256xf32>
    %375 = arith.mulf %374, %373 : vector<4x256xf32>
    %376 = arith.addf %370, %375 : vector<4x256xf32>
    %c1_i32_142 = arith.constant 1 : i32
    %377 = tpu.dynamic_rotate %228 by %c1_i32_142 dim 1 : vector<8x256xf32>, i32 -> vector<8x256xf32>
    %378 = vector.extract_strided_slice %377 {offsets = [0, 0], sizes = [1, 256], strides = [1, 1]} : vector<8x256xf32> to vector<1x256xf32>
    %c3_143 = arith.constant 3 : index
    %c0_144 = arith.constant 0 : index
    %c0_145 = arith.constant 0 : index
    %379 = vector.load %arg4[%c3_143, %c0_144, %c0_145] : memref<72x4x256xf32, #tpu.memory_space<vmem>>, vector<1x4x256xf32>
    %380 = vector.shape_cast %379 : vector<1x4x256xf32> to vector<4x256xf32>
    %381 = vector.broadcast %378 : vector<1x256xf32> to vector<4x256xf32>
    %382 = arith.mulf %381, %380 : vector<4x256xf32>
    %383 = arith.addf %376, %382 : vector<4x256xf32>
    %384 = vector.extract_strided_slice %377 {offsets = [1, 0], sizes = [1, 256], strides = [1, 1]} : vector<8x256xf32> to vector<1x256xf32>
    %c12_146 = arith.constant 12 : index
    %c0_147 = arith.constant 0 : index
    %c0_148 = arith.constant 0 : index
    %385 = vector.load %arg4[%c12_146, %c0_147, %c0_148] : memref<72x4x256xf32, #tpu.memory_space<vmem>>, vector<1x4x256xf32>
    %386 = vector.shape_cast %385 : vector<1x4x256xf32> to vector<4x256xf32>
    %387 = vector.broadcast %384 : vector<1x256xf32> to vector<4x256xf32>
    %388 = arith.mulf %387, %386 : vector<4x256xf32>
    %389 = arith.addf %383, %388 : vector<4x256xf32>
    %390 = vector.extract_strided_slice %377 {offsets = [2, 0], sizes = [1, 256], strides = [1, 1]} : vector<8x256xf32> to vector<1x256xf32>
    %c21_149 = arith.constant 21 : index
    %c0_150 = arith.constant 0 : index
    %c0_151 = arith.constant 0 : index
    %391 = vector.load %arg4[%c21_149, %c0_150, %c0_151] : memref<72x4x256xf32, #tpu.memory_space<vmem>>, vector<1x4x256xf32>
    %392 = vector.shape_cast %391 : vector<1x4x256xf32> to vector<4x256xf32>
    %393 = vector.broadcast %390 : vector<1x256xf32> to vector<4x256xf32>
    %394 = arith.mulf %393, %392 : vector<4x256xf32>
    %395 = arith.addf %389, %394 : vector<4x256xf32>
    %396 = vector.extract_strided_slice %377 {offsets = [3, 0], sizes = [1, 256], strides = [1, 1]} : vector<8x256xf32> to vector<1x256xf32>
    %c30_152 = arith.constant 30 : index
    %c0_153 = arith.constant 0 : index
    %c0_154 = arith.constant 0 : index
    %397 = vector.load %arg4[%c30_152, %c0_153, %c0_154] : memref<72x4x256xf32, #tpu.memory_space<vmem>>, vector<1x4x256xf32>
    %398 = vector.shape_cast %397 : vector<1x4x256xf32> to vector<4x256xf32>
    %399 = vector.broadcast %396 : vector<1x256xf32> to vector<4x256xf32>
    %400 = arith.mulf %399, %398 : vector<4x256xf32>
    %401 = arith.addf %395, %400 : vector<4x256xf32>
    %402 = vector.extract_strided_slice %377 {offsets = [4, 0], sizes = [1, 256], strides = [1, 1]} : vector<8x256xf32> to vector<1x256xf32>
    %c39 = arith.constant 39 : index
    %c0_155 = arith.constant 0 : index
    %c0_156 = arith.constant 0 : index
    %403 = vector.load %arg4[%c39, %c0_155, %c0_156] : memref<72x4x256xf32, #tpu.memory_space<vmem>>, vector<1x4x256xf32>
    %404 = vector.shape_cast %403 : vector<1x4x256xf32> to vector<4x256xf32>
    %405 = vector.broadcast %402 : vector<1x256xf32> to vector<4x256xf32>
    %406 = arith.mulf %405, %404 : vector<4x256xf32>
    %407 = arith.addf %401, %406 : vector<4x256xf32>
    %408 = vector.extract_strided_slice %377 {offsets = [5, 0], sizes = [1, 256], strides = [1, 1]} : vector<8x256xf32> to vector<1x256xf32>
    %c48 = arith.constant 48 : index
    %c0_157 = arith.constant 0 : index
    %c0_158 = arith.constant 0 : index
    %409 = vector.load %arg4[%c48, %c0_157, %c0_158] : memref<72x4x256xf32, #tpu.memory_space<vmem>>, vector<1x4x256xf32>
    %410 = vector.shape_cast %409 : vector<1x4x256xf32> to vector<4x256xf32>
    %411 = vector.broadcast %408 : vector<1x256xf32> to vector<4x256xf32>
    %412 = arith.mulf %411, %410 : vector<4x256xf32>
    %413 = arith.addf %407, %412 : vector<4x256xf32>
    %414 = vector.extract_strided_slice %377 {offsets = [6, 0], sizes = [1, 256], strides = [1, 1]} : vector<8x256xf32> to vector<1x256xf32>
    %c57 = arith.constant 57 : index
    %c0_159 = arith.constant 0 : index
    %c0_160 = arith.constant 0 : index
    %415 = vector.load %arg4[%c57, %c0_159, %c0_160] : memref<72x4x256xf32, #tpu.memory_space<vmem>>, vector<1x4x256xf32>
    %416 = vector.shape_cast %415 : vector<1x4x256xf32> to vector<4x256xf32>
    %417 = vector.broadcast %414 : vector<1x256xf32> to vector<4x256xf32>
    %418 = arith.mulf %417, %416 : vector<4x256xf32>
    %419 = arith.addf %413, %418 : vector<4x256xf32>
    %420 = vector.extract_strided_slice %377 {offsets = [7, 0], sizes = [1, 256], strides = [1, 1]} : vector<8x256xf32> to vector<1x256xf32>
    %c66 = arith.constant 66 : index
    %c0_161 = arith.constant 0 : index
    %c0_162 = arith.constant 0 : index
    %421 = vector.load %arg4[%c66, %c0_161, %c0_162] : memref<72x4x256xf32, #tpu.memory_space<vmem>>, vector<1x4x256xf32>
    %422 = vector.shape_cast %421 : vector<1x4x256xf32> to vector<4x256xf32>
    %423 = vector.broadcast %420 : vector<1x256xf32> to vector<4x256xf32>
    %424 = arith.mulf %423, %422 : vector<4x256xf32>
    %425 = arith.addf %419, %424 : vector<4x256xf32>
    %426 = vector.extract_strided_slice %228 {offsets = [0, 0], sizes = [1, 256], strides = [1, 1]} : vector<8x256xf32> to vector<1x256xf32>
    %c4_163 = arith.constant 4 : index
    %c0_164 = arith.constant 0 : index
    %c0_165 = arith.constant 0 : index
    %427 = vector.load %arg4[%c4_163, %c0_164, %c0_165] : memref<72x4x256xf32, #tpu.memory_space<vmem>>, vector<1x4x256xf32>
    %428 = vector.shape_cast %427 : vector<1x4x256xf32> to vector<4x256xf32>
    %429 = vector.broadcast %426 : vector<1x256xf32> to vector<4x256xf32>
    %430 = arith.mulf %429, %428 : vector<4x256xf32>
    %431 = arith.addf %425, %430 : vector<4x256xf32>
    %432 = vector.extract_strided_slice %228 {offsets = [1, 0], sizes = [1, 256], strides = [1, 1]} : vector<8x256xf32> to vector<1x256xf32>
    %c13_166 = arith.constant 13 : index
    %c0_167 = arith.constant 0 : index
    %c0_168 = arith.constant 0 : index
    %433 = vector.load %arg4[%c13_166, %c0_167, %c0_168] : memref<72x4x256xf32, #tpu.memory_space<vmem>>, vector<1x4x256xf32>
    %434 = vector.shape_cast %433 : vector<1x4x256xf32> to vector<4x256xf32>
    %435 = vector.broadcast %432 : vector<1x256xf32> to vector<4x256xf32>
    %436 = arith.mulf %435, %434 : vector<4x256xf32>
    %437 = arith.addf %431, %436 : vector<4x256xf32>
    %438 = vector.extract_strided_slice %228 {offsets = [2, 0], sizes = [1, 256], strides = [1, 1]} : vector<8x256xf32> to vector<1x256xf32>
    %c22_169 = arith.constant 22 : index
    %c0_170 = arith.constant 0 : index
    %c0_171 = arith.constant 0 : index
    %439 = vector.load %arg4[%c22_169, %c0_170, %c0_171] : memref<72x4x256xf32, #tpu.memory_space<vmem>>, vector<1x4x256xf32>
    %440 = vector.shape_cast %439 : vector<1x4x256xf32> to vector<4x256xf32>
    %441 = vector.broadcast %438 : vector<1x256xf32> to vector<4x256xf32>
    %442 = arith.mulf %441, %440 : vector<4x256xf32>
    %443 = arith.addf %437, %442 : vector<4x256xf32>
    %444 = vector.extract_strided_slice %228 {offsets = [3, 0], sizes = [1, 256], strides = [1, 1]} : vector<8x256xf32> to vector<1x256xf32>
    %c31_172 = arith.constant 31 : index
    %c0_173 = arith.constant 0 : index
    %c0_174 = arith.constant 0 : index
    %445 = vector.load %arg4[%c31_172, %c0_173, %c0_174] : memref<72x4x256xf32, #tpu.memory_space<vmem>>, vector<1x4x256xf32>
    %446 = vector.shape_cast %445 : vector<1x4x256xf32> to vector<4x256xf32>
    %447 = vector.broadcast %444 : vector<1x256xf32> to vector<4x256xf32>
    %448 = arith.mulf %447, %446 : vector<4x256xf32>
    %449 = arith.addf %443, %448 : vector<4x256xf32>
    %450 = vector.extract_strided_slice %228 {offsets = [4, 0], sizes = [1, 256], strides = [1, 1]} : vector<8x256xf32> to vector<1x256xf32>
    %c40 = arith.constant 40 : index
    %c0_175 = arith.constant 0 : index
    %c0_176 = arith.constant 0 : index
    %451 = vector.load %arg4[%c40, %c0_175, %c0_176] : memref<72x4x256xf32, #tpu.memory_space<vmem>>, vector<1x4x256xf32>
    %452 = vector.shape_cast %451 : vector<1x4x256xf32> to vector<4x256xf32>
    %453 = vector.broadcast %450 : vector<1x256xf32> to vector<4x256xf32>
    %454 = arith.mulf %453, %452 : vector<4x256xf32>
    %455 = arith.addf %449, %454 : vector<4x256xf32>
    %456 = vector.extract_strided_slice %228 {offsets = [5, 0], sizes = [1, 256], strides = [1, 1]} : vector<8x256xf32> to vector<1x256xf32>
    %c49 = arith.constant 49 : index
    %c0_177 = arith.constant 0 : index
    %c0_178 = arith.constant 0 : index
    %457 = vector.load %arg4[%c49, %c0_177, %c0_178] : memref<72x4x256xf32, #tpu.memory_space<vmem>>, vector<1x4x256xf32>
    %458 = vector.shape_cast %457 : vector<1x4x256xf32> to vector<4x256xf32>
    %459 = vector.broadcast %456 : vector<1x256xf32> to vector<4x256xf32>
    %460 = arith.mulf %459, %458 : vector<4x256xf32>
    %461 = arith.addf %455, %460 : vector<4x256xf32>
    %462 = vector.extract_strided_slice %228 {offsets = [6, 0], sizes = [1, 256], strides = [1, 1]} : vector<8x256xf32> to vector<1x256xf32>
    %c58 = arith.constant 58 : index
    %c0_179 = arith.constant 0 : index
    %c0_180 = arith.constant 0 : index
    %463 = vector.load %arg4[%c58, %c0_179, %c0_180] : memref<72x4x256xf32, #tpu.memory_space<vmem>>, vector<1x4x256xf32>
    %464 = vector.shape_cast %463 : vector<1x4x256xf32> to vector<4x256xf32>
    %465 = vector.broadcast %462 : vector<1x256xf32> to vector<4x256xf32>
    %466 = arith.mulf %465, %464 : vector<4x256xf32>
    %467 = arith.addf %461, %466 : vector<4x256xf32>
    %468 = vector.extract_strided_slice %228 {offsets = [7, 0], sizes = [1, 256], strides = [1, 1]} : vector<8x256xf32> to vector<1x256xf32>
    %c67 = arith.constant 67 : index
    %c0_181 = arith.constant 0 : index
    %c0_182 = arith.constant 0 : index
    %469 = vector.load %arg4[%c67, %c0_181, %c0_182] : memref<72x4x256xf32, #tpu.memory_space<vmem>>, vector<1x4x256xf32>
    %470 = vector.shape_cast %469 : vector<1x4x256xf32> to vector<4x256xf32>
    %471 = vector.broadcast %468 : vector<1x256xf32> to vector<4x256xf32>
    %472 = arith.mulf %471, %470 : vector<4x256xf32>
    %473 = arith.addf %467, %472 : vector<4x256xf32>
    %c255_i32_183 = arith.constant 255 : i32
    %474 = tpu.dynamic_rotate %228 by %c255_i32_183 dim 1 : vector<8x256xf32>, i32 -> vector<8x256xf32>
    %475 = vector.extract_strided_slice %474 {offsets = [0, 0], sizes = [1, 256], strides = [1, 1]} : vector<8x256xf32> to vector<1x256xf32>
    %c5_184 = arith.constant 5 : index
    %c0_185 = arith.constant 0 : index
    %c0_186 = arith.constant 0 : index
    %476 = vector.load %arg4[%c5_184, %c0_185, %c0_186] : memref<72x4x256xf32, #tpu.memory_space<vmem>>, vector<1x4x256xf32>
    %477 = vector.shape_cast %476 : vector<1x4x256xf32> to vector<4x256xf32>
    %478 = vector.broadcast %475 : vector<1x256xf32> to vector<4x256xf32>
    %479 = arith.mulf %478, %477 : vector<4x256xf32>
    %480 = arith.addf %473, %479 : vector<4x256xf32>
    %481 = vector.extract_strided_slice %474 {offsets = [1, 0], sizes = [1, 256], strides = [1, 1]} : vector<8x256xf32> to vector<1x256xf32>
    %c14_187 = arith.constant 14 : index
    %c0_188 = arith.constant 0 : index
    %c0_189 = arith.constant 0 : index
    %482 = vector.load %arg4[%c14_187, %c0_188, %c0_189] : memref<72x4x256xf32, #tpu.memory_space<vmem>>, vector<1x4x256xf32>
    %483 = vector.shape_cast %482 : vector<1x4x256xf32> to vector<4x256xf32>
    %484 = vector.broadcast %481 : vector<1x256xf32> to vector<4x256xf32>
    %485 = arith.mulf %484, %483 : vector<4x256xf32>
    %486 = arith.addf %480, %485 : vector<4x256xf32>
    %487 = vector.extract_strided_slice %474 {offsets = [2, 0], sizes = [1, 256], strides = [1, 1]} : vector<8x256xf32> to vector<1x256xf32>
    %c23_190 = arith.constant 23 : index
    %c0_191 = arith.constant 0 : index
    %c0_192 = arith.constant 0 : index
    %488 = vector.load %arg4[%c23_190, %c0_191, %c0_192] : memref<72x4x256xf32, #tpu.memory_space<vmem>>, vector<1x4x256xf32>
    %489 = vector.shape_cast %488 : vector<1x4x256xf32> to vector<4x256xf32>
    %490 = vector.broadcast %487 : vector<1x256xf32> to vector<4x256xf32>
    %491 = arith.mulf %490, %489 : vector<4x256xf32>
    %492 = arith.addf %486, %491 : vector<4x256xf32>
    %493 = vector.extract_strided_slice %474 {offsets = [3, 0], sizes = [1, 256], strides = [1, 1]} : vector<8x256xf32> to vector<1x256xf32>
    %c32_193 = arith.constant 32 : index
    %c0_194 = arith.constant 0 : index
    %c0_195 = arith.constant 0 : index
    %494 = vector.load %arg4[%c32_193, %c0_194, %c0_195] : memref<72x4x256xf32, #tpu.memory_space<vmem>>, vector<1x4x256xf32>
    %495 = vector.shape_cast %494 : vector<1x4x256xf32> to vector<4x256xf32>
    %496 = vector.broadcast %493 : vector<1x256xf32> to vector<4x256xf32>
    %497 = arith.mulf %496, %495 : vector<4x256xf32>
    %498 = arith.addf %492, %497 : vector<4x256xf32>
    %499 = vector.extract_strided_slice %474 {offsets = [4, 0], sizes = [1, 256], strides = [1, 1]} : vector<8x256xf32> to vector<1x256xf32>
    %c41 = arith.constant 41 : index
    %c0_196 = arith.constant 0 : index
    %c0_197 = arith.constant 0 : index
    %500 = vector.load %arg4[%c41, %c0_196, %c0_197] : memref<72x4x256xf32, #tpu.memory_space<vmem>>, vector<1x4x256xf32>
    %501 = vector.shape_cast %500 : vector<1x4x256xf32> to vector<4x256xf32>
    %502 = vector.broadcast %499 : vector<1x256xf32> to vector<4x256xf32>
    %503 = arith.mulf %502, %501 : vector<4x256xf32>
    %504 = arith.addf %498, %503 : vector<4x256xf32>
    %505 = vector.extract_strided_slice %474 {offsets = [5, 0], sizes = [1, 256], strides = [1, 1]} : vector<8x256xf32> to vector<1x256xf32>
    %c50 = arith.constant 50 : index
    %c0_198 = arith.constant 0 : index
    %c0_199 = arith.constant 0 : index
    %506 = vector.load %arg4[%c50, %c0_198, %c0_199] : memref<72x4x256xf32, #tpu.memory_space<vmem>>, vector<1x4x256xf32>
    %507 = vector.shape_cast %506 : vector<1x4x256xf32> to vector<4x256xf32>
    %508 = vector.broadcast %505 : vector<1x256xf32> to vector<4x256xf32>
    %509 = arith.mulf %508, %507 : vector<4x256xf32>
    %510 = arith.addf %504, %509 : vector<4x256xf32>
    %511 = vector.extract_strided_slice %474 {offsets = [6, 0], sizes = [1, 256], strides = [1, 1]} : vector<8x256xf32> to vector<1x256xf32>
    %c59 = arith.constant 59 : index
    %c0_200 = arith.constant 0 : index
    %c0_201 = arith.constant 0 : index
    %512 = vector.load %arg4[%c59, %c0_200, %c0_201] : memref<72x4x256xf32, #tpu.memory_space<vmem>>, vector<1x4x256xf32>
    %513 = vector.shape_cast %512 : vector<1x4x256xf32> to vector<4x256xf32>
    %514 = vector.broadcast %511 : vector<1x256xf32> to vector<4x256xf32>
    %515 = arith.mulf %514, %513 : vector<4x256xf32>
    %516 = arith.addf %510, %515 : vector<4x256xf32>
    %517 = vector.extract_strided_slice %474 {offsets = [7, 0], sizes = [1, 256], strides = [1, 1]} : vector<8x256xf32> to vector<1x256xf32>
    %c68 = arith.constant 68 : index
    %c0_202 = arith.constant 0 : index
    %c0_203 = arith.constant 0 : index
    %518 = vector.load %arg4[%c68, %c0_202, %c0_203] : memref<72x4x256xf32, #tpu.memory_space<vmem>>, vector<1x4x256xf32>
    %519 = vector.shape_cast %518 : vector<1x4x256xf32> to vector<4x256xf32>
    %520 = vector.broadcast %517 : vector<1x256xf32> to vector<4x256xf32>
    %521 = arith.mulf %520, %519 : vector<4x256xf32>
    %522 = arith.addf %516, %521 : vector<4x256xf32>
    %c241_i32_204 = arith.constant 241 : i32
    %523 = tpu.dynamic_rotate %228 by %c241_i32_204 dim 1 : vector<8x256xf32>, i32 -> vector<8x256xf32>
    %524 = vector.extract_strided_slice %523 {offsets = [0, 0], sizes = [1, 256], strides = [1, 1]} : vector<8x256xf32> to vector<1x256xf32>
    %c6_205 = arith.constant 6 : index
    %c0_206 = arith.constant 0 : index
    %c0_207 = arith.constant 0 : index
    %525 = vector.load %arg4[%c6_205, %c0_206, %c0_207] : memref<72x4x256xf32, #tpu.memory_space<vmem>>, vector<1x4x256xf32>
    %526 = vector.shape_cast %525 : vector<1x4x256xf32> to vector<4x256xf32>
    %527 = vector.broadcast %524 : vector<1x256xf32> to vector<4x256xf32>
    %528 = arith.mulf %527, %526 : vector<4x256xf32>
    %529 = arith.addf %522, %528 : vector<4x256xf32>
    %530 = vector.extract_strided_slice %523 {offsets = [1, 0], sizes = [1, 256], strides = [1, 1]} : vector<8x256xf32> to vector<1x256xf32>
    %c15_208 = arith.constant 15 : index
    %c0_209 = arith.constant 0 : index
    %c0_210 = arith.constant 0 : index
    %531 = vector.load %arg4[%c15_208, %c0_209, %c0_210] : memref<72x4x256xf32, #tpu.memory_space<vmem>>, vector<1x4x256xf32>
    %532 = vector.shape_cast %531 : vector<1x4x256xf32> to vector<4x256xf32>
    %533 = vector.broadcast %530 : vector<1x256xf32> to vector<4x256xf32>
    %534 = arith.mulf %533, %532 : vector<4x256xf32>
    %535 = arith.addf %529, %534 : vector<4x256xf32>
    %536 = vector.extract_strided_slice %523 {offsets = [2, 0], sizes = [1, 256], strides = [1, 1]} : vector<8x256xf32> to vector<1x256xf32>
    %c24_211 = arith.constant 24 : index
    %c0_212 = arith.constant 0 : index
    %c0_213 = arith.constant 0 : index
    %537 = vector.load %arg4[%c24_211, %c0_212, %c0_213] : memref<72x4x256xf32, #tpu.memory_space<vmem>>, vector<1x4x256xf32>
    %538 = vector.shape_cast %537 : vector<1x4x256xf32> to vector<4x256xf32>
    %539 = vector.broadcast %536 : vector<1x256xf32> to vector<4x256xf32>
    %540 = arith.mulf %539, %538 : vector<4x256xf32>
    %541 = arith.addf %535, %540 : vector<4x256xf32>
    %542 = vector.extract_strided_slice %523 {offsets = [3, 0], sizes = [1, 256], strides = [1, 1]} : vector<8x256xf32> to vector<1x256xf32>
    %c33_214 = arith.constant 33 : index
    %c0_215 = arith.constant 0 : index
    %c0_216 = arith.constant 0 : index
    %543 = vector.load %arg4[%c33_214, %c0_215, %c0_216] : memref<72x4x256xf32, #tpu.memory_space<vmem>>, vector<1x4x256xf32>
    %544 = vector.shape_cast %543 : vector<1x4x256xf32> to vector<4x256xf32>
    %545 = vector.broadcast %542 : vector<1x256xf32> to vector<4x256xf32>
    %546 = arith.mulf %545, %544 : vector<4x256xf32>
    %547 = arith.addf %541, %546 : vector<4x256xf32>
    %548 = vector.extract_strided_slice %523 {offsets = [4, 0], sizes = [1, 256], strides = [1, 1]} : vector<8x256xf32> to vector<1x256xf32>
    %c42 = arith.constant 42 : index
    %c0_217 = arith.constant 0 : index
    %c0_218 = arith.constant 0 : index
    %549 = vector.load %arg4[%c42, %c0_217, %c0_218] : memref<72x4x256xf32, #tpu.memory_space<vmem>>, vector<1x4x256xf32>
    %550 = vector.shape_cast %549 : vector<1x4x256xf32> to vector<4x256xf32>
    %551 = vector.broadcast %548 : vector<1x256xf32> to vector<4x256xf32>
    %552 = arith.mulf %551, %550 : vector<4x256xf32>
    %553 = arith.addf %547, %552 : vector<4x256xf32>
    %554 = vector.extract_strided_slice %523 {offsets = [5, 0], sizes = [1, 256], strides = [1, 1]} : vector<8x256xf32> to vector<1x256xf32>
    %c51 = arith.constant 51 : index
    %c0_219 = arith.constant 0 : index
    %c0_220 = arith.constant 0 : index
    %555 = vector.load %arg4[%c51, %c0_219, %c0_220] : memref<72x4x256xf32, #tpu.memory_space<vmem>>, vector<1x4x256xf32>
    %556 = vector.shape_cast %555 : vector<1x4x256xf32> to vector<4x256xf32>
    %557 = vector.broadcast %554 : vector<1x256xf32> to vector<4x256xf32>
    %558 = arith.mulf %557, %556 : vector<4x256xf32>
    %559 = arith.addf %553, %558 : vector<4x256xf32>
    %560 = vector.extract_strided_slice %523 {offsets = [6, 0], sizes = [1, 256], strides = [1, 1]} : vector<8x256xf32> to vector<1x256xf32>
    %c60 = arith.constant 60 : index
    %c0_221 = arith.constant 0 : index
    %c0_222 = arith.constant 0 : index
    %561 = vector.load %arg4[%c60, %c0_221, %c0_222] : memref<72x4x256xf32, #tpu.memory_space<vmem>>, vector<1x4x256xf32>
    %562 = vector.shape_cast %561 : vector<1x4x256xf32> to vector<4x256xf32>
    %563 = vector.broadcast %560 : vector<1x256xf32> to vector<4x256xf32>
    %564 = arith.mulf %563, %562 : vector<4x256xf32>
    %565 = arith.addf %559, %564 : vector<4x256xf32>
    %566 = vector.extract_strided_slice %523 {offsets = [7, 0], sizes = [1, 256], strides = [1, 1]} : vector<8x256xf32> to vector<1x256xf32>
    %c69 = arith.constant 69 : index
    %c0_223 = arith.constant 0 : index
    %c0_224 = arith.constant 0 : index
    %567 = vector.load %arg4[%c69, %c0_223, %c0_224] : memref<72x4x256xf32, #tpu.memory_space<vmem>>, vector<1x4x256xf32>
    %568 = vector.shape_cast %567 : vector<1x4x256xf32> to vector<4x256xf32>
    %569 = vector.broadcast %566 : vector<1x256xf32> to vector<4x256xf32>
    %570 = arith.mulf %569, %568 : vector<4x256xf32>
    %571 = arith.addf %565, %570 : vector<4x256xf32>
    %c240_i32_225 = arith.constant 240 : i32
    %572 = tpu.dynamic_rotate %228 by %c240_i32_225 dim 1 : vector<8x256xf32>, i32 -> vector<8x256xf32>
    %573 = vector.extract_strided_slice %572 {offsets = [0, 0], sizes = [1, 256], strides = [1, 1]} : vector<8x256xf32> to vector<1x256xf32>
    %c7_226 = arith.constant 7 : index
    %c0_227 = arith.constant 0 : index
    %c0_228 = arith.constant 0 : index
    %574 = vector.load %arg4[%c7_226, %c0_227, %c0_228] : memref<72x4x256xf32, #tpu.memory_space<vmem>>, vector<1x4x256xf32>
    %575 = vector.shape_cast %574 : vector<1x4x256xf32> to vector<4x256xf32>
    %576 = vector.broadcast %573 : vector<1x256xf32> to vector<4x256xf32>
    %577 = arith.mulf %576, %575 : vector<4x256xf32>
    %578 = arith.addf %571, %577 : vector<4x256xf32>
    %579 = vector.extract_strided_slice %572 {offsets = [1, 0], sizes = [1, 256], strides = [1, 1]} : vector<8x256xf32> to vector<1x256xf32>
    %c16_229 = arith.constant 16 : index
    %c0_230 = arith.constant 0 : index
    %c0_231 = arith.constant 0 : index
    %580 = vector.load %arg4[%c16_229, %c0_230, %c0_231] : memref<72x4x256xf32, #tpu.memory_space<vmem>>, vector<1x4x256xf32>
    %581 = vector.shape_cast %580 : vector<1x4x256xf32> to vector<4x256xf32>
    %582 = vector.broadcast %579 : vector<1x256xf32> to vector<4x256xf32>
    %583 = arith.mulf %582, %581 : vector<4x256xf32>
    %584 = arith.addf %578, %583 : vector<4x256xf32>
    %585 = vector.extract_strided_slice %572 {offsets = [2, 0], sizes = [1, 256], strides = [1, 1]} : vector<8x256xf32> to vector<1x256xf32>
    %c25_232 = arith.constant 25 : index
    %c0_233 = arith.constant 0 : index
    %c0_234 = arith.constant 0 : index
    %586 = vector.load %arg4[%c25_232, %c0_233, %c0_234] : memref<72x4x256xf32, #tpu.memory_space<vmem>>, vector<1x4x256xf32>
    %587 = vector.shape_cast %586 : vector<1x4x256xf32> to vector<4x256xf32>
    %588 = vector.broadcast %585 : vector<1x256xf32> to vector<4x256xf32>
    %589 = arith.mulf %588, %587 : vector<4x256xf32>
    %590 = arith.addf %584, %589 : vector<4x256xf32>
    %591 = vector.extract_strided_slice %572 {offsets = [3, 0], sizes = [1, 256], strides = [1, 1]} : vector<8x256xf32> to vector<1x256xf32>
    %c34_235 = arith.constant 34 : index
    %c0_236 = arith.constant 0 : index
    %c0_237 = arith.constant 0 : index
    %592 = vector.load %arg4[%c34_235, %c0_236, %c0_237] : memref<72x4x256xf32, #tpu.memory_space<vmem>>, vector<1x4x256xf32>
    %593 = vector.shape_cast %592 : vector<1x4x256xf32> to vector<4x256xf32>
    %594 = vector.broadcast %591 : vector<1x256xf32> to vector<4x256xf32>
    %595 = arith.mulf %594, %593 : vector<4x256xf32>
    %596 = arith.addf %590, %595 : vector<4x256xf32>
    %597 = vector.extract_strided_slice %572 {offsets = [4, 0], sizes = [1, 256], strides = [1, 1]} : vector<8x256xf32> to vector<1x256xf32>
    %c43 = arith.constant 43 : index
    %c0_238 = arith.constant 0 : index
    %c0_239 = arith.constant 0 : index
    %598 = vector.load %arg4[%c43, %c0_238, %c0_239] : memref<72x4x256xf32, #tpu.memory_space<vmem>>, vector<1x4x256xf32>
    %599 = vector.shape_cast %598 : vector<1x4x256xf32> to vector<4x256xf32>
    %600 = vector.broadcast %597 : vector<1x256xf32> to vector<4x256xf32>
    %601 = arith.mulf %600, %599 : vector<4x256xf32>
    %602 = arith.addf %596, %601 : vector<4x256xf32>
    %603 = vector.extract_strided_slice %572 {offsets = [5, 0], sizes = [1, 256], strides = [1, 1]} : vector<8x256xf32> to vector<1x256xf32>
    %c52 = arith.constant 52 : index
    %c0_240 = arith.constant 0 : index
    %c0_241 = arith.constant 0 : index
    %604 = vector.load %arg4[%c52, %c0_240, %c0_241] : memref<72x4x256xf32, #tpu.memory_space<vmem>>, vector<1x4x256xf32>
    %605 = vector.shape_cast %604 : vector<1x4x256xf32> to vector<4x256xf32>
    %606 = vector.broadcast %603 : vector<1x256xf32> to vector<4x256xf32>
    %607 = arith.mulf %606, %605 : vector<4x256xf32>
    %608 = arith.addf %602, %607 : vector<4x256xf32>
    %609 = vector.extract_strided_slice %572 {offsets = [6, 0], sizes = [1, 256], strides = [1, 1]} : vector<8x256xf32> to vector<1x256xf32>
    %c61 = arith.constant 61 : index
    %c0_242 = arith.constant 0 : index
    %c0_243 = arith.constant 0 : index
    %610 = vector.load %arg4[%c61, %c0_242, %c0_243] : memref<72x4x256xf32, #tpu.memory_space<vmem>>, vector<1x4x256xf32>
    %611 = vector.shape_cast %610 : vector<1x4x256xf32> to vector<4x256xf32>
    %612 = vector.broadcast %609 : vector<1x256xf32> to vector<4x256xf32>
    %613 = arith.mulf %612, %611 : vector<4x256xf32>
    %614 = arith.addf %608, %613 : vector<4x256xf32>
    %615 = vector.extract_strided_slice %572 {offsets = [7, 0], sizes = [1, 256], strides = [1, 1]} : vector<8x256xf32> to vector<1x256xf32>
    %c70 = arith.constant 70 : index
    %c0_244 = arith.constant 0 : index
    %c0_245 = arith.constant 0 : index
    %616 = vector.load %arg4[%c70, %c0_244, %c0_245] : memref<72x4x256xf32, #tpu.memory_space<vmem>>, vector<1x4x256xf32>
    %617 = vector.shape_cast %616 : vector<1x4x256xf32> to vector<4x256xf32>
    %618 = vector.broadcast %615 : vector<1x256xf32> to vector<4x256xf32>
    %619 = arith.mulf %618, %617 : vector<4x256xf32>
    %620 = arith.addf %614, %619 : vector<4x256xf32>
    %c239_i32_246 = arith.constant 239 : i32
    %621 = tpu.dynamic_rotate %228 by %c239_i32_246 dim 1 : vector<8x256xf32>, i32 -> vector<8x256xf32>
    %622 = vector.extract_strided_slice %621 {offsets = [0, 0], sizes = [1, 256], strides = [1, 1]} : vector<8x256xf32> to vector<1x256xf32>
    %c8_247 = arith.constant 8 : index
    %c0_248 = arith.constant 0 : index
    %c0_249 = arith.constant 0 : index
    %623 = vector.load %arg4[%c8_247, %c0_248, %c0_249] : memref<72x4x256xf32, #tpu.memory_space<vmem>>, vector<1x4x256xf32>
    %624 = vector.shape_cast %623 : vector<1x4x256xf32> to vector<4x256xf32>
    %625 = vector.broadcast %622 : vector<1x256xf32> to vector<4x256xf32>
    %626 = arith.mulf %625, %624 : vector<4x256xf32>
    %627 = arith.addf %620, %626 : vector<4x256xf32>
    %628 = vector.extract_strided_slice %621 {offsets = [1, 0], sizes = [1, 256], strides = [1, 1]} : vector<8x256xf32> to vector<1x256xf32>
    %c17_250 = arith.constant 17 : index
    %c0_251 = arith.constant 0 : index
    %c0_252 = arith.constant 0 : index
    %629 = vector.load %arg4[%c17_250, %c0_251, %c0_252] : memref<72x4x256xf32, #tpu.memory_space<vmem>>, vector<1x4x256xf32>
    %630 = vector.shape_cast %629 : vector<1x4x256xf32> to vector<4x256xf32>
    %631 = vector.broadcast %628 : vector<1x256xf32> to vector<4x256xf32>
    %632 = arith.mulf %631, %630 : vector<4x256xf32>
    %633 = arith.addf %627, %632 : vector<4x256xf32>
    %634 = vector.extract_strided_slice %621 {offsets = [2, 0], sizes = [1, 256], strides = [1, 1]} : vector<8x256xf32> to vector<1x256xf32>
    %c26_253 = arith.constant 26 : index
    %c0_254 = arith.constant 0 : index
    %c0_255 = arith.constant 0 : index
    %635 = vector.load %arg4[%c26_253, %c0_254, %c0_255] : memref<72x4x256xf32, #tpu.memory_space<vmem>>, vector<1x4x256xf32>
    %636 = vector.shape_cast %635 : vector<1x4x256xf32> to vector<4x256xf32>
    %637 = vector.broadcast %634 : vector<1x256xf32> to vector<4x256xf32>
    %638 = arith.mulf %637, %636 : vector<4x256xf32>
    %639 = arith.addf %633, %638 : vector<4x256xf32>
    %640 = vector.extract_strided_slice %621 {offsets = [3, 0], sizes = [1, 256], strides = [1, 1]} : vector<8x256xf32> to vector<1x256xf32>
    %c35_256 = arith.constant 35 : index
    %c0_257 = arith.constant 0 : index
    %c0_258 = arith.constant 0 : index
    %641 = vector.load %arg4[%c35_256, %c0_257, %c0_258] : memref<72x4x256xf32, #tpu.memory_space<vmem>>, vector<1x4x256xf32>
    %642 = vector.shape_cast %641 : vector<1x4x256xf32> to vector<4x256xf32>
    %643 = vector.broadcast %640 : vector<1x256xf32> to vector<4x256xf32>
    %644 = arith.mulf %643, %642 : vector<4x256xf32>
    %645 = arith.addf %639, %644 : vector<4x256xf32>
    %646 = vector.extract_strided_slice %621 {offsets = [4, 0], sizes = [1, 256], strides = [1, 1]} : vector<8x256xf32> to vector<1x256xf32>
    %c44 = arith.constant 44 : index
    %c0_259 = arith.constant 0 : index
    %c0_260 = arith.constant 0 : index
    %647 = vector.load %arg4[%c44, %c0_259, %c0_260] : memref<72x4x256xf32, #tpu.memory_space<vmem>>, vector<1x4x256xf32>
    %648 = vector.shape_cast %647 : vector<1x4x256xf32> to vector<4x256xf32>
    %649 = vector.broadcast %646 : vector<1x256xf32> to vector<4x256xf32>
    %650 = arith.mulf %649, %648 : vector<4x256xf32>
    %651 = arith.addf %645, %650 : vector<4x256xf32>
    %652 = vector.extract_strided_slice %621 {offsets = [5, 0], sizes = [1, 256], strides = [1, 1]} : vector<8x256xf32> to vector<1x256xf32>
    %c53 = arith.constant 53 : index
    %c0_261 = arith.constant 0 : index
    %c0_262 = arith.constant 0 : index
    %653 = vector.load %arg4[%c53, %c0_261, %c0_262] : memref<72x4x256xf32, #tpu.memory_space<vmem>>, vector<1x4x256xf32>
    %654 = vector.shape_cast %653 : vector<1x4x256xf32> to vector<4x256xf32>
    %655 = vector.broadcast %652 : vector<1x256xf32> to vector<4x256xf32>
    %656 = arith.mulf %655, %654 : vector<4x256xf32>
    %657 = arith.addf %651, %656 : vector<4x256xf32>
    %658 = vector.extract_strided_slice %621 {offsets = [6, 0], sizes = [1, 256], strides = [1, 1]} : vector<8x256xf32> to vector<1x256xf32>
    %c62 = arith.constant 62 : index
    %c0_263 = arith.constant 0 : index
    %c0_264 = arith.constant 0 : index
    %659 = vector.load %arg4[%c62, %c0_263, %c0_264] : memref<72x4x256xf32, #tpu.memory_space<vmem>>, vector<1x4x256xf32>
    %660 = vector.shape_cast %659 : vector<1x4x256xf32> to vector<4x256xf32>
    %661 = vector.broadcast %658 : vector<1x256xf32> to vector<4x256xf32>
    %662 = arith.mulf %661, %660 : vector<4x256xf32>
    %663 = arith.addf %657, %662 : vector<4x256xf32>
    %664 = vector.extract_strided_slice %621 {offsets = [7, 0], sizes = [1, 256], strides = [1, 1]} : vector<8x256xf32> to vector<1x256xf32>
    %c71 = arith.constant 71 : index
    %c0_265 = arith.constant 0 : index
    %c0_266 = arith.constant 0 : index
    %665 = vector.load %arg4[%c71, %c0_265, %c0_266] : memref<72x4x256xf32, #tpu.memory_space<vmem>>, vector<1x4x256xf32>
    %666 = vector.shape_cast %665 : vector<1x4x256xf32> to vector<4x256xf32>
    %667 = vector.broadcast %664 : vector<1x256xf32> to vector<4x256xf32>
    %668 = arith.mulf %667, %666 : vector<4x256xf32>
    %669 = arith.addf %663, %668 : vector<4x256xf32>
    %cst_267 = arith.constant 0.000000e+00 : f32
    %670 = vector.broadcast %cst_267 : f32 to vector<4x256xf32>
    %671 = arith.maximumf %669, %670 : vector<4x256xf32>
    %c0_268 = arith.constant 0 : index
    %c0_269 = arith.constant 0 : index
    %672 = vector.load %arg6[%c0_268, %c0_269] : memref<256x256xf32, #tpu.memory_space<vmem>>, vector<256x256xf32>
    %cst_270 = arith.constant dense<0.000000e+00> : vector<4x256xf32>
    %673 = tpu.matmul %671, %672, %cst_270 {dimension_numbers = #tpu.dot_dimension_numbers<[1], [0], [0], [1], [0, 0, 1, 1], [], []>} : vector<4x256xf32>, vector<256x256xf32>, vector<4x256xf32> -> vector<4x256xf32>
    %c0_271 = arith.constant 0 : index
    %c0_272 = arith.constant 0 : index
    %674 = vector.load %arg7[%c0_271, %c0_272] : memref<1x256xf32, #tpu.memory_space<vmem>>, vector<1x256xf32>
    %675 = vector.broadcast %674 : vector<1x256xf32> to vector<4x256xf32>
    %676 = arith.addf %673, %675 : vector<4x256xf32>
    %c0_273 = arith.constant 0 : index
    %c0_274 = arith.constant 0 : index
    %c0_275 = arith.constant 0 : index
    %677 = vector.load %arg8[%c0_273, %c0_274, %c0_275] : memref<1x4x256xf32, #tpu.memory_space<vmem>>, vector<1x4x256xf32>
    %678 = vector.shape_cast %677 : vector<1x4x256xf32> to vector<4x256xf32>
    %679 = vector.shape_cast %676 : vector<4x256xf32> to vector<1x4x256xf32>
    tpu.vector_store %arg8[%c0_273, %c0_274, %c0_275], %679 {strides = array<i32>} : memref<1x4x256xf32, #tpu.memory_space<vmem>>, vector<1x4x256xf32>,
    return
  }
  func.func @transform_0(%arg0: i32) -> (i32, i32, i32) {
    %c0_i32 = arith.constant 0 : i32
    %c0_i32_0 = arith.constant 0 : i32
    %c0_i32_1 = arith.constant 0 : i32
    return %arg0, %c0_i32, %c0_i32_0 : i32, i32, i32
  }
  func.func @transform_1(%arg0: i32) -> (i32, i32, i32) {
    %c0_i32 = arith.constant 0 : i32
    %c0_i32_0 = arith.constant 0 : i32
    %c0_i32_1 = arith.constant 0 : i32
    %c0_i32_2 = arith.constant 0 : i32
    return %c0_i32, %c0_i32_0, %c0_i32_1 : i32, i32, i32
  }
  func.func @transform_2(%arg0: i32) -> (i32, i32) {
    %c0_i32 = arith.constant 0 : i32
    %c0_i32_0 = arith.constant 0 : i32
    %c0_i32_1 = arith.constant 0 : i32
    return %c0_i32, %c0_i32_0 : i32, i32
  }
  func.func @transform_3(%arg0: i32) -> (i32, i32, i32) {
    %c0_i32 = arith.constant 0 : i32
    %c0_i32_0 = arith.constant 0 : i32
    %c0_i32_1 = arith.constant 0 : i32
    %c0_i32_2 = arith.constant 0 : i32
    return %c0_i32, %c0_i32_0, %c0_i32_1 : i32, i32, i32
  }
  func.func @transform_4(%arg0: i32) -> (i32, i32) {
    %c0_i32 = arith.constant 0 : i32
    %c0_i32_0 = arith.constant 0 : i32
    %c0_i32_1 = arith.constant 0 : i32
    return %c0_i32, %c0_i32_0 : i32, i32
  }
  func.func @transform_5(%arg0: i32) -> (i32, i32) {
    %c0_i32 = arith.constant 0 : i32
    %c0_i32_0 = arith.constant 0 : i32
    %c0_i32_1 = arith.constant 0 : i32
    return %c0_i32, %c0_i32_0 : i32, i32
  }
  func.func @transform_6(%arg0: i32) -> (i32, i32) {
    %c0_i32 = arith.constant 0 : i32
    %c0_i32_0 = arith.constant 0 : i32
    %c0_i32_1 = arith.constant 0 : i32
    return %c0_i32, %c0_i32_0 : i32, i32
  }
  func.func @transform_7(%arg0: i32) -> (i32, i32, i32) {
    %c0_i32 = arith.constant 0 : i32
    %c0_i32_0 = arith.constant 0 : i32
    %c0_i32_1 = arith.constant 0 : i32
    return %arg0, %c0_i32, %c0_i32_0 : i32, i32, i32
  }
}

</mosaic_0001>

<llo_original>
// kernel: abc_net_forward.1
$region0: #{abc_net_forward.1}
  #allocation0 [shape = 'u32[]', space=smem, size = 0x4, offset = 0x4, fixed_abs, tag = 'smem constant byte address 0x4 - core index']
  #allocation1 [shape = 'u32[144,128]{1,0:T(1,128)}', space=vmem, size = 0x12000, scoped, tag = 'internal scratch']
  %s0 = inlined_call_operand.vmem [shape: f32[2,4,256], index: 0, kind: input, shape index: {}]
  %s1 = inlined_call_operand.hbm [shape: f32[36,8,256], index: 1, kind: input, shape index: {}]
  %s2 = inlined_call_operand.vmem [shape: f32[8,256], index: 2, kind: input, shape index: {}]
  %s3 = inlined_call_operand.hbm [shape: f32[72,4,256], index: 3, kind: input, shape index: {}]
  %s4 = inlined_call_operand.vmem [shape: f32[4,256], index: 4, kind: input, shape index: {}]
  %s5 = inlined_call_operand.hbm [shape: f32[256,256], index: 5, kind: input, shape index: {}]
  %s6 = inlined_call_operand.vmem [shape: f32[1,256], index: 6, kind: input, shape index: {}]
  %s7 = inlined_call_operand.vmem [shape: f32[2,4,256], index: 7, kind: output, shape index: {}]
  %s8 = sld [smem:[#allocation0]]
  $region73: #{abc_net_forward.1} parent=0
    _
  %s10 = ssub.s32 1, %s8
  %s11 = scalar_select 0, %s10, %s8
  $region1: #{abc_net_forward.1} parent=0
    #allocation2 [shape = 'u8[294912]{0}', space=vmem, size = 0x48000, scoped, tag = 'input window, operand 1, single buffered']
    #allocation3 [shape = 's32[2]{0}', space=sflag, size = 0x8, scoped, tag = 'scoped memory for abc_net_forward.1']
    #allocation4 [shape = 'u8[294912]{0}', space=vmem, size = 0x48000, scoped, tag = 'input window, operand 3, single buffered']
    #allocation5 [shape = 's32[1]{0}', space=sflag, size = 0x4, scoped, tag = 'scoped memory for abc_net_forward.1']
    #allocation6 [shape = 'u8[262144]{0}', space=vmem, size = 0x40000, scoped, tag = 'input window, operand 5, single buffered']
    %12 = vsyncpa [#allocation3], 0
    %13 = vsyncpa [#allocation5], 0
    loop: start=0, step=1, limit=4
    $region2: #{abc_net_forward.1} parent=1 // loop_pre_header
      _
    $region3: #{abc_net_forward.1} parent=1 // loop_header
      %s15 = sphi 0, %s19
      %p16 = scmp.ge.s32.totalorder %s15, 4
      %s25 = sphi 0, %s27
      %s28 = sphi 0, %s25
      %s29 = sphi 0, %s28
      %s45 = sphi 0, %s29
      %s49 = sphi 0, %s49
      %s51 = sphi 0, %s49
      %s52 = sphi 0, %s51
      %s66 = sphi 0, %s52
      %s70 = sphi 0, %s70
      %s72 = sphi 0, %s70
      %s73 = sphi 0, %s72
      %s87 = sphi 0, %s73
      %s91 = sphi 0, %s91
      %s93 = sphi 0, %s91
      %s94 = sphi 0, %s93
      %s108 = sphi 0, %s94
      %s112 = sphi 0, %s112
      %s114 = sphi 0, %s112
      %s115 = sphi 0, %s114
      %s129 = sphi 0, %s115
      %s133 = sphi 0, %s133
      %s135 = sphi 0, %s133
      %s136 = sphi 0, %s135
      %s150 = sphi 0, %s136
      %s154 = sphi 0, %s154
      %s156 = sphi 0, %s154
      %s157 = sphi 0, %s156
      %s171 = sphi 0, %s157
      %s177 = sphi 0, %s179
      %s180 = sphi 0, %s177
      %s181 = sphi 0, %s180
      %s197 = sphi 0, %s181
    $region4: #{abc_net_forward.1} parent=1 // loop_header_branch
      %18 = sbr.rel (%p16) target = $region8
    $region5: #{abc_net_forward.1} parent=1 // loop_body
      %s20 = ssub.s32 %s15, 1
      %s21 = ssub.s32 %s15, 2
      %s22 = sadd.s32 %s15, 1
      %s23 = ssub.s32 %s15, %s22
      %p24 = scmp.eq.s32.totalorder %s23, 0
      %s26 = sadd.s32 %s25, 1
      %s27 = scalar_select %p24, %s25, %s26
      %p30 = pneg %p24
      %p31 = scmp.eq.s32.totalorder %s15, 1
      %p32 = por %p30, %p31
      %p33 = scmp.ne.s32.totalorder %s25, %s28
      %p34 = scmp.eq.s32.totalorder %s15, 0
      %p35 = por %p33, %p34
      %p36 = scmp.ne.s32.totalorder %s25, %s28
      %p37 = scmp.eq.s32.totalorder %s20, 1
      %p38 = por %p36, %p37
      %p39 = scmp.ne.s32.totalorder %s28, %s29
      %p40 = scmp.eq.s32.totalorder %s20, 0
      %p41 = por %p39, %p40
      %p42 = scmp.ne.s32.totalorder %s28, %s29
      %p43 = scmp.eq.s32.totalorder %s21, 1
      %p44 = por %p42, %p43
      %p46 = scmp.ne.s32.totalorder %s29, %s45
      %p47 = scmp.eq.s32.totalorder %s21, 0
      %p48 = por %p46, %p47
      %s50 = sadd.s32 %s49, 1
      %p53 = scmp.eq.s32.totalorder %s15, 1
      %p54 = scmp.ne.s32.totalorder %s49, %s51
      %p55 = scmp.eq.s32.totalorder %s15, 0
      %p56 = por %p54, %p55
      %p57 = scmp.ne.s32.totalorder %s49, %s51
      %p58 = scmp.eq.s32.totalorder %s20, 1
      %p59 = por %p57, %p58
      %p60 = scmp.ne.s32.totalorder %s51, %s52
      %p61 = scmp.eq.s32.totalorder %s20, 0
      %p62 = por %p60, %p61
      %p63 = scmp.ne.s32.totalorder %s51, %s52
      %p64 = scmp.eq.s32.totalorder %s21, 1
      %p65 = por %p63, %p64
      %p67 = scmp.ne.s32.totalorder %s52, %s66
      %p68 = scmp.eq.s32.totalorder %s21, 0
      %p69 = por %p67, %p68
      %s71 = sadd.s32 %s70, 1
      %p74 = scmp.eq.s32.totalorder %s15, 1
      %p75 = scmp.ne.s32.totalorder %s70, %s72
      %p76 = scmp.eq.s32.totalorder %s15, 0
      %p77 = por %p75, %p76
      %p78 = scmp.ne.s32.totalorder %s70, %s72
      %p79 = scmp.eq.s32.totalorder %s20, 1
      %p80 = por %p78, %p79
      %p81 = scmp.ne.s32.totalorder %s72, %s73
      %p82 = scmp.eq.s32.totalorder %s20, 0
      %p83 = por %p81, %p82
      %p84 = scmp.ne.s32.totalorder %s72, %s73
      %p85 = scmp.eq.s32.totalorder %s21, 1
      %p86 = por %p84, %p85
      %p88 = scmp.ne.s32.totalorder %s73, %s87
      %p89 = scmp.eq.s32.totalorder %s21, 0
      %p90 = por %p88, %p89
      %s92 = sadd.s32 %s91, 1
      %p95 = scmp.eq.s32.totalorder %s15, 1
      %p96 = scmp.ne.s32.totalorder %s91, %s93
      %p97 = scmp.eq.s32.totalorder %s15, 0
      %p98 = por %p96, %p97
      %p99 = scmp.ne.s32.totalorder %s91, %s93
      %p100 = scmp.eq.s32.totalorder %s20, 1
      %p101 = por %p99, %p100
      %p102 = scmp.ne.s32.totalorder %s93, %s94
      %p103 = scmp.eq.s32.totalorder %s20, 0
      %p104 = por %p102, %p103
      %p105 = scmp.ne.s32.totalorder %s93, %s94
      %p106 = scmp.eq.s32.totalorder %s21, 1
      %p107 = por %p105, %p106
      %p109 = scmp.ne.s32.totalorder %s94, %s108
      %p110 = scmp.eq.s32.totalorder %s21, 0
      %p111 = por %p109, %p110
      %s113 = sadd.s32 %s112, 1
      %p116 = scmp.eq.s32.totalorder %s15, 1
      %p117 = scmp.ne.s32.totalorder %s112, %s114
      %p118 = scmp.eq.s32.totalorder %s15, 0
      %p119 = por %p117, %p118
      %p120 = scmp.ne.s32.totalorder %s112, %s114
      %p121 = scmp.eq.s32.totalorder %s20, 1
      %p122 = por %p120, %p121
      %p123 = scmp.ne.s32.totalorder %s114, %s115
      %p124 = scmp.eq.s32.totalorder %s20, 0
      %p125 = por %p123, %p124
      %p126 = scmp.ne.s32.totalorder %s114, %s115
      %p127 = scmp.eq.s32.totalorder %s21, 1
      %p128 = por %p126, %p127
      %p130 = scmp.ne.s32.totalorder %s115, %s129
      %p131 = scmp.eq.s32.totalorder %s21, 0
      %p132 = por %p130, %p131
      %s134 = sadd.s32 %s133, 1
      %p137 = scmp.eq.s32.totalorder %s15, 1
      %p138 = scmp.ne.s32.totalorder %s133, %s135
      %p139 = scmp.eq.s32.totalorder %s15, 0
      %p140 = por %p138, %p139
      %p141 = scmp.ne.s32.totalorder %s133, %s135
      %p142 = scmp.eq.s32.totalorder %s20, 1
      %p143 = por %p141, %p142
      %p144 = scmp.ne.s32.totalorder %s135, %s136
      %p145 = scmp.eq.s32.totalorder %s20, 0
      %p146 = por %p144, %p145
      %p147 = scmp.ne.s32.totalorder %s135, %s136
      %p148 = scmp.eq.s32.totalorder %s21, 1
      %p149 = por %p147, %p148
      %p151 = scmp.ne.s32.totalorder %s136, %s150
      %p152 = scmp.eq.s32.totalorder %s21, 0
      %p153 = por %p151, %p152
      %s155 = sadd.s32 %s154, 1
      %p158 = scmp.eq.s32.totalorder %s15, 1
      %p159 = scmp.ne.s32.totalorder %s154, %s156
      %p160 = scmp.eq.s32.totalorder %s15, 0
      %p161 = por %p159, %p160
      %p162 = scmp.ne.s32.totalorder %s154, %s156
      %p163 = scmp.eq.s32.totalorder %s20, 1
      %p164 = por %p162, %p163
      %p165 = scmp.ne.s32.totalorder %s156, %s157
      %p166 = scmp.eq.s32.totalorder %s20, 0
      %p167 = por %p165, %p166
      %p168 = scmp.ne.s32.totalorder %s156, %s157
      %p169 = scmp.eq.s32.totalorder %s21, 1
      %p170 = por %p168, %p169
      %p172 = scmp.ne.s32.totalorder %s157, %s171
      %p173 = scmp.eq.s32.totalorder %s21, 0
      %p174 = por %p172, %p173
      %s175 = ssub.s32 %s15, %s22
      %p176 = scmp.eq.s32.totalorder %s175, 0
      %s178 = sadd.s32 %s177, 1
      %s179 = scalar_select %p176, %s177, %s178
      %p182 = pneg %p176
      %p183 = scmp.eq.s32.totalorder %s15, 1
      %p184 = por %p182, %p183
      %p185 = scmp.ne.s32.totalorder %s177, %s180
      %p186 = scmp.eq.s32.totalorder %s15, 0
      %p187 = por %p185, %p186
      %p188 = scmp.ne.s32.totalorder %s177, %s180
      %p189 = scmp.eq.s32.totalorder %s20, 1
      %p190 = por %p188, %p189
      %p191 = scmp.ne.s32.totalorder %s180, %s181
      %p192 = scmp.eq.s32.totalorder %s20, 0
      %p193 = por %p191, %p192
      %p194 = scmp.ne.s32.totalorder %s180, %s181
      %p195 = scmp.eq.s32.totalorder %s21, 1
      %p196 = por %p194, %p195
      %p198 = scmp.ne.s32.totalorder %s181, %s197
      %p199 = scmp.eq.s32.totalorder %s21, 0
      %p200 = por %p198, %p199
      %p201 = scmp.le.s32.totalorder 1, %s15
      %p202 = scmp.lt.s32.totalorder %s15, 3
      %p203 = pnand %p201, %p202
      %p204 = pneg %p203
      // Predicated region
      $region9: #{abc_net_forward.1} parent=5 // pred_check
        _
      $region10: #{abc_net_forward.1} parent=5 // pred_check_branch
        %206 = sbr.rel (%p203) target = $region12
      $region11: #{abc_net_forward.1} parent=5 // pred_region
        %s207 = ssub.s32 %s15, 1
        // Predicated region
        $region13: #{abc_net_forward.1} parent=11 // pred_check
          %p208 = pneg %p62
        $region14: #{abc_net_forward.1} parent=11 // pred_check_branch
          %210 = sbr.rel (%p208) target = $region16
        $region15: #{abc_net_forward.1} parent=11 // pred_region
          %s212 = ssub.s32 9216, 9216
          %213 = vsyncadd [#allocation3], %s212
          %s214 = sshll.u32 [#allocation2], 4
          %s215 = int_to_ptr.vmem [resolvable:$true] %s214
          %220 = dma.hbm_to_vmem [thread:$0]  %s1, 9216, %s215, [#allocation3], 256, 256, 16
        $region16: #{abc_net_forward.1} parent=11 // pred_fallthru
          _
        // Predicated region
        $region17: #{abc_net_forward.1} parent=11 // pred_check
          %p221 = pneg %p83
        $region18: #{abc_net_forward.1} parent=11 // pred_check_branch
          %223 = sbr.rel (%p221) target = $region20
        $region19: #{abc_net_forward.1} parent=11 // pred_region
          _
        $region20: #{abc_net_forward.1} parent=11 // pred_fallthru
          _
        // Predicated region
        $region21: #{abc_net_forward.1} parent=11 // pred_check
          %p224 = pneg %p104
        $region22: #{abc_net_forward.1} parent=11 // pred_check_branch
          %226 = sbr.rel (%p224) target = $region24
        $region23: #{abc_net_forward.1} parent=11 // pred_region
          %s228 = ssub.s32 9216, 9216
          %229 = vsyncadd [#allocation5], %s228
          %s230 = sshll.u32 [#allocation4], 4
          %s231 = int_to_ptr.vmem [resolvable:$true] %s230
          %236 = dma.hbm_to_vmem [thread:$0]  %s3, 9216, %s231, [#allocation5], 128, 128, 8
        $region24: #{abc_net_forward.1} parent=11 // pred_fallthru
          _
        // Predicated region
        $region25: #{abc_net_forward.1} parent=11 // pred_check
          %p237 = pneg %p125
        $region26: #{abc_net_forward.1} parent=11 // pred_check_branch
          %239 = sbr.rel (%p237) target = $region28
        $region27: #{abc_net_forward.1} parent=11 // pred_region
          _
        $region28: #{abc_net_forward.1} parent=11 // pred_fallthru
          _
        // Predicated region
        $region29: #{abc_net_forward.1} parent=11 // pred_check
          %p240 = pneg %p146
        $region30: #{abc_net_forward.1} parent=11 // pred_check_branch
          %242 = sbr.rel (%p240) target = $region32
        $region31: #{abc_net_forward.1} parent=11 // pred_region
          %s244 = ssub.s32 8192, 8192
          %245 = vsyncadd [#allocation5], %s244
          %s246 = sshll.u32 [#allocation6], 4
          %s247 = int_to_ptr.vmem [resolvable:$true] %s246
          %252 = dma.hbm_to_vmem [thread:$0]  %s5, 8192, %s247, [#allocation5], 256, 256, 16
        $region32: #{abc_net_forward.1} parent=11 // pred_fallthru
          _
        // Predicated region
        $region33: #{abc_net_forward.1} parent=11 // pred_check
          %p253 = pneg %p167
        $region34: #{abc_net_forward.1} parent=11 // pred_check_branch
          %255 = sbr.rel (%p253) target = $region36
        $region35: #{abc_net_forward.1} parent=11 // pred_region
          _
        $region36: #{abc_net_forward.1} parent=11 // pred_fallthru
          _
      $region12: #{abc_net_forward.1} parent=5 // pred_fallthru
        _
      %p256 = scmp.lt.s32.totalorder %s15, 2
      // Predicated region
      $region37: #{abc_net_forward.1} parent=5 // pred_check
        %p257 = pneg %p256
      $region38: #{abc_net_forward.1} parent=5 // pred_check_branch
        %259 = sbr.rel (%p257) target = $region40
      $region39: #{abc_net_forward.1} parent=5 // pred_region
        // Predicated region
        $region41: #{abc_net_forward.1} parent=39 // pred_check
          %p260 = pneg %p35
        $region42: #{abc_net_forward.1} parent=39 // pred_check_branch
          %262 = sbr.rel (%p260) target = $region44
        $region43: #{abc_net_forward.1} parent=39 // pred_region
          %p263 = scmp.lt.s32.totalorder %s15, 1
          %s264 = scalar_select %p263, %s15, 1
          %s265 = smul.addr %s264, 2
          %s266 = smul.addr %s265, 4
          %s267 = scalar_lea.vmem %s0, %s266
        $region44: #{abc_net_forward.1} parent=39 // pred_fallthru
          _
      $region40: #{abc_net_forward.1} parent=5 // pred_fallthru
        _
      %p268 = scmp.le.s32.totalorder 1, %s15
      %p269 = scmp.lt.s32.totalorder %s15, 3
      %p270 = pnand %p268, %p269
      %p271 = pneg %p270
      // Predicated region
      $region45: #{abc_net_forward.1} parent=5 // pred_check
        _
      $region46: #{abc_net_forward.1} parent=5 // pred_check_branch
        %273 = sbr.rel (%p270) target = $region48
      $region47: #{abc_net_forward.1} parent=5 // pred_region
        %s274 = ssub.s32 %s15, 1
        // Predicated region
        $region49: #{abc_net_forward.1} parent=47 // pred_check
          %p275 = pneg %p62
        $region50: #{abc_net_forward.1} parent=47 // pred_check_branch
          %277 = sbr.rel (%p275) target = $region52
        $region51: #{abc_net_forward.1} parent=47 // pred_region
          %278 = dma.done [#allocation3], 9216
        $region52: #{abc_net_forward.1} parent=47 // pred_fallthru
          _
        // Predicated region
        $region53: #{abc_net_forward.1} parent=47 // pred_check
          %p279 = pneg %p104
        $region54: #{abc_net_forward.1} parent=47 // pred_check_branch
          %281 = sbr.rel (%p279) target = $region56
        $region55: #{abc_net_forward.1} parent=47 // pred_region
          %282 = dma.done [#allocation5], 9216
        $region56: #{abc_net_forward.1} parent=47 // pred_fallthru
          _
        // Predicated region
        $region57: #{abc_net_forward.1} parent=47 // pred_check
          %p283 = pneg %p146
        $region58: #{abc_net_forward.1} parent=47 // pred_check_branch
          %285 = sbr.rel (%p283) target = $region60
        $region59: #{abc_net_forward.1} parent=47 // pred_region
          %286 = dma.done [#allocation5], 8192
        $region60: #{abc_net_forward.1} parent=47 // pred_fallthru
          _
        %p287 = scmp.lt.s32.totalorder %s20, 1
        %s288 = scalar_select %p287, %s20, 1
        %s289 = smul.addr %s288, 2
        %s290 = smul.addr %s289, 4
        %s291 = scalar_lea.vmem %s0, %s290
        %p292 = pneg %p41
        %p293 = pneg %p38
        %p294 = pneg %p62
        %p295 = pneg %p59
        %p296 = pneg %p83
        %p297 = pneg %p80
        %p298 = pneg %p104
        %p299 = pneg %p101
        %p300 = pneg %p125
        %p301 = pneg %p122
        %p302 = pneg %p146
        %p303 = pneg %p143
        %p304 = pneg %p167
        %p305 = pneg %p164
        %p306 = pneg %p193
        %p307 = pneg %p190
        %p308 = scmp.lt.s32.totalorder %s20, 1
        %s309 = scalar_select %p308, %s20, 1
        %s310 = smul.addr %s309, 2
        %s311 = smul.addr %s310, 4
        %s312 = scalar_lea.vmem %s7, %s311
        %p313 = scmp.lt.s32.totalorder %s20, 1
        %s314 = scalar_select %p313, %s20, 1
        %s315 = smul.addr %s314, 2
        %s316 = smul.addr %s315, 4
        %s317 = scalar_lea.vmem %s0, %s316
        %p318 = scmp.lt.s32.totalorder %s20, 1
        %s319 = scalar_select %p318, %s20, 1
        %s320 = smul.addr %s319, 2
        %s321 = smul.addr %s320, 4
        %s322 = scalar_lea.vmem %s7, %s321
        %v323 = vld [vmem:[%s317] sm:$0xff]
        %v324 = vld [vmem:[%s2] sm:$0xff]
        %v325 = vld [vmem:[%s2 + $0x8] sm:$0xff]
        %v327 = vcombine.high %v323, %v323
        %329 = vrot.lane.b32.xlu0 %v323, 17
        %v330 = vpop.permute.xlu0 %329
        %331 = vrot.lane.b32.xlu0 %v327, 17
        %v332 = vpop.permute.xlu0 %331
        %v333 = vlaneseq
        %v334 = vand.u32 %v333, 127
        %vm335 = vcmp.lt.s32.totalorder %v334, 17
        %v336 = vsel %vm335, %v330, %v332
        %v337 = vsel %vm335, %v332, %v330
        %v338 = vld [vmem:[#allocation2] sm:$0xff]
        %v339 = vld [vmem:[#allocation2 + $0x8] sm:$0xff]
        %v340 = vlaneseq
        %v341 = vshrl.u32 %v340, 7
        %v342 = vsub.s32 0, %v341
        %v343 = vrot.slane %v337, %v342
        %v344 = vlaneseq
        %v345 = vshrl.u32 %v344, 7
        %v346 = vsub.s32 0, %v345
        %v347 = vrot.slane %v336, %v346
        %v348 = vmul.f32 %v343, %v338
        %v349 = vmul.f32 %v347, %v339
        %v350 = vadd.f32 %v324, %v348
        %v351 = vadd.f32 %v325, %v349
        %s352 = scalar_lea.vmem [#allocation2], 144
        %v353 = vld [vmem:[%s352] sm:$0xff]
        %v354 = vld [vmem:[%s352 + $0x8] sm:$0xff]
        %v355 = vlaneseq
        %v356 = vshrl.u32 %v355, 7
        %v357 = vsub.s32 1, %v356
        %v358 = vrot.slane %v337, %v357
        %v359 = vlaneseq
        %v360 = vshrl.u32 %v359, 7
        %v361 = vsub.s32 1, %v360
        %v362 = vrot.slane %v336, %v361
        %v363 = vmul.f32 %v358, %v353
        %v364 = vmul.f32 %v362, %v354
        %v365 = vadd.f32 %v350, %v363
        %v366 = vadd.f32 %v351, %v364
        %s367 = scalar_lea.vmem [#allocation2], 288
        %v368 = vld [vmem:[%s367] sm:$0xff]
        %v369 = vld [vmem:[%s367 + $0x8] sm:$0xff]
        %v370 = vlaneseq
        %v371 = vshrl.u32 %v370, 7
        %v372 = vsub.s32 2, %v371
        %v373 = vrot.slane %v337, %v372
        %v374 = vlaneseq
        %v375 = vshrl.u32 %v374, 7
        %v376 = vsub.s32 2, %v375
        %v377 = vrot.slane %v336, %v376
        %v378 = vmul.f32 %v373, %v368
        %v379 = vmul.f32 %v377, %v369
        %v380 = vadd.f32 %v365, %v378
        %v381 = vadd.f32 %v366, %v379
        %s382 = scalar_lea.vmem [#allocation2], 432
        %v383 = vld [vmem:[%s382] sm:$0xff]
        %v384 = vld [vmem:[%s382 + $0x8] sm:$0xff]
        %v385 = vlaneseq
        %v386 = vshrl.u32 %v385, 7
        %v387 = vsub.s32 3, %v386
        %v388 = vrot.slane %v337, %v387
        %v389 = vlaneseq
        %v390 = vshrl.u32 %v389, 7
        %v391 = vsub.s32 3, %v390
        %v392 = vrot.slane %v336, %v391
        %v393 = vmul.f32 %v388, %v383
        %v394 = vmul.f32 %v392, %v384
        %v395 = vadd.f32 %v380, %v393
        %v396 = vadd.f32 %v381, %v394
        %397 = vrot.lane.b32.xlu0 %v323, 16
        %v398 = vpop.permute.xlu0 %397
        %399 = vrot.lane.b32.xlu0 %v327, 16
        %v400 = vpop.permute.xlu0 %399
        %vm401 = vcmp.lt.s32.totalorder %v334, 16
        %v402 = vsel %vm401, %v398, %v400
        %v403 = vsel %vm401, %v400, %v398
        %s404 = scalar_lea.vmem [#allocation2], 16
        %v405 = vld [vmem:[%s404] sm:$0xff]
        %v406 = vld [vmem:[%s404 + $0x8] sm:$0xff]
        %v407 = vlaneseq
        %v408 = vshrl.u32 %v407, 7
        %v409 = vsub.s32 0, %v408
        %v410 = vrot.slane %v403, %v409
        %v411 = vlaneseq
        %v412 = vshrl.u32 %v411, 7
        %v413 = vsub.s32 0, %v412
        %v414 = vrot.slane %v402, %v413
        %v415 = vmul.f32 %v410, %v405
        %v416 = vmul.f32 %v414, %v406
        %v417 = vadd.f32 %v395, %v415
        %v418 = vadd.f32 %v396, %v416
        %s419 = scalar_lea.vmem [#allocation2], 160
        %v420 = vld [vmem:[%s419] sm:$0xff]
        %v421 = vld [vmem:[%s419 + $0x8] sm:$0xff]
        %v422 = vlaneseq
        %v423 = vshrl.u32 %v422, 7
        %v424 = vsub.s32 1, %v423
        %v425 = vrot.slane %v403, %v424
        %v426 = vlaneseq
        %v427 = vshrl.u32 %v426, 7
        %v428 = vsub.s32 1, %v427
        %v429 = vrot.slane %v402, %v428
        %v430 = vmul.f32 %v425, %v420
        %v431 = vmul.f32 %v429, %v421
        %v432 = vadd.f32 %v417, %v430
        %v433 = vadd.f32 %v418, %v431
        %s434 = scalar_lea.vmem [#allocation2], 304
        %v435 = vld [vmem:[%s434] sm:$0xff]
        %v436 = vld [vmem:[%s434 + $0x8] sm:$0xff]
        %v437 = vlaneseq
        %v438 = vshrl.u32 %v437, 7
        %v439 = vsub.s32 2, %v438
        %v440 = vrot.slane %v403, %v439
        %v441 = vlaneseq
        %v442 = vshrl.u32 %v441, 7
        %v443 = vsub.s32 2, %v442
        %v444 = vrot.slane %v402, %v443
        %v445 = vmul.f32 %v440, %v435
        %v446 = vmul.f32 %v444, %v436
        %v447 = vadd.f32 %v432, %v445
        %v448 = vadd.f32 %v433, %v446
        %s449 = scalar_lea.vmem [#allocation2], 448
        %v450 = vld [vmem:[%s449] sm:$0xff]
        %v451 = vld [vmem:[%s449 + $0x8] sm:$0xff]
        %v452 = vlaneseq
        %v453 = vshrl.u32 %v452, 7
        %v454 = vsub.s32 3, %v453
        %v455 = vrot.slane %v403, %v454
        %v456 = vlaneseq
        %v457 = vshrl.u32 %v456, 7
        %v458 = vsub.s32 3, %v457
        %v459 = vrot.slane %v402, %v458
        %v460 = vmul.f32 %v455, %v450
        %v461 = vmul.f32 %v459, %v451
        %v462 = vadd.f32 %v447, %v460
        %v463 = vadd.f32 %v448, %v461
        %464 = vrot.lane.b32.xlu0 %v323, 15
        %v465 = vpop.permute.xlu0 %464
        %466 = vrot.lane.b32.xlu0 %v327, 15
        %v467 = vpop.permute.xlu0 %466
        %vm468 = vcmp.lt.s32.totalorder %v334, 15
        %v469 = vsel %vm468, %v465, %v467
        %v470 = vsel %vm468, %v467, %v465
        %s471 = scalar_lea.vmem [#allocation2], 32
        %v472 = vld [vmem:[%s471] sm:$0xff]
        %v473 = vld [vmem:[%s471 + $0x8] sm:$0xff]
        %v474 = vlaneseq
        %v475 = vshrl.u32 %v474, 7
        %v476 = vsub.s32 0, %v475
        %v477 = vrot.slane %v470, %v476
        %v478 = vlaneseq
        %v479 = vshrl.u32 %v478, 7
        %v480 = vsub.s32 0, %v479
        %v481 = vrot.slane %v469, %v480
        %v482 = vmul.f32 %v477, %v472
        %v483 = vmul.f32 %v481, %v473
        %v484 = vadd.f32 %v462, %v482
        %v485 = vadd.f32 %v463, %v483
        %s486 = scalar_lea.vmem [#allocation2], 176
        %v487 = vld [vmem:[%s486] sm:$0xff]
        %v488 = vld [vmem:[%s486 + $0x8] sm:$0xff]
        %v489 = vlaneseq
        %v490 = vshrl.u32 %v489, 7
        %v491 = vsub.s32 1, %v490
        %v492 = vrot.slane %v470, %v491
        %v493 = vlaneseq
        %v494 = vshrl.u32 %v493, 7
        %v495 = vsub.s32 1, %v494
        %v496 = vrot.slane %v469, %v495
        %v497 = vmul.f32 %v492, %v487
        %v498 = vmul.f32 %v496, %v488
        %v499 = vadd.f32 %v484, %v497
        %v500 = vadd.f32 %v485, %v498
        %s501 = scalar_lea.vmem [#allocation2], 320
        %v502 = vld [vmem:[%s501] sm:$0xff]
        %v503 = vld [vmem:[%s501 + $0x8] sm:$0xff]
        %v504 = vlaneseq
        %v505 = vshrl.u32 %v504, 7
        %v506 = vsub.s32 2, %v505
        %v507 = vrot.slane %v470, %v506
        %v508 = vlaneseq
        %v509 = vshrl.u32 %v508, 7
        %v510 = vsub.s32 2, %v509
        %v511 = vrot.slane %v469, %v510
        %v512 = vmul.f32 %v507, %v502
        %v513 = vmul.f32 %v511, %v503
        %v514 = vadd.f32 %v499, %v512
        %v515 = vadd.f32 %v500, %v513
        %s516 = scalar_lea.vmem [#allocation2], 464
        %v517 = vld [vmem:[%s516] sm:$0xff]
        %v518 = vld [vmem:[%s516 + $0x8] sm:$0xff]
        %v519 = vlaneseq
        %v520 = vshrl.u32 %v519, 7
        %v521 = vsub.s32 3, %v520
        %v522 = vrot.slane %v470, %v521
        %v523 = vlaneseq
        %v524 = vshrl.u32 %v523, 7
        %v525 = vsub.s32 3, %v524
        %v526 = vrot.slane %v469, %v525
        %v527 = vmul.f32 %v522, %v517
        %v528 = vmul.f32 %v526, %v518
        %v529 = vadd.f32 %v514, %v527
        %v530 = vadd.f32 %v515, %v528
        %531 = vrot.lane.b32.xlu0 %v323, 1
        %v532 = vpop.permute.xlu0 %531
        %533 = vrot.lane.b32.xlu0 %v327, 1
        %v534 = vpop.permute.xlu0 %533
        %vm535 = vcmp.lt.s32.totalorder %v334, 1
        %v536 = vsel %vm535, %v532, %v534
        %v537 = vsel %vm535, %v534, %v532
        %s538 = scalar_lea.vmem [#allocation2], 48
        %v539 = vld [vmem:[%s538] sm:$0xff]
        %v540 = vld [vmem:[%s538 + $0x8] sm:$0xff]
        %v541 = vlaneseq
        %v542 = vshrl.u32 %v541, 7
        %v543 = vsub.s32 0, %v542
        %v544 = vrot.slane %v537, %v543
        %v545 = vlaneseq
        %v546 = vshrl.u32 %v545, 7
        %v547 = vsub.s32 0, %v546
        %v548 = vrot.slane %v536, %v547
        %v549 = vmul.f32 %v544, %v539
        %v550 = vmul.f32 %v548, %v540
        %v551 = vadd.f32 %v529, %v549
        %v552 = vadd.f32 %v530, %v550
        %s553 = scalar_lea.vmem [#allocation2], 192
        %v554 = vld [vmem:[%s553] sm:$0xff]
        %v555 = vld [vmem:[%s553 + $0x8] sm:$0xff]
        %v556 = vlaneseq
        %v557 = vshrl.u32 %v556, 7
        %v558 = vsub.s32 1, %v557
        %v559 = vrot.slane %v537, %v558
        %v560 = vlaneseq
        %v561 = vshrl.u32 %v560, 7
        %v562 = vsub.s32 1, %v561
        %v563 = vrot.slane %v536, %v562
        %v564 = vmul.f32 %v559, %v554
        %v565 = vmul.f32 %v563, %v555
        %v566 = vadd.f32 %v551, %v564
        %v567 = vadd.f32 %v552, %v565
        %s568 = scalar_lea.vmem [#allocation2], 336
        %v569 = vld [vmem:[%s568] sm:$0xff]
        %v570 = vld [vmem:[%s568 + $0x8] sm:$0xff]
        %v571 = vlaneseq
        %v572 = vshrl.u32 %v571, 7
        %v573 = vsub.s32 2, %v572
        %v574 = vrot.slane %v537, %v573
        %v575 = vlaneseq
        %v576 = vshrl.u32 %v575, 7
        %v577 = vsub.s32 2, %v576
        %v578 = vrot.slane %v536, %v577
        %v579 = vmul.f32 %v574, %v569
        %v580 = vmul.f32 %v578, %v570
        %v581 = vadd.f32 %v566, %v579
        %v582 = vadd.f32 %v567, %v580
        %s583 = scalar_lea.vmem [#allocation2], 480
        %v584 = vld [vmem:[%s583] sm:$0xff]
        %v585 = vld [vmem:[%s583 + $0x8] sm:$0xff]
        %v586 = vlaneseq
        %v587 = vshrl.u32 %v586, 7
        %v588 = vsub.s32 3, %v587
        %v589 = vrot.slane %v537, %v588
        %v590 = vlaneseq
        %v591 = vshrl.u32 %v590, 7
        %v592 = vsub.s32 3, %v591
        %v593 = vrot.slane %v536, %v592
        %v594 = vmul.f32 %v589, %v584
        %v595 = vmul.f32 %v593, %v585
        %v596 = vadd.f32 %v581, %v594
        %v597 = vadd.f32 %v582, %v595
        %s598 = scalar_lea.vmem [#allocation2], 64
        %v599 = vld [vmem:[%s598] sm:$0xff]
        %v600 = vld [vmem:[%s598 + $0x8] sm:$0xff]
        %v601 = vlaneseq
        %v602 = vshrl.u32 %v601, 7
        %v603 = vsub.s32 0, %v602
        %v604 = vrot.slane %v323, %v603
        %v605 = vlaneseq
        %v606 = vshrl.u32 %v605, 7
        %v607 = vsub.s32 4, %v606
        %v608 = vrot.slane %v323, %v607
        %v611 = vlaneseq
        %v612 = vshrl.u32 %v611, 7
        %v613 = vsub.s32 0, %v612
        %v614 = vrot.slane %v604, %v613
        %v615 = vlaneseq
        %v616 = vshrl.u32 %v615, 7
        %v617 = vsub.s32 0, %v616
        %v618 = vrot.slane %v608, %v617
        %v619 = vmul.f32 %v614, %v599
        %v620 = vmul.f32 %v618, %v600
        %v621 = vadd.f32 %v596, %v619
        %v622 = vadd.f32 %v597, %v620
        %s623 = scalar_lea.vmem [#allocation2], 208
        %v624 = vld [vmem:[%s623] sm:$0xff]
        %v625 = vld [vmem:[%s623 + $0x8] sm:$0xff]
        %v626 = vlaneseq
        %v627 = vshrl.u32 %v626, 7
        %v628 = vsub.s32 1, %v627
        %v629 = vrot.slane %v323, %v628
        %v630 = vlaneseq
        %v631 = vshrl.u32 %v630, 7
        %v632 = vsub.s32 5, %v631
        %v633 = vrot.slane %v323, %v632
        %v636 = vlaneseq
        %v637 = vshrl.u32 %v636, 7
        %v638 = vsub.s32 1, %v637
        %v639 = vrot.slane %v629, %v638
        %v640 = vlaneseq
        %v641 = vshrl.u32 %v640, 7
        %v642 = vsub.s32 1, %v641
        %v643 = vrot.slane %v633, %v642
        %v644 = vmul.f32 %v639, %v624
        %v645 = vmul.f32 %v643, %v625
        %v646 = vadd.f32 %v621, %v644
        %v647 = vadd.f32 %v622, %v645
        %s648 = scalar_lea.vmem [#allocation2], 352
        %v649 = vld [vmem:[%s648] sm:$0xff]
        %v650 = vld [vmem:[%s648 + $0x8] sm:$0xff]
        %v651 = vlaneseq
        %v652 = vshrl.u32 %v651, 7
        %v653 = vsub.s32 2, %v652
        %v654 = vrot.slane %v323, %v653
        %v655 = vlaneseq
        %v656 = vshrl.u32 %v655, 7
        %v657 = vsub.s32 6, %v656
        %v658 = vrot.slane %v323, %v657
        %v661 = vlaneseq
        %v662 = vshrl.u32 %v661, 7
        %v663 = vsub.s32 2, %v662
        %v664 = vrot.slane %v654, %v663
        %v665 = vlaneseq
        %v666 = vshrl.u32 %v665, 7
        %v667 = vsub.s32 2, %v666
        %v668 = vrot.slane %v658, %v667
        %v669 = vmul.f32 %v664, %v649
        %v670 = vmul.f32 %v668, %v650
        %v671 = vadd.f32 %v646, %v669
        %v672 = vadd.f32 %v647, %v670
        %s673 = scalar_lea.vmem [#allocation2], 496
        %v674 = vld [vmem:[%s673] sm:$0xff]
        %v675 = vld [vmem:[%s673 + $0x8] sm:$0xff]
        %v676 = vlaneseq
        %v677 = vshrl.u32 %v676, 7
        %v678 = vsub.s32 3, %v677
        %v679 = vrot.slane %v323, %v678
        %v680 = vlaneseq
        %v681 = vshrl.u32 %v680, 7
        %v682 = vsub.s32 7, %v681
        %v683 = vrot.slane %v323, %v682
        %v686 = vlaneseq
        %v687 = vshrl.u32 %v686, 7
        %v688 = vsub.s32 3, %v687
        %v689 = vrot.slane %v679, %v688
        %v690 = vlaneseq
        %v691 = vshrl.u32 %v690, 7
        %v692 = vsub.s32 3, %v691
        %v693 = vrot.slane %v683, %v692
        %v694 = vmul.f32 %v689, %v674
        %v695 = vmul.f32 %v693, %v675
        %v696 = vadd.f32 %v671, %v694
        %v697 = vadd.f32 %v672, %v695
        %698 = vrot.lane.b32.xlu0 %v323, 127
        %v699 = vpop.permute.xlu0 %698
        %700 = vrot.lane.b32.xlu0 %v327, 127
        %v701 = vpop.permute.xlu0 %700
        %vm702 = vcmp.lt.s32.totalorder %v334, 127
        %v703 = vsel %vm702, %v699, %v701
        %v704 = vsel %vm702, %v701, %v699
        %s705 = scalar_lea.vmem [#allocation2], 80
        %v706 = vld [vmem:[%s705] sm:$0xff]
        %v707 = vld [vmem:[%s705 + $0x8] sm:$0xff]
        %v708 = vlaneseq
        %v709 = vshrl.u32 %v708, 7
        %v710 = vsub.s32 0, %v709
        %v711 = vrot.slane %v703, %v710
        %v712 = vlaneseq
        %v713 = vshrl.u32 %v712, 7
        %v714 = vsub.s32 0, %v713
        %v715 = vrot.slane %v704, %v714
        %v716 = vmul.f32 %v711, %v706
        %v717 = vmul.f32 %v715, %v707
        %v718 = vadd.f32 %v696, %v716
        %v719 = vadd.f32 %v697, %v717
        %s720 = scalar_lea.vmem [#allocation2], 224
        %v721 = vld [vmem:[%s720] sm:$0xff]
        %v722 = vld [vmem:[%s720 + $0x8] sm:$0xff]
        %v723 = vlaneseq
        %v724 = vshrl.u32 %v723, 7
        %v725 = vsub.s32 1, %v724
        %v726 = vrot.slane %v703, %v725
        %v727 = vlaneseq
        %v728 = vshrl.u32 %v727, 7
        %v729 = vsub.s32 1, %v728
        %v730 = vrot.slane %v704, %v729
        %v731 = vmul.f32 %v726, %v721
        %v732 = vmul.f32 %v730, %v722
        %v733 = vadd.f32 %v718, %v731
        %v734 = vadd.f32 %v719, %v732
        %s735 = scalar_lea.vmem [#allocation2], 368
        %v736 = vld [vmem:[%s735] sm:$0xff]
        %v737 = vld [vmem:[%s735 + $0x8] sm:$0xff]
        %v738 = vlaneseq
        %v739 = vshrl.u32 %v738, 7
        %v740 = vsub.s32 2, %v739
        %v741 = vrot.slane %v703, %v740
        %v742 = vlaneseq
        %v743 = vshrl.u32 %v742, 7
        %v744 = vsub.s32 2, %v743
        %v745 = vrot.slane %v704, %v744
        %v746 = vmul.f32 %v741, %v736
        %v747 = vmul.f32 %v745, %v737
        %v748 = vadd.f32 %v733, %v746
        %v749 = vadd.f32 %v734, %v747
        %s750 = scalar_lea.vmem [#allocation2], 512
        %v751 = vld [vmem:[%s750] sm:$0xff]
        %v752 = vld [vmem:[%s750 + $0x8] sm:$0xff]
        %v753 = vlaneseq
        %v754 = vshrl.u32 %v753, 7
        %v755 = vsub.s32 3, %v754
        %v756 = vrot.slane %v703, %v755
        %v757 = vlaneseq
        %v758 = vshrl.u32 %v757, 7
        %v759 = vsub.s32 3, %v758
        %v760 = vrot.slane %v704, %v759
        %v761 = vmul.f32 %v756, %v751
        %v762 = vmul.f32 %v760, %v752
        %v763 = vadd.f32 %v748, %v761
        %v764 = vadd.f32 %v749, %v762
        %765 = vrot.lane.b32.xlu0 %v323, 113
        %v766 = vpop.permute.xlu0 %765
        %767 = vrot.lane.b32.xlu0 %v327, 113
        %v768 = vpop.permute.xlu0 %767
        %vm769 = vcmp.lt.s32.totalorder %v334, 113
        %v770 = vsel %vm769, %v766, %v768
        %v771 = vsel %vm769, %v768, %v766
        %s772 = scalar_lea.vmem [#allocation2], 96
        %v773 = vld [vmem:[%s772] sm:$0xff]
        %v774 = vld [vmem:[%s772 + $0x8] sm:$0xff]
        %v775 = vlaneseq
        %v776 = vshrl.u32 %v775, 7
        %v777 = vsub.s32 0, %v776
        %v778 = vrot.slane %v770, %v777
        %v779 = vlaneseq
        %v780 = vshrl.u32 %v779, 7
        %v781 = vsub.s32 0, %v780
        %v782 = vrot.slane %v771, %v781
        %v783 = vmul.f32 %v778, %v773
        %v784 = vmul.f32 %v782, %v774
        %v785 = vadd.f32 %v763, %v783
        %v786 = vadd.f32 %v764, %v784
        %s787 = scalar_lea.vmem [#allocation2], 240
        %v788 = vld [vmem:[%s787] sm:$0xff]
        %v789 = vld [vmem:[%s787 + $0x8] sm:$0xff]
        %v790 = vlaneseq
        %v791 = vshrl.u32 %v790, 7
        %v792 = vsub.s32 1, %v791
        %v793 = vrot.slane %v770, %v792
        %v794 = vlaneseq
        %v795 = vshrl.u32 %v794, 7
        %v796 = vsub.s32 1, %v795
        %v797 = vrot.slane %v771, %v796
        %v798 = vmul.f32 %v793, %v788
        %v799 = vmul.f32 %v797, %v789
        %v800 = vadd.f32 %v785, %v798
        %v801 = vadd.f32 %v786, %v799
        %s802 = scalar_lea.vmem [#allocation2], 384
        %v803 = vld [vmem:[%s802] sm:$0xff]
        %v804 = vld [vmem:[%s802 + $0x8] sm:$0xff]
        %v805 = vlaneseq
        %v806 = vshrl.u32 %v805, 7
        %v807 = vsub.s32 2, %v806
        %v808 = vrot.slane %v770, %v807
        %v809 = vlaneseq
        %v810 = vshrl.u32 %v809, 7
        %v811 = vsub.s32 2, %v810
        %v812 = vrot.slane %v771, %v811
        %v813 = vmul.f32 %v808, %v803
        %v814 = vmul.f32 %v812, %v804
        %v815 = vadd.f32 %v800, %v813
        %v816 = vadd.f32 %v801, %v814
        %s817 = scalar_lea.vmem [#allocation2], 528
        %v818 = vld [vmem:[%s817] sm:$0xff]
        %v819 = vld [vmem:[%s817 + $0x8] sm:$0xff]
        %v820 = vlaneseq
        %v821 = vshrl.u32 %v820, 7
        %v822 = vsub.s32 3, %v821
        %v823 = vrot.slane %v770, %v822
        %v824 = vlaneseq
        %v825 = vshrl.u32 %v824, 7
        %v826 = vsub.s32 3, %v825
        %v827 = vrot.slane %v771, %v826
        %v828 = vmul.f32 %v823, %v818
        %v829 = vmul.f32 %v827, %v819
        %v830 = vadd.f32 %v815, %v828
        %v831 = vadd.f32 %v816, %v829
        %832 = vrot.lane.b32.xlu0 %v323, 112
        %v833 = vpop.permute.xlu0 %832
        %834 = vrot.lane.b32.xlu0 %v327, 112
        %v835 = vpop.permute.xlu0 %834
        %vm836 = vcmp.lt.s32.totalorder %v334, 112
        %v837 = vsel %vm836, %v833, %v835
        %v838 = vsel %vm836, %v835, %v833
        %s839 = scalar_lea.vmem [#allocation2], 112
        %v840 = vld [vmem:[%s839] sm:$0xff]
        %v841 = vld [vmem:[%s839 + $0x8] sm:$0xff]
        %v842 = vlaneseq
        %v843 = vshrl.u32 %v842, 7
        %v844 = vsub.s32 0, %v843
        %v845 = vrot.slane %v837, %v844
        %v846 = vlaneseq
        %v847 = vshrl.u32 %v846, 7
        %v848 = vsub.s32 0, %v847
        %v849 = vrot.slane %v838, %v848
        %v850 = vmul.f32 %v845, %v840
        %v851 = vmul.f32 %v849, %v841
        %v852 = vadd.f32 %v830, %v850
        %v853 = vadd.f32 %v831, %v851
        %s854 = scalar_lea.vmem [#allocation2], 256
        %v855 = vld [vmem:[%s854] sm:$0xff]
        %v856 = vld [vmem:[%s854 + $0x8] sm:$0xff]
        %v857 = vlaneseq
        %v858 = vshrl.u32 %v857, 7
        %v859 = vsub.s32 1, %v858
        %v860 = vrot.slane %v837, %v859
        %v861 = vlaneseq
        %v862 = vshrl.u32 %v861, 7
        %v863 = vsub.s32 1, %v862
        %v864 = vrot.slane %v838, %v863
        %v865 = vmul.f32 %v860, %v855
        %v866 = vmul.f32 %v864, %v856
        %v867 = vadd.f32 %v852, %v865
        %v868 = vadd.f32 %v853, %v866
        %s869 = scalar_lea.vmem [#allocation2], 400
        %v870 = vld [vmem:[%s869] sm:$0xff]
        %v871 = vld [vmem:[%s869 + $0x8] sm:$0xff]
        %v872 = vlaneseq
        %v873 = vshrl.u32 %v872, 7
        %v874 = vsub.s32 2, %v873
        %v875 = vrot.slane %v837, %v874
        %v876 = vlaneseq
        %v877 = vshrl.u32 %v876, 7
        %v878 = vsub.s32 2, %v877
        %v879 = vrot.slane %v838, %v878
        %v880 = vmul.f32 %v875, %v870
        %v881 = vmul.f32 %v879, %v871
        %v882 = vadd.f32 %v867, %v880
        %v883 = vadd.f32 %v868, %v881
        %s884 = scalar_lea.vmem [#allocation2], 544
        %v885 = vld [vmem:[%s884] sm:$0xff]
        %v886 = vld [vmem:[%s884 + $0x8] sm:$0xff]
        %v887 = vlaneseq
        %v888 = vshrl.u32 %v887, 7
        %v889 = vsub.s32 3, %v888
        %v890 = vrot.slane %v837, %v889
        %v891 = vlaneseq
        %v892 = vshrl.u32 %v891, 7
        %v893 = vsub.s32 3, %v892
        %v894 = vrot.slane %v838, %v893
        %v895 = vmul.f32 %v890, %v885
        %v896 = vmul.f32 %v894, %v886
        %v897 = vadd.f32 %v882, %v895
        %v898 = vadd.f32 %v883, %v896
        %899 = vrot.lane.b32.xlu0 %v323, 111
        %v900 = vpop.permute.xlu0 %899
        %901 = vrot.lane.b32.xlu0 %v327, 111
        %v902 = vpop.permute.xlu0 %901
        %vm903 = vcmp.lt.s32.totalorder %v334, 111
        %v904 = vsel %vm903, %v900, %v902
        %v905 = vsel %vm903, %v902, %v900
        %s906 = scalar_lea.vmem [#allocation2], 128
        %v907 = vld [vmem:[%s906] sm:$0xff]
        %v908 = vld [vmem:[%s906 + $0x8] sm:$0xff]
        %v909 = vlaneseq
        %v910 = vshrl.u32 %v909, 7
        %v911 = vsub.s32 0, %v910
        %v912 = vrot.slane %v904, %v911
        %v913 = vlaneseq
        %v914 = vshrl.u32 %v913, 7
        %v915 = vsub.s32 0, %v914
        %v916 = vrot.slane %v905, %v915
        %v917 = vmul.f32 %v912, %v907
        %v918 = vmul.f32 %v916, %v908
        %v919 = vadd.f32 %v897, %v917
        %v920 = vadd.f32 %v898, %v918
        %s921 = scalar_lea.vmem [#allocation2], 272
        %v922 = vld [vmem:[%s921] sm:$0xff]
        %v923 = vld [vmem:[%s921 + $0x8] sm:$0xff]
        %v924 = vlaneseq
        %v925 = vshrl.u32 %v924, 7
        %v926 = vsub.s32 1, %v925
        %v927 = vrot.slane %v904, %v926
        %v928 = vlaneseq
        %v929 = vshrl.u32 %v928, 7
        %v930 = vsub.s32 1, %v929
        %v931 = vrot.slane %v905, %v930
        %v932 = vmul.f32 %v927, %v922
        %v933 = vmul.f32 %v931, %v923
        %v934 = vadd.f32 %v919, %v932
        %v935 = vadd.f32 %v920, %v933
        %s936 = scalar_lea.vmem [#allocation2], 416
        %v937 = vld [vmem:[%s936] sm:$0xff]
        %v938 = vld [vmem:[%s936 + $0x8] sm:$0xff]
        %v939 = vlaneseq
        %v940 = vshrl.u32 %v939, 7
        %v941 = vsub.s32 2, %v940
        %v942 = vrot.slane %v904, %v941
        %v943 = vlaneseq
        %v944 = vshrl.u32 %v943, 7
        %v945 = vsub.s32 2, %v944
        %v946 = vrot.slane %v905, %v945
        %v947 = vmul.f32 %v942, %v937
        %v948 = vmul.f32 %v946, %v938
        %v949 = vadd.f32 %v934, %v947
        %v950 = vadd.f32 %v935, %v948
        %s951 = scalar_lea.vmem [#allocation2], 560
        %v952 = vld [vmem:[%s951] sm:$0xff]
        %v953 = vld [vmem:[%s951 + $0x8] sm:$0xff]
        %v954 = vlaneseq
        %v955 = vshrl.u32 %v954, 7
        %v956 = vsub.s32 3, %v955
        %v957 = vrot.slane %v904, %v956
        %v958 = vlaneseq
        %v959 = vshrl.u32 %v958, 7
        %v960 = vsub.s32 3, %v959
        %v961 = vrot.slane %v905, %v960
        %v962 = vmul.f32 %v957, %v952
        %v963 = vmul.f32 %v961, %v953
        %v964 = vadd.f32 %v949, %v962
        %v965 = vadd.f32 %v950, %v963
        %v966 = vmax.f32 %v964, 0.0
        %v967 = vmax.f32 %v965, 0.0
        %v968 = vld [vmem:[%s4] sm:$0xff]
        %969 = vrot.lane.b32.xlu0 %v966, 17
        %v970 = vpop.permute.xlu0 %969
        %971 = vrot.lane.b32.xlu0 %v967, 17
        %v972 = vpop.permute.xlu0 %971
        %v973 = vsel %vm335, %v970, %v972
        %v974 = vsel %vm335, %v972, %v970
        %v975 = vld [vmem:[#allocation4] sm:$0xff]
        %v976 = vlaneseq
        %v977 = vshrl.u32 %v976, 7
        %v978 = vsub.s32 0, %v977
        %v979 = vrot.slane %v974, %v978
        %v980 = vlaneseq
        %v981 = vshrl.u32 %v980, 7
        %v982 = vsub.s32 0, %v981
        %v983 = vrot.slane %v973, %v982
        %v985 = vcombine.high %v975, %v975
        %v987 = vmul.f32 %v979, %v975
        %v988 = vmul.f32 %v983, %v985
        %v991 = vcombine.low %v987, %v988
        %v993 = vadd.f32 %v968, %v991
        %s994 = scalar_lea.vmem [#allocation4], 72
        %v995 = vld [vmem:[%s994] sm:$0xff]
        %v996 = vlaneseq
        %v997 = vshrl.u32 %v996, 7
        %v998 = vsub.s32 1, %v997
        %v999 = vrot.slane %v974, %v998
        %v1000 = vlaneseq
        %v1001 = vshrl.u32 %v1000, 7
        %v1002 = vsub.s32 1, %v1001
        %v1003 = vrot.slane %v973, %v1002
        %v1005 = vcombine.high %v995, %v995
        %v1007 = vmul.f32 %v999, %v995
        %v1008 = vmul.f32 %v1003, %v1005
        %v1011 = vcombine.low %v1007, %v1008
        %v1013 = vadd.f32 %v993, %v1011
        %s1014 = scalar_lea.vmem [#allocation4], 144
        %v1015 = vld [vmem:[%s1014] sm:$0xff]
        %v1016 = vlaneseq
        %v1017 = vshrl.u32 %v1016, 7
        %v1018 = vsub.s32 2, %v1017
        %v1019 = vrot.slane %v974, %v1018
        %v1020 = vlaneseq
        %v1021 = vshrl.u32 %v1020, 7
        %v1022 = vsub.s32 2, %v1021
        %v1023 = vrot.slane %v973, %v1022
        %v1025 = vcombine.high %v1015, %v1015
        %v1027 = vmul.f32 %v1019, %v1015
        %v1028 = vmul.f32 %v1023, %v1025
        %v1031 = vcombine.low %v1027, %v1028
        %v1033 = vadd.f32 %v1013, %v1031
        %s1034 = scalar_lea.vmem [#allocation4], 216
        %v1035 = vld [vmem:[%s1034] sm:$0xff]
        %v1036 = vlaneseq
        %v1037 = vshrl.u32 %v1036, 7
        %v1038 = vsub.s32 3, %v1037
        %v1039 = vrot.slane %v974, %v1038
        %v1040 = vlaneseq
        %v1041 = vshrl.u32 %v1040, 7
        %v1042 = vsub.s32 3, %v1041
        %v1043 = vrot.slane %v973, %v1042
        %v1045 = vcombine.high %v1035, %v1035
        %v1047 = vmul.f32 %v1039, %v1035
        %v1048 = vmul.f32 %v1043, %v1045
        %v1051 = vcombine.low %v1047, %v1048
        %v1053 = vadd.f32 %v1033, %v1051
        %s1054 = scalar_lea.vmem [#allocation4], 288
        %v1055 = vld [vmem:[%s1054] sm:$0xff]
        %v1056 = vlaneseq
        %v1057 = vshrl.u32 %v1056, 7
        %v1058 = vsub.s32 4, %v1057
        %v1059 = vrot.slane %v974, %v1058
        %v1060 = vlaneseq
        %v1061 = vshrl.u32 %v1060, 7
        %v1062 = vsub.s32 4, %v1061
        %v1063 = vrot.slane %v973, %v1062
        %v1065 = vcombine.high %v1055, %v1055
        %v1067 = vmul.f32 %v1059, %v1055
        %v1068 = vmul.f32 %v1063, %v1065
        %v1071 = vcombine.low %v1067, %v1068
        %v1073 = vadd.f32 %v1053, %v1071
        %s1074 = scalar_lea.vmem [#allocation4], 360
        %v1075 = vld [vmem:[%s1074] sm:$0xff]
        %v1076 = vlaneseq
        %v1077 = vshrl.u32 %v1076, 7
        %v1078 = vsub.s32 5, %v1077
        %v1079 = vrot.slane %v974, %v1078
        %v1080 = vlaneseq
        %v1081 = vshrl.u32 %v1080, 7
        %v1082 = vsub.s32 5, %v1081
        %v1083 = vrot.slane %v973, %v1082
        %v1085 = vcombine.high %v1075, %v1075
        %v1087 = vmul.f32 %v1079, %v1075
        %v1088 = vmul.f32 %v1083, %v1085
        %v1091 = vcombine.low %v1087, %v1088
        %v1093 = vadd.f32 %v1073, %v1091
        %s1094 = scalar_lea.vmem [#allocation4], 432
        %v1095 = vld [vmem:[%s1094] sm:$0xff]
        %v1096 = vlaneseq
        %v1097 = vshrl.u32 %v1096, 7
        %v1098 = vsub.s32 6, %v1097
        %v1099 = vrot.slane %v974, %v1098
        %v1100 = vlaneseq
        %v1101 = vshrl.u32 %v1100, 7
        %v1102 = vsub.s32 6, %v1101
        %v1103 = vrot.slane %v973, %v1102
        %v1105 = vcombine.high %v1095, %v1095
        %v1107 = vmul.f32 %v1099, %v1095
        %v1108 = vmul.f32 %v1103, %v1105
        %v1111 = vcombine.low %v1107, %v1108
        %v1113 = vadd.f32 %v1093, %v1111
        %s1114 = scalar_lea.vmem [#allocation4], 504
        %v1115 = vld [vmem:[%s1114] sm:$0xff]
        %v1116 = vlaneseq
        %v1117 = vshrl.u32 %v1116, 7
        %v1118 = vsub.s32 7, %v1117
        %v1119 = vrot.slane %v974, %v1118
        %v1120 = vlaneseq
        %v1121 = vshrl.u32 %v1120, 7
        %v1122 = vsub.s32 7, %v1121
        %v1123 = vrot.slane %v973, %v1122
        %v1125 = vcombine.high %v1115, %v1115
        %v1127 = vmul.f32 %v1119, %v1115
        %v1128 = vmul.f32 %v1123, %v1125
        %v1131 = vcombine.low %v1127, %v1128
        %v1133 = vadd.f32 %v1113, %v1131
        %1134 = vrot.lane.b32.xlu0 %v966, 16
        %v1135 = vpop.permute.xlu0 %1134
        %1136 = vrot.lane.b32.xlu0 %v967, 16
        %v1137 = vpop.permute.xlu0 %1136
        %v1138 = vsel %vm401, %v1135, %v1137
        %v1139 = vsel %vm401, %v1137, %v1135
        %s1140 = scalar_lea.vmem [#allocation4], 8
        %v1141 = vld [vmem:[%s1140] sm:$0xff]
        %v1142 = vlaneseq
        %v1143 = vshrl.u32 %v1142, 7
        %v1144 = vsub.s32 0, %v1143
        %v1145 = vrot.slane %v1139, %v1144
        %v1146 = vlaneseq
        %v1147 = vshrl.u32 %v1146, 7
        %v1148 = vsub.s32 0, %v1147
        %v1149 = vrot.slane %v1138, %v1148
        %v1151 = vcombine.high %v1141, %v1141
        %v1153 = vmul.f32 %v1145, %v1141
        %v1154 = vmul.f32 %v1149, %v1151
        %v1157 = vcombine.low %v1153, %v1154
        %v1159 = vadd.f32 %v1133, %v1157
        %s1160 = scalar_lea.vmem [#allocation4], 80
        %v1161 = vld [vmem:[%s1160] sm:$0xff]
        %v1162 = vlaneseq
        %v1163 = vshrl.u32 %v1162, 7
        %v1164 = vsub.s32 1, %v1163
        %v1165 = vrot.slane %v1139, %v1164
        %v1166 = vlaneseq
        %v1167 = vshrl.u32 %v1166, 7
        %v1168 = vsub.s32 1, %v1167
        %v1169 = vrot.slane %v1138, %v1168
        %v1171 = vcombine.high %v1161, %v1161
        %v1173 = vmul.f32 %v1165, %v1161
        %v1174 = vmul.f32 %v1169, %v1171
        %v1177 = vcombine.low %v1173, %v1174
        %v1179 = vadd.f32 %v1159, %v1177
        %s1180 = scalar_lea.vmem [#allocation4], 152
        %v1181 = vld [vmem:[%s1180] sm:$0xff]
        %v1182 = vlaneseq
        %v1183 = vshrl.u32 %v1182, 7
        %v1184 = vsub.s32 2, %v1183
        %v1185 = vrot.slane %v1139, %v1184
        %v1186 = vlaneseq
        %v1187 = vshrl.u32 %v1186, 7
        %v1188 = vsub.s32 2, %v1187
        %v1189 = vrot.slane %v1138, %v1188
        %v1191 = vcombine.high %v1181, %v1181
        %v1193 = vmul.f32 %v1185, %v1181
        %v1194 = vmul.f32 %v1189, %v1191
        %v1197 = vcombine.low %v1193, %v1194
        %v1199 = vadd.f32 %v1179, %v1197
        %s1200 = scalar_lea.vmem [#allocation4], 224
        %v1201 = vld [vmem:[%s1200] sm:$0xff]
        %v1202 = vlaneseq
        %v1203 = vshrl.u32 %v1202, 7
        %v1204 = vsub.s32 3, %v1203
        %v1205 = vrot.slane %v1139, %v1204
        %v1206 = vlaneseq
        %v1207 = vshrl.u32 %v1206, 7
        %v1208 = vsub.s32 3, %v1207
        %v1209 = vrot.slane %v1138, %v1208
        %v1211 = vcombine.high %v1201, %v1201
        %v1213 = vmul.f32 %v1205, %v1201
        %v1214 = vmul.f32 %v1209, %v1211
        %v1217 = vcombine.low %v1213, %v1214
        %v1219 = vadd.f32 %v1199, %v1217
        %s1220 = scalar_lea.vmem [#allocation4], 296
        %v1221 = vld [vmem:[%s1220] sm:$0xff]
        %v1222 = vlaneseq
        %v1223 = vshrl.u32 %v1222, 7
        %v1224 = vsub.s32 4, %v1223
        %v1225 = vrot.slane %v1139, %v1224
        %v1226 = vlaneseq
        %v1227 = vshrl.u32 %v1226, 7
        %v1228 = vsub.s32 4, %v1227
        %v1229 = vrot.slane %v1138, %v1228
        %v1231 = vcombine.high %v1221, %v1221
        %v1233 = vmul.f32 %v1225, %v1221
        %v1234 = vmul.f32 %v1229, %v1231
        %v1237 = vcombine.low %v1233, %v1234
        %v1239 = vadd.f32 %v1219, %v1237
        %s1240 = scalar_lea.vmem [#allocation4], 368
        %v1241 = vld [vmem:[%s1240] sm:$0xff]
        %v1242 = vlaneseq
        %v1243 = vshrl.u32 %v1242, 7
        %v1244 = vsub.s32 5, %v1243
        %v1245 = vrot.slane %v1139, %v1244
        %v1246 = vlaneseq
        %v1247 = vshrl.u32 %v1246, 7
        %v1248 = vsub.s32 5, %v1247
        %v1249 = vrot.slane %v1138, %v1248
        %v1251 = vcombine.high %v1241, %v1241
        %v1253 = vmul.f32 %v1245, %v1241
        %v1254 = vmul.f32 %v1249, %v1251
        %v1257 = vcombine.low %v1253, %v1254
        %v1259 = vadd.f32 %v1239, %v1257
        %s1260 = scalar_lea.vmem [#allocation4], 440
        %v1261 = vld [vmem:[%s1260] sm:$0xff]
        %v1262 = vlaneseq
        %v1263 = vshrl.u32 %v1262, 7
        %v1264 = vsub.s32 6, %v1263
        %v1265 = vrot.slane %v1139, %v1264
        %v1266 = vlaneseq
        %v1267 = vshrl.u32 %v1266, 7
        %v1268 = vsub.s32 6, %v1267
        %v1269 = vrot.slane %v1138, %v1268
        %v1271 = vcombine.high %v1261, %v1261
        %v1273 = vmul.f32 %v1265, %v1261
        %v1274 = vmul.f32 %v1269, %v1271
        %v1277 = vcombine.low %v1273, %v1274
        %v1279 = vadd.f32 %v1259, %v1277
        %s1280 = scalar_lea.vmem [#allocation4], 512
        %v1281 = vld [vmem:[%s1280] sm:$0xff]
        %v1282 = vlaneseq
        %v1283 = vshrl.u32 %v1282, 7
        %v1284 = vsub.s32 7, %v1283
        %v1285 = vrot.slane %v1139, %v1284
        %v1286 = vlaneseq
        %v1287 = vshrl.u32 %v1286, 7
        %v1288 = vsub.s32 7, %v1287
        %v1289 = vrot.slane %v1138, %v1288
        %v1291 = vcombine.high %v1281, %v1281
        %v1293 = vmul.f32 %v1285, %v1281
        %v1294 = vmul.f32 %v1289, %v1291
        %v1297 = vcombine.low %v1293, %v1294
        %v1299 = vadd.f32 %v1279, %v1297
        %1300 = vrot.lane.b32.xlu0 %v966, 15
        %v1301 = vpop.permute.xlu0 %1300
        %1302 = vrot.lane.b32.xlu0 %v967, 15
        %v1303 = vpop.permute.xlu0 %1302
        %v1304 = vsel %vm468, %v1301, %v1303
        %v1305 = vsel %vm468, %v1303, %v1301
        %s1306 = scalar_lea.vmem [#allocation4], 16
        %v1307 = vld [vmem:[%s1306] sm:$0xff]
        %v1308 = vlaneseq
        %v1309 = vshrl.u32 %v1308, 7
        %v1310 = vsub.s32 0, %v1309
        %v1311 = vrot.slane %v1305, %v1310
        %v1312 = vlaneseq
        %v1313 = vshrl.u32 %v1312, 7
        %v1314 = vsub.s32 0, %v1313
        %v1315 = vrot.slane %v1304, %v1314
        %v1317 = vcombine.high %v1307, %v1307
        %v1319 = vmul.f32 %v1311, %v1307
        %v1320 = vmul.f32 %v1315, %v1317
        %v1323 = vcombine.low %v1319, %v1320
        %v1325 = vadd.f32 %v1299, %v1323
        %s1326 = scalar_lea.vmem [#allocation4], 88
        %v1327 = vld [vmem:[%s1326] sm:$0xff]
        %v1328 = vlaneseq
        %v1329 = vshrl.u32 %v1328, 7
        %v1330 = vsub.s32 1, %v1329
        %v1331 = vrot.slane %v1305, %v1330
        %v1332 = vlaneseq
        %v1333 = vshrl.u32 %v1332, 7
        %v1334 = vsub.s32 1, %v1333
        %v1335 = vrot.slane %v1304, %v1334
        %v1337 = vcombine.high %v1327, %v1327
        %v1339 = vmul.f32 %v1331, %v1327
        %v1340 = vmul.f32 %v1335, %v1337
        %v1343 = vcombine.low %v1339, %v1340
        %v1345 = vadd.f32 %v1325, %v1343
        %s1346 = scalar_lea.vmem [#allocation4], 160
        %v1347 = vld [vmem:[%s1346] sm:$0xff]
        %v1348 = vlaneseq
        %v1349 = vshrl.u32 %v1348, 7
        %v1350 = vsub.s32 2, %v1349
        %v1351 = vrot.slane %v1305, %v1350
        %v1352 = vlaneseq
        %v1353 = vshrl.u32 %v1352, 7
        %v1354 = vsub.s32 2, %v1353
        %v1355 = vrot.slane %v1304, %v1354
        %v1357 = vcombine.high %v1347, %v1347
        %v1359 = vmul.f32 %v1351, %v1347
        %v1360 = vmul.f32 %v1355, %v1357
        %v1363 = vcombine.low %v1359, %v1360
        %v1365 = vadd.f32 %v1345, %v1363
        %s1366 = scalar_lea.vmem [#allocation4], 232
        %v1367 = vld [vmem:[%s1366] sm:$0xff]
        %v1368 = vlaneseq
        %v1369 = vshrl.u32 %v1368, 7
        %v1370 = vsub.s32 3, %v1369
        %v1371 = vrot.slane %v1305, %v1370
        %v1372 = vlaneseq
        %v1373 = vshrl.u32 %v1372, 7
        %v1374 = vsub.s32 3, %v1373
        %v1375 = vrot.slane %v1304, %v1374
        %v1377 = vcombine.high %v1367, %v1367
        %v1379 = vmul.f32 %v1371, %v1367
        %v1380 = vmul.f32 %v1375, %v1377
        %v1383 = vcombine.low %v1379, %v1380
        %v1385 = vadd.f32 %v1365, %v1383
        %s1386 = scalar_lea.vmem [#allocation4], 304
        %v1387 = vld [vmem:[%s1386] sm:$0xff]
        %v1388 = vlaneseq
        %v1389 = vshrl.u32 %v1388, 7
        %v1390 = vsub.s32 4, %v1389
        %v1391 = vrot.slane %v1305, %v1390
        %v1392 = vlaneseq
        %v1393 = vshrl.u32 %v1392, 7
        %v1394 = vsub.s32 4, %v1393
        %v1395 = vrot.slane %v1304, %v1394
        %v1397 = vcombine.high %v1387, %v1387
        %v1399 = vmul.f32 %v1391, %v1387
        %v1400 = vmul.f32 %v1395, %v1397
        %v1403 = vcombine.low %v1399, %v1400
        %v1405 = vadd.f32 %v1385, %v1403
        %s1406 = scalar_lea.vmem [#allocation4], 376
        %v1407 = vld [vmem:[%s1406] sm:$0xff]
        %v1408 = vlaneseq
        %v1409 = vshrl.u32 %v1408, 7
        %v1410 = vsub.s32 5, %v1409
        %v1411 = vrot.slane %v1305, %v1410
        %v1412 = vlaneseq
        %v1413 = vshrl.u32 %v1412, 7
        %v1414 = vsub.s32 5, %v1413
        %v1415 = vrot.slane %v1304, %v1414
        %v1417 = vcombine.high %v1407, %v1407
        %v1419 = vmul.f32 %v1411, %v1407
        %v1420 = vmul.f32 %v1415, %v1417
        %v1423 = vcombine.low %v1419, %v1420
        %v1425 = vadd.f32 %v1405, %v1423
        %s1426 = scalar_lea.vmem [#allocation4], 448
        %v1427 = vld [vmem:[%s1426] sm:$0xff]
        %v1428 = vlaneseq
        %v1429 = vshrl.u32 %v1428, 7
        %v1430 = vsub.s32 6, %v1429
        %v1431 = vrot.slane %v1305, %v1430
        %v1432 = vlaneseq
        %v1433 = vshrl.u32 %v1432, 7
        %v1434 = vsub.s32 6, %v1433
        %v1435 = vrot.slane %v1304, %v1434
        %v1437 = vcombine.high %v1427, %v1427
        %v1439 = vmul.f32 %v1431, %v1427
        %v1440 = vmul.f32 %v1435, %v1437
        %v1443 = vcombine.low %v1439, %v1440
        %v1445 = vadd.f32 %v1425, %v1443
        %s1446 = scalar_lea.vmem [#allocation4], 520
        %v1447 = vld [vmem:[%s1446] sm:$0xff]
        %v1448 = vlaneseq
        %v1449 = vshrl.u32 %v1448, 7
        %v1450 = vsub.s32 7, %v1449
        %v1451 = vrot.slane %v1305, %v1450
        %v1452 = vlaneseq
        %v1453 = vshrl.u32 %v1452, 7
        %v1454 = vsub.s32 7, %v1453
        %v1455 = vrot.slane %v1304, %v1454
        %v1457 = vcombine.high %v1447, %v1447
        %v1459 = vmul.f32 %v1451, %v1447
        %v1460 = vmul.f32 %v1455, %v1457
        %v1463 = vcombine.low %v1459, %v1460
        %v1465 = vadd.f32 %v1445, %v1463
        %1466 = vrot.lane.b32.xlu0 %v966, 1
        %v1467 = vpop.permute.xlu0 %1466
        %1468 = vrot.lane.b32.xlu0 %v967, 1
        %v1469 = vpop.permute.xlu0 %1468
        %v1470 = vsel %vm535, %v1467, %v1469
        %v1471 = vsel %vm535, %v1469, %v1467
        %s1472 = scalar_lea.vmem [#allocation4], 24
        %v1473 = vld [vmem:[%s1472] sm:$0xff]
        %v1474 = vlaneseq
        %v1475 = vshrl.u32 %v1474, 7
        %v1476 = vsub.s32 0, %v1475
        %v1477 = vrot.slane %v1471, %v1476
        %v1478 = vlaneseq
        %v1479 = vshrl.u32 %v1478, 7
        %v1480 = vsub.s32 0, %v1479
        %v1481 = vrot.slane %v1470, %v1480
        %v1483 = vcombine.high %v1473, %v1473
        %v1485 = vmul.f32 %v1477, %v1473
        %v1486 = vmul.f32 %v1481, %v1483
        %v1489 = vcombine.low %v1485, %v1486
        %v1491 = vadd.f32 %v1465, %v1489
        %s1492 = scalar_lea.vmem [#allocation4], 96
        %v1493 = vld [vmem:[%s1492] sm:$0xff]
        %v1494 = vlaneseq
        %v1495 = vshrl.u32 %v1494, 7
        %v1496 = vsub.s32 1, %v1495
        %v1497 = vrot.slane %v1471, %v1496
        %v1498 = vlaneseq
        %v1499 = vshrl.u32 %v1498, 7
        %v1500 = vsub.s32 1, %v1499
        %v1501 = vrot.slane %v1470, %v1500
        %v1503 = vcombine.high %v1493, %v1493
        %v1505 = vmul.f32 %v1497, %v1493
        %v1506 = vmul.f32 %v1501, %v1503
        %v1509 = vcombine.low %v1505, %v1506
        %v1511 = vadd.f32 %v1491, %v1509
        %s1512 = scalar_lea.vmem [#allocation4], 168
        %v1513 = vld [vmem:[%s1512] sm:$0xff]
        %v1514 = vlaneseq
        %v1515 = vshrl.u32 %v1514, 7
        %v1516 = vsub.s32 2, %v1515
        %v1517 = vrot.slane %v1471, %v1516
        %v1518 = vlaneseq
        %v1519 = vshrl.u32 %v1518, 7
        %v1520 = vsub.s32 2, %v1519
        %v1521 = vrot.slane %v1470, %v1520
        %v1523 = vcombine.high %v1513, %v1513
        %v1525 = vmul.f32 %v1517, %v1513
        %v1526 = vmul.f32 %v1521, %v1523
        %v1529 = vcombine.low %v1525, %v1526
        %v1531 = vadd.f32 %v1511, %v1529
        %s1532 = scalar_lea.vmem [#allocation4], 240
        %v1533 = vld [vmem:[%s1532] sm:$0xff]
        %v1534 = vlaneseq
        %v1535 = vshrl.u32 %v1534, 7
        %v1536 = vsub.s32 3, %v1535
        %v1537 = vrot.slane %v1471, %v1536
        %v1538 = vlaneseq
        %v1539 = vshrl.u32 %v1538, 7
        %v1540 = vsub.s32 3, %v1539
        %v1541 = vrot.slane %v1470, %v1540
        %v1543 = vcombine.high %v1533, %v1533
        %v1545 = vmul.f32 %v1537, %v1533
        %v1546 = vmul.f32 %v1541, %v1543
        %v1549 = vcombine.low %v1545, %v1546
        %v1551 = vadd.f32 %v1531, %v1549
        %s1552 = scalar_lea.vmem [#allocation4], 312
        %v1553 = vld [vmem:[%s1552] sm:$0xff]
        %v1554 = vlaneseq
        %v1555 = vshrl.u32 %v1554, 7
        %v1556 = vsub.s32 4, %v1555
        %v1557 = vrot.slane %v1471, %v1556
        %v1558 = vlaneseq
        %v1559 = vshrl.u32 %v1558, 7
        %v1560 = vsub.s32 4, %v1559
        %v1561 = vrot.slane %v1470, %v1560
        %v1563 = vcombine.high %v1553, %v1553
        %v1565 = vmul.f32 %v1557, %v1553
        %v1566 = vmul.f32 %v1561, %v1563
        %v1569 = vcombine.low %v1565, %v1566
        %v1571 = vadd.f32 %v1551, %v1569
        %s1572 = scalar_lea.vmem [#allocation4], 384
        %v1573 = vld [vmem:[%s1572] sm:$0xff]
        %v1574 = vlaneseq
        %v1575 = vshrl.u32 %v1574, 7
        %v1576 = vsub.s32 5, %v1575
        %v1577 = vrot.slane %v1471, %v1576
        %v1578 = vlaneseq
        %v1579 = vshrl.u32 %v1578, 7
        %v1580 = vsub.s32 5, %v1579
        %v1581 = vrot.slane %v1470, %v1580
        %v1583 = vcombine.high %v1573, %v1573
        %v1585 = vmul.f32 %v1577, %v1573
        %v1586 = vmul.f32 %v1581, %v1583
        %v1589 = vcombine.low %v1585, %v1586
        %v1591 = vadd.f32 %v1571, %v1589
        %s1592 = scalar_lea.vmem [#allocation4], 456
        %v1593 = vld [vmem:[%s1592] sm:$0xff]
        %v1594 = vlaneseq
        %v1595 = vshrl.u32 %v1594, 7
        %v1596 = vsub.s32 6, %v1595
        %v1597 = vrot.slane %v1471, %v1596
        %v1598 = vlaneseq
        %v1599 = vshrl.u32 %v1598, 7
        %v1600 = vsub.s32 6, %v1599
        %v1601 = vrot.slane %v1470, %v1600
        %v1603 = vcombine.high %v1593, %v1593
        %v1605 = vmul.f32 %v1597, %v1593
        %v1606 = vmul.f32 %v1601, %v1603
        %v1609 = vcombine.low %v1605, %v1606
        %v1611 = vadd.f32 %v1591, %v1609
        %s1612 = scalar_lea.vmem [#allocation4], 528
        %v1613 = vld [vmem:[%s1612] sm:$0xff]
        %v1614 = vlaneseq
        %v1615 = vshrl.u32 %v1614, 7
        %v1616 = vsub.s32 7, %v1615
        %v1617 = vrot.slane %v1471, %v1616
        %v1618 = vlaneseq
        %v1619 = vshrl.u32 %v1618, 7
        %v1620 = vsub.s32 7, %v1619
        %v1621 = vrot.slane %v1470, %v1620
        %v1623 = vcombine.high %v1613, %v1613
        %v1625 = vmul.f32 %v1617, %v1613
        %v1626 = vmul.f32 %v1621, %v1623
        %v1629 = vcombine.low %v1625, %v1626
        %v1631 = vadd.f32 %v1611, %v1629
        %s1632 = scalar_lea.vmem [#allocation4], 32
        %v1633 = vld [vmem:[%s1632] sm:$0xff]
        %v1634 = vlaneseq
        %v1635 = vshrl.u32 %v1634, 7
        %v1636 = vsub.s32 0, %v1635
        %v1637 = vrot.slane %v966, %v1636
        %v1638 = vlaneseq
        %v1639 = vshrl.u32 %v1638, 7
        %v1640 = vsub.s32 0, %v1639
        %v1641 = vrot.slane %v967, %v1640
        %v1643 = vcombine.high %v1633, %v1633
        %v1645 = vmul.f32 %v1637, %v1633
        %v1646 = vmul.f32 %v1641, %v1643
        %v1649 = vcombine.low %v1645, %v1646
        %v1651 = vadd.f32 %v1631, %v1649
        %s1652 = scalar_lea.vmem [#allocation4], 104
        %v1653 = vld [vmem:[%s1652] sm:$0xff]
        %v1654 = vlaneseq
        %v1655 = vshrl.u32 %v1654, 7
        %v1656 = vsub.s32 1, %v1655
        %v1657 = vrot.slane %v966, %v1656
        %v1658 = vlaneseq
        %v1659 = vshrl.u32 %v1658, 7
        %v1660 = vsub.s32 1, %v1659
        %v1661 = vrot.slane %v967, %v1660
        %v1663 = vcombine.high %v1653, %v1653
        %v1665 = vmul.f32 %v1657, %v1653
        %v1666 = vmul.f32 %v1661, %v1663
        %v1669 = vcombine.low %v1665, %v1666
        %v1671 = vadd.f32 %v1651, %v1669
        %s1672 = scalar_lea.vmem [#allocation4], 176
        %v1673 = vld [vmem:[%s1672] sm:$0xff]
        %v1674 = vlaneseq
        %v1675 = vshrl.u32 %v1674, 7
        %v1676 = vsub.s32 2, %v1675
        %v1677 = vrot.slane %v966, %v1676
        %v1678 = vlaneseq
        %v1679 = vshrl.u32 %v1678, 7
        %v1680 = vsub.s32 2, %v1679
        %v1681 = vrot.slane %v967, %v1680
        %v1683 = vcombine.high %v1673, %v1673
        %v1685 = vmul.f32 %v1677, %v1673
        %v1686 = vmul.f32 %v1681, %v1683
        %v1689 = vcombine.low %v1685, %v1686
        %v1691 = vadd.f32 %v1671, %v1689
        %s1692 = scalar_lea.vmem [#allocation4], 248
        %v1693 = vld [vmem:[%s1692] sm:$0xff]
        %v1694 = vlaneseq
        %v1695 = vshrl.u32 %v1694, 7
        %v1696 = vsub.s32 3, %v1695
        %v1697 = vrot.slane %v966, %v1696
        %v1698 = vlaneseq
        %v1699 = vshrl.u32 %v1698, 7
        %v1700 = vsub.s32 3, %v1699
        %v1701 = vrot.slane %v967, %v1700
        %v1703 = vcombine.high %v1693, %v1693
        %v1705 = vmul.f32 %v1697, %v1693
        %v1706 = vmul.f32 %v1701, %v1703
        %v1709 = vcombine.low %v1705, %v1706
        %v1711 = vadd.f32 %v1691, %v1709
        %s1712 = scalar_lea.vmem [#allocation4], 320
        %v1713 = vld [vmem:[%s1712] sm:$0xff]
        %v1714 = vlaneseq
        %v1715 = vshrl.u32 %v1714, 7
        %v1716 = vsub.s32 4, %v1715
        %v1717 = vrot.slane %v966, %v1716
        %v1718 = vlaneseq
        %v1719 = vshrl.u32 %v1718, 7
        %v1720 = vsub.s32 4, %v1719
        %v1721 = vrot.slane %v967, %v1720
        %v1723 = vcombine.high %v1713, %v1713
        %v1725 = vmul.f32 %v1717, %v1713
        %v1726 = vmul.f32 %v1721, %v1723
        %v1729 = vcombine.low %v1725, %v1726
        %v1731 = vadd.f32 %v1711, %v1729
        %s1732 = scalar_lea.vmem [#allocation4], 392
        %v1733 = vld [vmem:[%s1732] sm:$0xff]
        %v1734 = vlaneseq
        %v1735 = vshrl.u32 %v1734, 7
        %v1736 = vsub.s32 5, %v1735
        %v1737 = vrot.slane %v966, %v1736
        %v1738 = vlaneseq
        %v1739 = vshrl.u32 %v1738, 7
        %v1740 = vsub.s32 5, %v1739
        %v1741 = vrot.slane %v967, %v1740
        %v1743 = vcombine.high %v1733, %v1733
        %v1745 = vmul.f32 %v1737, %v1733
        %v1746 = vmul.f32 %v1741, %v1743
        %v1749 = vcombine.low %v1745, %v1746
        %v1751 = vadd.f32 %v1731, %v1749
        %s1752 = scalar_lea.vmem [#allocation4], 464
        %v1753 = vld [vmem:[%s1752] sm:$0xff]
        %v1754 = vlaneseq
        %v1755 = vshrl.u32 %v1754, 7
        %v1756 = vsub.s32 6, %v1755
        %v1757 = vrot.slane %v966, %v1756
        %v1758 = vlaneseq
        %v1759 = vshrl.u32 %v1758, 7
        %v1760 = vsub.s32 6, %v1759
        %v1761 = vrot.slane %v967, %v1760
        %v1763 = vcombine.high %v1753, %v1753
        %v1765 = vmul.f32 %v1757, %v1753
        %v1766 = vmul.f32 %v1761, %v1763
        %v1769 = vcombine.low %v1765, %v1766
        %v1771 = vadd.f32 %v1751, %v1769
        %s1772 = scalar_lea.vmem [#allocation4], 536
        %v1773 = vld [vmem:[%s1772] sm:$0xff]
        %v1774 = vlaneseq
        %v1775 = vshrl.u32 %v1774, 7
        %v1776 = vsub.s32 7, %v1775
        %v1777 = vrot.slane %v966, %v1776
        %v1778 = vlaneseq
        %v1779 = vshrl.u32 %v1778, 7
        %v1780 = vsub.s32 7, %v1779
        %v1781 = vrot.slane %v967, %v1780
        %v1783 = vcombine.high %v1773, %v1773
        %v1785 = vmul.f32 %v1777, %v1773
        %v1786 = vmul.f32 %v1781, %v1783
        %v1789 = vcombine.low %v1785, %v1786
        %v1791 = vadd.f32 %v1771, %v1789
        %1792 = vrot.lane.b32.xlu0 %v966, 127
        %v1793 = vpop.permute.xlu0 %1792
        %1794 = vrot.lane.b32.xlu0 %v967, 127
        %v1795 = vpop.permute.xlu0 %1794
        %v1796 = vsel %vm702, %v1793, %v1795
        %v1797 = vsel %vm702, %v1795, %v1793
        %s1798 = scalar_lea.vmem [#allocation4], 40
        %v1799 = vld [vmem:[%s1798] sm:$0xff]
        %v1800 = vlaneseq
        %v1801 = vshrl.u32 %v1800, 7
        %v1802 = vsub.s32 0, %v1801
        %v1803 = vrot.slane %v1796, %v1802
        %v1804 = vlaneseq
        %v1805 = vshrl.u32 %v1804, 7
        %v1806 = vsub.s32 0, %v1805
        %v1807 = vrot.slane %v1797, %v1806
        %v1809 = vcombine.high %v1799, %v1799
        %v1811 = vmul.f32 %v1803, %v1799
        %v1812 = vmul.f32 %v1807, %v1809
        %v1815 = vcombine.low %v1811, %v1812
        %v1817 = vadd.f32 %v1791, %v1815
        %s1818 = scalar_lea.vmem [#allocation4], 112
        %v1819 = vld [vmem:[%s1818] sm:$0xff]
        %v1820 = vlaneseq
        %v1821 = vshrl.u32 %v1820, 7
        %v1822 = vsub.s32 1, %v1821
        %v1823 = vrot.slane %v1796, %v1822
        %v1824 = vlaneseq
        %v1825 = vshrl.u32 %v1824, 7
        %v1826 = vsub.s32 1, %v1825
        %v1827 = vrot.slane %v1797, %v1826
        %v1829 = vcombine.high %v1819, %v1819
        %v1831 = vmul.f32 %v1823, %v1819
        %v1832 = vmul.f32 %v1827, %v1829
        %v1835 = vcombine.low %v1831, %v1832
        %v1837 = vadd.f32 %v1817, %v1835
        %s1838 = scalar_lea.vmem [#allocation4], 184
        %v1839 = vld [vmem:[%s1838] sm:$0xff]
        %v1840 = vlaneseq
        %v1841 = vshrl.u32 %v1840, 7
        %v1842 = vsub.s32 2, %v1841
        %v1843 = vrot.slane %v1796, %v1842
        %v1844 = vlaneseq
        %v1845 = vshrl.u32 %v1844, 7
        %v1846 = vsub.s32 2, %v1845
        %v1847 = vrot.slane %v1797, %v1846
        %v1849 = vcombine.high %v1839, %v1839
        %v1851 = vmul.f32 %v1843, %v1839
        %v1852 = vmul.f32 %v1847, %v1849
        %v1855 = vcombine.low %v1851, %v1852
        %v1857 = vadd.f32 %v1837, %v1855
        %s1858 = scalar_lea.vmem [#allocation4], 256
        %v1859 = vld [vmem:[%s1858] sm:$0xff]
        %v1860 = vlaneseq
        %v1861 = vshrl.u32 %v1860, 7
        %v1862 = vsub.s32 3, %v1861
        %v1863 = vrot.slane %v1796, %v1862
        %v1864 = vlaneseq
        %v1865 = vshrl.u32 %v1864, 7
        %v1866 = vsub.s32 3, %v1865
        %v1867 = vrot.slane %v1797, %v1866
        %v1869 = vcombine.high %v1859, %v1859
        %v1871 = vmul.f32 %v1863, %v1859
        %v1872 = vmul.f32 %v1867, %v1869
        %v1875 = vcombine.low %v1871, %v1872
        %v1877 = vadd.f32 %v1857, %v1875
        %s1878 = scalar_lea.vmem [#allocation4], 328
        %v1879 = vld [vmem:[%s1878] sm:$0xff]
        %v1880 = vlaneseq
        %v1881 = vshrl.u32 %v1880, 7
        %v1882 = vsub.s32 4, %v1881
        %v1883 = vrot.slane %v1796, %v1882
        %v1884 = vlaneseq
        %v1885 = vshrl.u32 %v1884, 7
        %v1886 = vsub.s32 4, %v1885
        %v1887 = vrot.slane %v1797, %v1886
        %v1889 = vcombine.high %v1879, %v1879
        %v1891 = vmul.f32 %v1883, %v1879
        %v1892 = vmul.f32 %v1887, %v1889
        %v1895 = vcombine.low %v1891, %v1892
        %v1897 = vadd.f32 %v1877, %v1895
        %s1898 = scalar_lea.vmem [#allocation4], 400
        %v1899 = vld [vmem:[%s1898] sm:$0xff]
        %v1900 = vlaneseq
        %v1901 = vshrl.u32 %v1900, 7
        %v1902 = vsub.s32 5, %v1901
        %v1903 = vrot.slane %v1796, %v1902
        %v1904 = vlaneseq
        %v1905 = vshrl.u32 %v1904, 7
        %v1906 = vsub.s32 5, %v1905
        %v1907 = vrot.slane %v1797, %v1906
        %v1909 = vcombine.high %v1899, %v1899
        %v1911 = vmul.f32 %v1903, %v1899
        %v1912 = vmul.f32 %v1907, %v1909
        %v1915 = vcombine.low %v1911, %v1912
        %v1917 = vadd.f32 %v1897, %v1915
        %s1918 = scalar_lea.vmem [#allocation4], 472
        %v1919 = vld [vmem:[%s1918] sm:$0xff]
        %v1920 = vlaneseq
        %v1921 = vshrl.u32 %v1920, 7
        %v1922 = vsub.s32 6, %v1921
        %v1923 = vrot.slane %v1796, %v1922
        %v1924 = vlaneseq
        %v1925 = vshrl.u32 %v1924, 7
        %v1926 = vsub.s32 6, %v1925
        %v1927 = vrot.slane %v1797, %v1926
        %v1929 = vcombine.high %v1919, %v1919
        %v1931 = vmul.f32 %v1923, %v1919
        %v1932 = vmul.f32 %v1927, %v1929
        %v1935 = vcombine.low %v1931, %v1932
        %v1937 = vadd.f32 %v1917, %v1935
        %s1938 = scalar_lea.vmem [#allocation4], 544
        %v1939 = vld [vmem:[%s1938] sm:$0xff]
        %v1940 = vlaneseq
        %v1941 = vshrl.u32 %v1940, 7
        %v1942 = vsub.s32 7, %v1941
        %v1943 = vrot.slane %v1796, %v1942
        %v1944 = vlaneseq
        %v1945 = vshrl.u32 %v1944, 7
        %v1946 = vsub.s32 7, %v1945
        %v1947 = vrot.slane %v1797, %v1946
        %v1949 = vcombine.high %v1939, %v1939
        %v1951 = vmul.f32 %v1943, %v1939
        %v1952 = vmul.f32 %v1947, %v1949
        %v1955 = vcombine.low %v1951, %v1952
        %v1957 = vadd.f32 %v1937, %v1955
        %1958 = vrot.lane.b32.xlu0 %v966, 113
        %v1959 = vpop.permute.xlu0 %1958
        %1960 = vrot.lane.b32.xlu0 %v967, 113
        %v1961 = vpop.permute.xlu0 %1960
        %v1962 = vsel %vm769, %v1959, %v1961
        %v1963 = vsel %vm769, %v1961, %v1959
        %s1964 = scalar_lea.vmem [#allocation4], 48
        %v1965 = vld [vmem:[%s1964] sm:$0xff]
        %v1966 = vlaneseq
        %v1967 = vshrl.u32 %v1966, 7
        %v1968 = vsub.s32 0, %v1967
        %v1969 = vrot.slane %v1962, %v1968
        %v1970 = vlaneseq
        %v1971 = vshrl.u32 %v1970, 7
        %v1972 = vsub.s32 0, %v1971
        %v1973 = vrot.slane %v1963, %v1972
        %v1975 = vcombine.high %v1965, %v1965
        %v1977 = vmul.f32 %v1969, %v1965
        %v1978 = vmul.f32 %v1973, %v1975
        %v1981 = vcombine.low %v1977, %v1978
        %v1983 = vadd.f32 %v1957, %v1981
        %s1984 = scalar_lea.vmem [#allocation4], 120
        %v1985 = vld [vmem:[%s1984] sm:$0xff]
        %v1986 = vlaneseq
        %v1987 = vshrl.u32 %v1986, 7
        %v1988 = vsub.s32 1, %v1987
        %v1989 = vrot.slane %v1962, %v1988
        %v1990 = vlaneseq
        %v1991 = vshrl.u32 %v1990, 7
        %v1992 = vsub.s32 1, %v1991
        %v1993 = vrot.slane %v1963, %v1992
        %v1995 = vcombine.high %v1985, %v1985
        %v1997 = vmul.f32 %v1989, %v1985
        %v1998 = vmul.f32 %v1993, %v1995
        %v2001 = vcombine.low %v1997, %v1998
        %v2003 = vadd.f32 %v1983, %v2001
        %s2004 = scalar_lea.vmem [#allocation4], 192
        %v2005 = vld [vmem:[%s2004] sm:$0xff]
        %v2006 = vlaneseq
        %v2007 = vshrl.u32 %v2006, 7
        %v2008 = vsub.s32 2, %v2007
        %v2009 = vrot.slane %v1962, %v2008
        %v2010 = vlaneseq
        %v2011 = vshrl.u32 %v2010, 7
        %v2012 = vsub.s32 2, %v2011
        %v2013 = vrot.slane %v1963, %v2012
        %v2015 = vcombine.high %v2005, %v2005
        %v2017 = vmul.f32 %v2009, %v2005
        %v2018 = vmul.f32 %v2013, %v2015
        %v2021 = vcombine.low %v2017, %v2018
        %v2023 = vadd.f32 %v2003, %v2021
        %s2024 = scalar_lea.vmem [#allocation4], 264
        %v2025 = vld [vmem:[%s2024] sm:$0xff]
        %v2026 = vlaneseq
        %v2027 = vshrl.u32 %v2026, 7
        %v2028 = vsub.s32 3, %v2027
        %v2029 = vrot.slane %v1962, %v2028
        %v2030 = vlaneseq
        %v2031 = vshrl.u32 %v2030, 7
        %v2032 = vsub.s32 3, %v2031
        %v2033 = vrot.slane %v1963, %v2032
        %v2035 = vcombine.high %v2025, %v2025
        %v2037 = vmul.f32 %v2029, %v2025
        %v2038 = vmul.f32 %v2033, %v2035
        %v2041 = vcombine.low %v2037, %v2038
        %v2043 = vadd.f32 %v2023, %v2041
        %s2044 = scalar_lea.vmem [#allocation4], 336
        %v2045 = vld [vmem:[%s2044] sm:$0xff]
        %v2046 = vlaneseq
        %v2047 = vshrl.u32 %v2046, 7
        %v2048 = vsub.s32 4, %v2047
        %v2049 = vrot.slane %v1962, %v2048
        %v2050 = vlaneseq
        %v2051 = vshrl.u32 %v2050, 7
        %v2052 = vsub.s32 4, %v2051
        %v2053 = vrot.slane %v1963, %v2052
        %v2055 = vcombine.high %v2045, %v2045
        %v2057 = vmul.f32 %v2049, %v2045
        %v2058 = vmul.f32 %v2053, %v2055
        %v2061 = vcombine.low %v2057, %v2058
        %v2063 = vadd.f32 %v2043, %v2061
        %s2064 = scalar_lea.vmem [#allocation4], 408
        %v2065 = vld [vmem:[%s2064] sm:$0xff]
        %v2066 = vlaneseq
        %v2067 = vshrl.u32 %v2066, 7
        %v2068 = vsub.s32 5, %v2067
        %v2069 = vrot.slane %v1962, %v2068
        %v2070 = vlaneseq
        %v2071 = vshrl.u32 %v2070, 7
        %v2072 = vsub.s32 5, %v2071
        %v2073 = vrot.slane %v1963, %v2072
        %v2075 = vcombine.high %v2065, %v2065
        %v2077 = vmul.f32 %v2069, %v2065
        %v2078 = vmul.f32 %v2073, %v2075
        %v2081 = vcombine.low %v2077, %v2078
        %v2083 = vadd.f32 %v2063, %v2081
        %s2084 = scalar_lea.vmem [#allocation4], 480
        %v2085 = vld [vmem:[%s2084] sm:$0xff]
        %v2086 = vlaneseq
        %v2087 = vshrl.u32 %v2086, 7
        %v2088 = vsub.s32 6, %v2087
        %v2089 = vrot.slane %v1962, %v2088
        %v2090 = vlaneseq
        %v2091 = vshrl.u32 %v2090, 7
        %v2092 = vsub.s32 6, %v2091
        %v2093 = vrot.slane %v1963, %v2092
        %v2095 = vcombine.high %v2085, %v2085
        %v2097 = vmul.f32 %v2089, %v2085
        %v2098 = vmul.f32 %v2093, %v2095
        %v2101 = vcombine.low %v2097, %v2098
        %v2103 = vadd.f32 %v2083, %v2101
        %s2104 = scalar_lea.vmem [#allocation4], 552
        %v2105 = vld [vmem:[%s2104] sm:$0xff]
        %v2106 = vlaneseq
        %v2107 = vshrl.u32 %v2106, 7
        %v2108 = vsub.s32 7, %v2107
        %v2109 = vrot.slane %v1962, %v2108
        %v2110 = vlaneseq
        %v2111 = vshrl.u32 %v2110, 7
        %v2112 = vsub.s32 7, %v2111
        %v2113 = vrot.slane %v1963, %v2112
        %v2115 = vcombine.high %v2105, %v2105
        %v2117 = vmul.f32 %v2109, %v2105
        %v2118 = vmul.f32 %v2113, %v2115
        %v2121 = vcombine.low %v2117, %v2118
        %v2123 = vadd.f32 %v2103, %v2121
        %2124 = vrot.lane.b32.xlu0 %v966, 112
        %v2125 = vpop.permute.xlu0 %2124
        %2126 = vrot.lane.b32.xlu0 %v967, 112
        %v2127 = vpop.permute.xlu0 %2126
        %v2128 = vsel %vm836, %v2125, %v2127
        %v2129 = vsel %vm836, %v2127, %v2125
        %s2130 = scalar_lea.vmem [#allocation4], 56
        %v2131 = vld [vmem:[%s2130] sm:$0xff]
        %v2132 = vlaneseq
        %v2133 = vshrl.u32 %v2132, 7
        %v2134 = vsub.s32 0, %v2133
        %v2135 = vrot.slane %v2128, %v2134
        %v2136 = vlaneseq
        %v2137 = vshrl.u32 %v2136, 7
        %v2138 = vsub.s32 0, %v2137
        %v2139 = vrot.slane %v2129, %v2138
        %v2141 = vcombine.high %v2131, %v2131
        %v2143 = vmul.f32 %v2135, %v2131
        %v2144 = vmul.f32 %v2139, %v2141
        %v2147 = vcombine.low %v2143, %v2144
        %v2149 = vadd.f32 %v2123, %v2147
        %s2150 = scalar_lea.vmem [#allocation4], 128
        %v2151 = vld [vmem:[%s2150] sm:$0xff]
        %v2152 = vlaneseq
        %v2153 = vshrl.u32 %v2152, 7
        %v2154 = vsub.s32 1, %v2153
        %v2155 = vrot.slane %v2128, %v2154
        %v2156 = vlaneseq
        %v2157 = vshrl.u32 %v2156, 7
        %v2158 = vsub.s32 1, %v2157
        %v2159 = vrot.slane %v2129, %v2158
        %v2161 = vcombine.high %v2151, %v2151
        %v2163 = vmul.f32 %v2155, %v2151
        %v2164 = vmul.f32 %v2159, %v2161
        %v2167 = vcombine.low %v2163, %v2164
        %v2169 = vadd.f32 %v2149, %v2167
        %s2170 = scalar_lea.vmem [#allocation4], 200
        %v2171 = vld [vmem:[%s2170] sm:$0xff]
        %v2172 = vlaneseq
        %v2173 = vshrl.u32 %v2172, 7
        %v2174 = vsub.s32 2, %v2173
        %v2175 = vrot.slane %v2128, %v2174
        %v2176 = vlaneseq
        %v2177 = vshrl.u32 %v2176, 7
        %v2178 = vsub.s32 2, %v2177
        %v2179 = vrot.slane %v2129, %v2178
        %v2181 = vcombine.high %v2171, %v2171
        %v2183 = vmul.f32 %v2175, %v2171
        %v2184 = vmul.f32 %v2179, %v2181
        %v2187 = vcombine.low %v2183, %v2184
        %v2189 = vadd.f32 %v2169, %v2187
        %s2190 = scalar_lea.vmem [#allocation4], 272
        %v2191 = vld [vmem:[%s2190] sm:$0xff]
        %v2192 = vlaneseq
        %v2193 = vshrl.u32 %v2192, 7
        %v2194 = vsub.s32 3, %v2193
        %v2195 = vrot.slane %v2128, %v2194
        %v2196 = vlaneseq
        %v2197 = vshrl.u32 %v2196, 7
        %v2198 = vsub.s32 3, %v2197
        %v2199 = vrot.slane %v2129, %v2198
        %v2201 = vcombine.high %v2191, %v2191
        %v2203 = vmul.f32 %v2195, %v2191
        %v2204 = vmul.f32 %v2199, %v2201
        %v2207 = vcombine.low %v2203, %v2204
        %v2209 = vadd.f32 %v2189, %v2207
        %s2210 = scalar_lea.vmem [#allocation4], 344
        %v2211 = vld [vmem:[%s2210] sm:$0xff]
        %v2212 = vlaneseq
        %v2213 = vshrl.u32 %v2212, 7
        %v2214 = vsub.s32 4, %v2213
        %v2215 = vrot.slane %v2128, %v2214
        %v2216 = vlaneseq
        %v2217 = vshrl.u32 %v2216, 7
        %v2218 = vsub.s32 4, %v2217
        %v2219 = vrot.slane %v2129, %v2218
        %v2221 = vcombine.high %v2211, %v2211
        %v2223 = vmul.f32 %v2215, %v2211
        %v2224 = vmul.f32 %v2219, %v2221
        %v2227 = vcombine.low %v2223, %v2224
        %v2229 = vadd.f32 %v2209, %v2227
        %s2230 = scalar_lea.vmem [#allocation4], 416
        %v2231 = vld [vmem:[%s2230] sm:$0xff]
        %v2232 = vlaneseq
        %v2233 = vshrl.u32 %v2232, 7
        %v2234 = vsub.s32 5, %v2233
        %v2235 = vrot.slane %v2128, %v2234
        %v2236 = vlaneseq
        %v2237 = vshrl.u32 %v2236, 7
        %v2238 = vsub.s32 5, %v2237
        %v2239 = vrot.slane %v2129, %v2238
        %v2241 = vcombine.high %v2231, %v2231
        %v2243 = vmul.f32 %v2235, %v2231
        %v2244 = vmul.f32 %v2239, %v2241
        %v2247 = vcombine.low %v2243, %v2244
        %v2249 = vadd.f32 %v2229, %v2247
        %s2250 = scalar_lea.vmem [#allocation4], 488
        %v2251 = vld [vmem:[%s2250] sm:$0xff]
        %v2252 = vlaneseq
        %v2253 = vshrl.u32 %v2252, 7
        %v2254 = vsub.s32 6, %v2253
        %v2255 = vrot.slane %v2128, %v2254
        %v2256 = vlaneseq
        %v2257 = vshrl.u32 %v2256, 7
        %v2258 = vsub.s32 6, %v2257
        %v2259 = vrot.slane %v2129, %v2258
        %v2261 = vcombine.high %v2251, %v2251
        %v2263 = vmul.f32 %v2255, %v2251
        %v2264 = vmul.f32 %v2259, %v2261
        %v2267 = vcombine.low %v2263, %v2264
        %v2269 = vadd.f32 %v2249, %v2267
        %s2270 = scalar_lea.vmem [#allocation4], 560
        %v2271 = vld [vmem:[%s2270] sm:$0xff]
        %v2272 = vlaneseq
        %v2273 = vshrl.u32 %v2272, 7
        %v2274 = vsub.s32 7, %v2273
        %v2275 = vrot.slane %v2128, %v2274
        %v2276 = vlaneseq
        %v2277 = vshrl.u32 %v2276, 7
        %v2278 = vsub.s32 7, %v2277
        %v2279 = vrot.slane %v2129, %v2278
        %v2281 = vcombine.high %v2271, %v2271
        %v2283 = vmul.f32 %v2275, %v2271
        %v2284 = vmul.f32 %v2279, %v2281
        %v2287 = vcombine.low %v2283, %v2284
        %v2289 = vadd.f32 %v2269, %v2287
        %2290 = vrot.lane.b32.xlu0 %v966, 111
        %v2291 = vpop.permute.xlu0 %2290
        %2292 = vrot.lane.b32.xlu0 %v967, 111
        %v2293 = vpop.permute.xlu0 %2292
        %v2294 = vsel %vm903, %v2291, %v2293
        %v2295 = vsel %vm903, %v2293, %v2291
        %s2296 = scalar_lea.vmem [#allocation4], 64
        %v2297 = vld [vmem:[%s2296] sm:$0xff]
        %v2298 = vlaneseq
        %v2299 = vshrl.u32 %v2298, 7
        %v2300 = vsub.s32 0, %v2299
        %v2301 = vrot.slane %v2294, %v2300
        %v2302 = vlaneseq
        %v2303 = vshrl.u32 %v2302, 7
        %v2304 = vsub.s32 0, %v2303
        %v2305 = vrot.slane %v2295, %v2304
        %v2307 = vcombine.high %v2297, %v2297
        %v2309 = vmul.f32 %v2301, %v2297
        %v2310 = vmul.f32 %v2305, %v2307
        %v2313 = vcombine.low %v2309, %v2310
        %v2315 = vadd.f32 %v2289, %v2313
        %s2316 = scalar_lea.vmem [#allocation4], 136
        %v2317 = vld [vmem:[%s2316] sm:$0xff]
        %v2318 = vlaneseq
        %v2319 = vshrl.u32 %v2318, 7
        %v2320 = vsub.s32 1, %v2319
        %v2321 = vrot.slane %v2294, %v2320
        %v2322 = vlaneseq
        %v2323 = vshrl.u32 %v2322, 7
        %v2324 = vsub.s32 1, %v2323
        %v2325 = vrot.slane %v2295, %v2324
        %v2327 = vcombine.high %v2317, %v2317
        %v2329 = vmul.f32 %v2321, %v2317
        %v2330 = vmul.f32 %v2325, %v2327
        %v2333 = vcombine.low %v2329, %v2330
        %v2335 = vadd.f32 %v2315, %v2333
        %s2336 = scalar_lea.vmem [#allocation4], 208
        %v2337 = vld [vmem:[%s2336] sm:$0xff]
        %v2338 = vlaneseq
        %v2339 = vshrl.u32 %v2338, 7
        %v2340 = vsub.s32 2, %v2339
        %v2341 = vrot.slane %v2294, %v2340
        %v2342 = vlaneseq
        %v2343 = vshrl.u32 %v2342, 7
        %v2344 = vsub.s32 2, %v2343
        %v2345 = vrot.slane %v2295, %v2344
        %v2347 = vcombine.high %v2337, %v2337
        %v2349 = vmul.f32 %v2341, %v2337
        %v2350 = vmul.f32 %v2345, %v2347
        %v2353 = vcombine.low %v2349, %v2350
        %v2355 = vadd.f32 %v2335, %v2353
        %s2356 = scalar_lea.vmem [#allocation4], 280
        %v2357 = vld [vmem:[%s2356] sm:$0xff]
        %v2358 = vlaneseq
        %v2359 = vshrl.u32 %v2358, 7
        %v2360 = vsub.s32 3, %v2359
        %v2361 = vrot.slane %v2294, %v2360
        %v2362 = vlaneseq
        %v2363 = vshrl.u32 %v2362, 7
        %v2364 = vsub.s32 3, %v2363
        %v2365 = vrot.slane %v2295, %v2364
        %v2367 = vcombine.high %v2357, %v2357
        %v2369 = vmul.f32 %v2361, %v2357
        %v2370 = vmul.f32 %v2365, %v2367
        %v2373 = vcombine.low %v2369, %v2370
        %v2375 = vadd.f32 %v2355, %v2373
        %s2376 = scalar_lea.vmem [#allocation4], 352
        %v2377 = vld [vmem:[%s2376] sm:$0xff]
        %v2378 = vlaneseq
        %v2379 = vshrl.u32 %v2378, 7
        %v2380 = vsub.s32 4, %v2379
        %v2381 = vrot.slane %v2294, %v2380
        %v2382 = vlaneseq
        %v2383 = vshrl.u32 %v2382, 7
        %v2384 = vsub.s32 4, %v2383
        %v2385 = vrot.slane %v2295, %v2384
        %v2387 = vcombine.high %v2377, %v2377
        %v2389 = vmul.f32 %v2381, %v2377
        %v2390 = vmul.f32 %v2385, %v2387
        %v2393 = vcombine.low %v2389, %v2390
        %v2395 = vadd.f32 %v2375, %v2393
        %s2396 = scalar_lea.vmem [#allocation4], 424
        %v2397 = vld [vmem:[%s2396] sm:$0xff]
        %v2398 = vlaneseq
        %v2399 = vshrl.u32 %v2398, 7
        %v2400 = vsub.s32 5, %v2399
        %v2401 = vrot.slane %v2294, %v2400
        %v2402 = vlaneseq
        %v2403 = vshrl.u32 %v2402, 7
        %v2404 = vsub.s32 5, %v2403
        %v2405 = vrot.slane %v2295, %v2404
        %v2407 = vcombine.high %v2397, %v2397
        %v2409 = vmul.f32 %v2401, %v2397
        %v2410 = vmul.f32 %v2405, %v2407
        %v2413 = vcombine.low %v2409, %v2410
        %v2415 = vadd.f32 %v2395, %v2413
        %s2416 = scalar_lea.vmem [#allocation4], 496
        %v2417 = vld [vmem:[%s2416] sm:$0xff]
        %v2418 = vlaneseq
        %v2419 = vshrl.u32 %v2418, 7
        %v2420 = vsub.s32 6, %v2419
        %v2421 = vrot.slane %v2294, %v2420
        %v2422 = vlaneseq
        %v2423 = vshrl.u32 %v2422, 7
        %v2424 = vsub.s32 6, %v2423
        %v2425 = vrot.slane %v2295, %v2424
        %v2427 = vcombine.high %v2417, %v2417
        %v2429 = vmul.f32 %v2421, %v2417
        %v2430 = vmul.f32 %v2425, %v2427
        %v2433 = vcombine.low %v2429, %v2430
        %v2435 = vadd.f32 %v2415, %v2433
        %s2436 = scalar_lea.vmem [#allocation4], 568
        %v2437 = vld [vmem:[%s2436] sm:$0xff]
        %v2438 = vlaneseq
        %v2439 = vshrl.u32 %v2438, 7
        %v2440 = vsub.s32 7, %v2439
        %v2441 = vrot.slane %v2294, %v2440
        %v2442 = vlaneseq
        %v2443 = vshrl.u32 %v2442, 7
        %v2444 = vsub.s32 7, %v2443
        %v2445 = vrot.slane %v2295, %v2444
        %v2447 = vcombine.high %v2437, %v2437
        %v2449 = vmul.f32 %v2441, %v2437
        %v2450 = vmul.f32 %v2445, %v2447
        %v2453 = vcombine.low %v2449, %v2450
        %v2455 = vadd.f32 %v2435, %v2453
        %v2456 = vmax.f32 %v2455, 0.0
        %v2457 = vld [vmem:[#allocation6] sm:$0xff]
        %v2458 = vld [vmem:[#allocation6 + $0x8] sm:$0xff]
        %v2459 = vld [vmem:[#allocation6 + $0x10] sm:$0xff]
        %v2460 = vld [vmem:[#allocation6 + $0x18] sm:$0xff]
        %v2461 = vld [vmem:[#allocation6 + $0x20] sm:$0xff]
        %v2462 = vld [vmem:[#allocation6 + $0x28] sm:$0xff]
        %v2463 = vld [vmem:[#allocation6 + $0x30] sm:$0xff]
        %v2464 = vld [vmem:[#allocation6 + $0x38] sm:$0xff]
        %v2465 = vld [vmem:[#allocation6 + $0x40] sm:$0xff]
        %v2466 = vld [vmem:[#allocation6 + $0x48] sm:$0xff]
        %v2467 = vld [vmem:[#allocation6 + $0x50] sm:$0xff]
        %v2468 = vld [vmem:[#allocation6 + $0x58] sm:$0xff]
        %v2469 = vld [vmem:[#allocation6 + $0x60] sm:$0xff]
        %v2470 = vld [vmem:[#allocation6 + $0x68] sm:$0xff]
        %v2471 = vld [vmem:[#allocation6 + $0x70] sm:$0xff]
        %v2472 = vld [vmem:[#allocation6 + $0x78] sm:$0xff]
        %v2473 = vld [vmem:[#allocation6 + $0x80] sm:$0xff]
        %v2474 = vld [vmem:[#allocation6 + $0x88] sm:$0xff]
        %v2475 = vld [vmem:[#allocation6 + $0x90] sm:$0xff]
        %v2476 = vld [vmem:[#allocation6 + $0x98] sm:$0xff]
        %v2477 = vld [vmem:[#allocation6 + $0xa0] sm:$0xff]
        %v2478 = vld [vmem:[#allocation6 + $0xa8] sm:$0xff]
        %v2479 = vld [vmem:[#allocation6 + $0xb0] sm:$0xff]
        %v2480 = vld [vmem:[#allocation6 + $0xb8] sm:$0xff]
        %v2481 = vld [vmem:[#allocation6 + $0xc0] sm:$0xff]
        %v2482 = vld [vmem:[#allocation6 + $0xc8] sm:$0xff]
        %v2483 = vld [vmem:[#allocation6 + $0xd0] sm:$0xff]
        %v2484 = vld [vmem:[#allocation6 + $0xd8] sm:$0xff]
        %v2485 = vld [vmem:[#allocation6 + $0xe0] sm:$0xff]
        %v2486 = vld [vmem:[#allocation6 + $0xe8] sm:$0xff]
        %v2487 = vld [vmem:[#allocation6 + $0xf0] sm:$0xff]
        %v2488 = vld [vmem:[#allocation6 + $0xf8] sm:$0xff]
        %v2489 = vld [vmem:[#allocation6 + $0x100] sm:$0xff]
        %v2490 = vld [vmem:[#allocation6 + $0x108] sm:$0xff]
        %v2491 = vld [vmem:[#allocation6 + $0x110] sm:$0xff]
        %v2492 = vld [vmem:[#allocation6 + $0x118] sm:$0xff]
        %v2493 = vld [vmem:[#allocation6 + $0x120] sm:$0xff]
        %v2494 = vld [vmem:[#allocation6 + $0x128] sm:$0xff]
        %v2495 = vld [vmem:[#allocation6 + $0x130] sm:$0xff]
        %v2496 = vld [vmem:[#allocation6 + $0x138] sm:$0xff]
        %v2497 = vld [vmem:[#allocation6 + $0x140] sm:$0xff]
        %v2498 = vld [vmem:[#allocation6 + $0x148] sm:$0xff]
        %v2499 = vld [vmem:[#allocation6 + $0x150] sm:$0xff]
        %v2500 = vld [vmem:[#allocation6 + $0x158] sm:$0xff]
        %v2501 = vld [vmem:[#allocation6 + $0x160] sm:$0xff]
        %v2502 = vld [vmem:[#allocation6 + $0x168] sm:$0xff]
        %v2503 = vld [vmem:[#allocation6 + $0x170] sm:$0xff]
        %v2504 = vld [vmem:[#allocation6 + $0x178] sm:$0xff]
        %v2505 = vld [vmem:[#allocation6 + $0x180] sm:$0xff]
        %v2506 = vld [vmem:[#allocation6 + $0x188] sm:$0xff]
        %v2507 = vld [vmem:[#allocation6 + $0x190] sm:$0xff]
        %v2508 = vld [vmem:[#allocation6 + $0x198] sm:$0xff]
        %v2509 = vld [vmem:[#allocation6 + $0x1a0] sm:$0xff]
        %v2510 = vld [vmem:[#allocation6 + $0x1a8] sm:$0xff]
        %v2511 = vld [vmem:[#allocation6 + $0x1b0] sm:$0xff]
        %v2512 = vld [vmem:[#allocation6 + $0x1b8] sm:$0xff]
        %v2513 = vld [vmem:[#allocation6 + $0x1c0] sm:$0xff]
        %v2514 = vld [vmem:[#allocation6 + $0x1c8] sm:$0xff]
        %v2515 = vld [vmem:[#allocation6 + $0x1d0] sm:$0xff]
        %v2516 = vld [vmem:[#allocation6 + $0x1d8] sm:$0xff]
        %v2517 = vld [vmem:[#allocation6 + $0x1e0] sm:$0xff]
        %v2518 = vld [vmem:[#allocation6 + $0x1e8] sm:$0xff]
        %v2519 = vld [vmem:[#allocation6 + $0x1f0] sm:$0xff]
        %v2520 = vld [vmem:[#allocation6 + $0x1f8] sm:$0xff]
        %v2521 = vld [vmem:[%s6] sm:$0x3]
        %v2523 = vlaneseq
        %v2524 = vshrl.u32 %v2523, 7
        %v2525 = vsub.s32 0, %v2524
        %v2526 = vrot.slane %v2521, %v2525
        %v2527 = vlaneseq
        %v2528 = vshrl.u32 %v2527, 7
        %v2529 = vsub.s32 1, %v2528
        %v2530 = vrot.slane %v2521, %v2529
        %v2534 = vcombine.high %v2456, %v2456
        %2536 = vmatprep.subr.mxu0 %v2488
        %2537 = vmatpush1.msra.mxu0 %v2487
        %2538 = vmatprep.subr.mxu0 %v2486
        %2539 = vmatpush1.msra.mxu0 %v2485
        %2540 = vmatprep.subr.mxu0 %v2484
        %2541 = vmatpush1.msra.mxu0 %v2483
        %2542 = vmatprep.subr.mxu0 %v2482
        %2543 = vmatpush1.msra.mxu0 %v2481
        %2544 = vmatprep.subr.mxu0 %v2480
        %2545 = vmatpush1.msra.mxu0 %v2479
        %2546 = vmatprep.subr.mxu0 %v2478
        %2547 = vmatpush1.msra.mxu0 %v2477
        %2548 = vmatprep.subr.mxu0 %v2476
        %2549 = vmatpush1.msra.mxu0 %v2475
        %2550 = vmatprep.subr.mxu0 %v2474
        %2551 = vmatpush1.msra.mxu0 %v2473
        %2552 = vmatprep.subr.mxu0 %v2472
        %2553 = vmatpush1.msra.mxu0 %v2471
        %2554 = vmatprep.subr.mxu0 %v2470
        %2555 = vmatpush1.msra.mxu0 %v2469
        %2556 = vmatprep.subr.mxu0 %v2468
        %2557 = vmatpush1.msra.mxu0 %v2467
        %2558 = vmatprep.subr.mxu0 %v2466
        %2559 = vmatpush1.msra.mxu0 %v2465
        %2560 = vmatprep.subr.mxu0 %v2464
        %2561 = vmatpush1.msra.mxu0 %v2463
        %2562 = vmatprep.subr.mxu0 %v2462
        %2563 = vmatpush1.msra.mxu0 %v2461
        %2564 = vmatprep.subr.mxu0 %v2460
        %2565 = vmatpush1.msra.mxu0 %v2459
        %2566 = vmatprep.subr.mxu0 %v2458
        %2567 = vmatpush1.msra.mxu0 %v2457
        %2568 = vmatprep.subr.mxu0 %v2520
        %2569 = vmatpush2.msra.mxu0 %v2519
        %2570 = vmatprep.subr.mxu0 %v2518
        %2571 = vmatpush2.msra.mxu0 %v2517
        %2572 = vmatprep.subr.mxu0 %v2516
        %2573 = vmatpush2.msra.mxu0 %v2515
        %2574 = vmatprep.subr.mxu0 %v2514
        %2575 = vmatpush2.msra.mxu0 %v2513
        %2576 = vmatprep.subr.mxu0 %v2512
        %2577 = vmatpush2.msra.mxu0 %v2511
        %2578 = vmatprep.subr.mxu0 %v2510
        %2579 = vmatpush2.msra.mxu0 %v2509
        %2580 = vmatprep.subr.mxu0 %v2508
        %2581 = vmatpush2.msra.mxu0 %v2507
        %2582 = vmatprep.subr.mxu0 %v2506
        %2583 = vmatpush2.msra.mxu0 %v2505
        %2584 = vmatprep.subr.mxu0 %v2504
        %2585 = vmatpush2.msra.mxu0 %v2503
        %2586 = vmatprep.subr.mxu0 %v2502
        %2587 = vmatpush2.msra.mxu0 %v2501
        %2588 = vmatprep.subr.mxu0 %v2500
        %2589 = vmatpush2.msra.mxu0 %v2499
        %2590 = vmatprep.subr.mxu0 %v2498
        %2591 = vmatpush2.msra.mxu0 %v2497
        %2592 = vmatprep.subr.mxu0 %v2496
        %2593 = vmatpush2.msra.mxu0 %v2495
        %2594 = vmatprep.subr.mxu0 %v2494
        %2595 = vmatpush2.msra.mxu0 %v2493
        %2596 = vmatprep.subr.mxu0 %v2492
        %2597 = vmatpush2.msra.mxu0 %v2491
        %2598 = vmatprep.subr.mxu0 %v2490
        %2599 = vmatpush2.msra.mxu0 %v2489
        %2600 = vmatprep.mubr.f32.mxu0 %v2534
        %2601 = vmatmul.mubr.f32.gmra.mxu0 %v2456
        %v2602 = vpop.f32.mrf.mxu0
        %v2603 = vadd.f32 %v2526, %v2602
        %v2604 = vpop.f32.mrf.mxu0
        %v2605 = vadd.f32 %v2530, %v2604
        %2606 = vdwg.mxu0
        %v2609 = vcombine.low %v2603, %v2605
        %2611 = vst [vmem:[%s322] sm:$0xff] %v2609
        %p2612 = scmp.lt.s32.totalorder %s20, 1
        %s2613 = scalar_select %p2612, %s20, 1
        %s2614 = smul.addr %s2613, 2
        %s2615 = smul.addr %s2614, 4
        %s2616 = scalar_lea.vmem %s7, %s2615
        // Predicated region
        $region61: #{abc_net_forward.1} parent=47 // pred_check
          %p2617 = pneg %p190
        $region62: #{abc_net_forward.1} parent=47 // pred_check_branch
          %2619 = sbr.rel (%p2617) target = $region64
        $region63: #{abc_net_forward.1} parent=47 // pred_region
          _
        $region64: #{abc_net_forward.1} parent=47 // pred_fallthru
          _
      $region48: #{abc_net_forward.1} parent=5 // pred_fallthru
        _
      %p2620 = scmp.le.s32.totalorder 2, %s15
      // Predicated region
      $region65: #{abc_net_forward.1} parent=5 // pred_check
        %p2621 = pneg %p2620
      $region66: #{abc_net_forward.1} parent=5 // pred_check_branch
        %2623 = sbr.rel (%p2621) target = $region68
      $region67: #{abc_net_forward.1} parent=5 // pred_region
        %s2624 = ssub.s32 %s15, 2
        // Predicated region
        $region69: #{abc_net_forward.1} parent=67 // pred_check
          %p2625 = pneg %p196
        $region70: #{abc_net_forward.1} parent=67 // pred_check_branch
          %2627 = sbr.rel (%p2625) target = $region72
        $region71: #{abc_net_forward.1} parent=67 // pred_region
          %p2628 = scmp.lt.s32.totalorder %s21, 1
          %s2629 = scalar_select %p2628, %s21, 1
          %s2630 = smul.addr %s2629, 2
          %s2631 = smul.addr %s2630, 4
          %s2632 = scalar_lea.vmem %s7, %s2631
        $region72: #{abc_net_forward.1} parent=67 // pred_fallthru
          _
      $region68: #{abc_net_forward.1} parent=5 // pred_fallthru
        _
    $region6: #{abc_net_forward.1} parent=1 // loop_footer
      %s19 = sadd.s32 1, %s15
    $region7: #{abc_net_forward.1} parent=1 // loop_footer_branch
      %14 = sbr.rel target = $region3
    $region8: #{abc_net_forward.1} parent=1 // loop_exit
      _
    %2633 = vsyncpa [#allocation3], 1
    %s2634 = scalar_lea.sflag [#allocation3], 1
    %2635 = vsyncpa %s2634, 1
    %2636 = vsyncpa [#allocation5], 1

</llo_original>
